<compile_context>
chip_gen: v6e
topology: v6e:2x2x1
jax: 0.10.0
libtpu: 0.0.40
codegen_flags: <defaults>
</compile_context>

<pallas_src>
import math

import numpy as np
import jax
import jax.numpy as jnp
from jax import lax
from jax.experimental import pallas as pl
from jax.experimental.pallas import tpu as pltpu

# ---- small synthetic ViT config (module asserts in_channels == 3) ----
B = 2
C_IN = 3
IMG = 16
PATCH = 4
GRID_HW = IMG // PATCH
N_PATCH = GRID_HW * GRID_HW          # 16
SEQ = N_PATCH + 1                    # 17 (CLS + patches)
SEQ_PAD = 24                         # padded to a sublane multiple
HIDDEN = 32
HEADS = 2
HEAD_DIM = HIDDEN // HEADS           # 16
MLP = 4 * HIDDEN                     # 128
LAYERS = 2
CLASSES = 4
PAD_CLASSES = 128                    # lane-dense padded logits width
PATCH_DIM = C_IN * PATCH * PATCH     # 48
EPS = 1e-12                          # HF ViT layer_norm_eps

# column offsets inside the per-layer "big weight" slab (lane-tile aligned)
QKV_OFF = 0                          # width 3*HIDDEN = 96
WO_OFF = 128                         # width HIDDEN   = 32
W1_OFF = 256                         # width MLP      = 128
WBIG_COLS = 384

# row indices inside the per-layer bias / LayerNorm slab (L, 8, 128)
ROW_LN1W, ROW_LN1B, ROW_LN2W, ROW_LN2B, ROW_BO, ROW_B2, ROW_BQKV, ROW_B1 = range(8)

# rows inside the head slab (40, 128)
HEAD_ROWS = 40                       # 0:HIDDEN = wc, HIDDEN = bc, +1 = flnw, +2 = flnb

# dot_general dimension numbers for head-batched attention matmuls
_DN_BMM = (((2,), (1,)), ((0,), (0,)))   # (h,m,k) @ (h,k,n) -> (h,m,n)
_DN_QKT = (((2,), (2,)), ((0,), (0,)))   # (h,m,d) @ (h,n,d) -> (h,m,n)


# ---------------- shared math (kernel + JAX reference) ----------------
def _gelu(x):
    # tanh-approx GELU: transcendental goes to the EUP slot.
    c = math.sqrt(2.0 / math.pi)
    return 0.5 * x * (1.0 + jnp.tanh(c * (x + 0.044715 * x * x * x)))


def _layernorm(x, w, b):
    mu = jnp.mean(x, axis=-1, keepdims=True)
    var = jnp.mean((x - mu) ** 2, axis=-1, keepdims=True)
    return (x - mu) * lax.rsqrt(var + EPS) * w + b


# ---------------- the single fused Pallas kernel ----------------
def vit_kernel(p_ref, emb_ref, wbig_ref, w2_ref, vec_ref, head_ref, o_ref):
    f32 = jnp.float32

    # --- patch embedding with CLS / patch-bias / position folded into one add ---
    pw = emb_ref[0:PATCH_DIM, :]                              # (PATCH_DIM, HIDDEN)
    bias_full = emb_ref[PATCH_DIM:PATCH_DIM + SEQ_PAD, :]     # (SEQ_PAD, HIDDEN)
    x = jnp.dot(p_ref[0], pw, preferred_element_type=f32) + bias_full   # (SEQ_PAD, HIDDEN)

    # additive key mask for the padded positions (keys >= SEQ)
    key_ids = lax.broadcasted_iota(jnp.int32, (1, 1, SEQ_PAD), 2)
    kmask = jnp.where(key_ids < SEQ, 0.0, -1e9).astype(f32)   # (1, 1, SEQ_PAD)

    scale = 1.0 / math.sqrt(HEAD_DIM)
    for l in range(LAYERS):                                   # static unrolled layer loop
        # --- pre-LN multi-head self-attention; fused QKV projection ---
        h_pre = _layernorm(x,
                           vec_ref[l, ROW_LN1W:ROW_LN1W + 1, :HIDDEN],
                           vec_ref[l, ROW_LN1B:ROW_LN1B + 1, :HIDDEN])
        qkv = (jnp.dot(h_pre, wbig_ref[l, :, QKV_OFF:QKV_OFF + 3 * HIDDEN],
                       preferred_element_type=f32)
               + vec_ref[l, ROW_BQKV:ROW_BQKV + 1, :3 * HIDDEN])         # (SEQ_PAD, 96)

        # one head-split relayout for the whole qkv block (XLU)
        qkvh = qkv.reshape(SEQ_PAD, 3 * HEADS, HEAD_DIM).transpose(1, 0, 2)  # (6, SEQ_PAD, HD)
        qh = qkvh[0:HEADS]                                     # (HEADS, SEQ_PAD, HEAD_DIM)
        kh = qkvh[HEADS:2 * HEADS]
        vh = qkvh[2 * HEADS:3 * HEADS]

        scores = (lax.dot_general(qh, kh, _DN_QKT, preferred_element_type=f32)
                  * scale + kmask)                             # (HEADS, SEQ_PAD, SEQ_PAD)
        scores = scores - jnp.max(scores, axis=-1, keepdims=True)
        p = jnp.exp(scores)
        s = jnp.sum(p, axis=-1, keepdims=True)
        inv = pl.reciprocal(s, approx=True)                    # EUP slot
        inv = inv * (2.0 - s * inv)                            # one Newton step for 1e-4 parity
        ctx = lax.dot_general(p * inv, vh, _DN_BMM, preferred_element_type=f32)  # (H, S, HD)

        # merge heads back and do the output projection as one K=HIDDEN matmul
        ctx2d = ctx.transpose(1, 0, 2).reshape(SEQ_PAD, HIDDEN)
        h1 = (x
              + jnp.dot(ctx2d, wbig_ref[l, :, WO_OFF:WO_OFF + HIDDEN],
                        preferred_element_type=f32)
              + vec_ref[l, ROW_BO:ROW_BO + 1, :HIDDEN])        # residual 1

        # --- pre-LN GELU MLP ---
        h_pre2 = _layernorm(h1,
                            vec_ref[l, ROW_LN2W:ROW_LN2W + 1, :HIDDEN],
                            vec_ref[l, ROW_LN2B:ROW_LN2B + 1, :HIDDEN])
        m = _gelu(jnp.dot(h_pre2, wbig_ref[l, :, W1_OFF:W1_OFF + MLP],
                          preferred_element_type=f32)
                  + vec_ref[l, ROW_B1:ROW_B1 + 1, :MLP])
        x = (h1
             + jnp.dot(m, w2_ref[l], preferred_element_type=f32)
             + vec_ref[l, ROW_B2:ROW_B2 + 1, :HIDDEN])         # residual 2

    # --- final LayerNorm on the CLS row only + classifier (lane-dense store) ---
    cls_tok = x[0:1, :]
    ln = _layernorm(cls_tok,
                    head_ref[HIDDEN + 1:HIDDEN + 2, :HIDDEN],
                    head_ref[HIDDEN + 2:HIDDEN + 3, :HIDDEN])
    o_ref[0] = (jnp.dot(ln, head_ref[0:HIDDEN, :], preferred_element_type=f32)
                + head_ref[HIDDEN:HIDDEN + 1, :])


# ---------------- pallas_call wrapper ----------------
def _const_spec(arr):
    zeros = (0,) * arr.ndim
    return pl.BlockSpec(arr.shape, lambda b, z=zeros: z)


def vit_forward(patches_padded, kparams):
    out = pl.pallas_call(
        vit_kernel,
        out_shape=jax.ShapeDtypeStruct((B, 1, PAD_CLASSES), jnp.float32),
        grid=(B,),
        in_specs=[pl.BlockSpec((1, SEQ_PAD, PATCH_DIM), lambda b: (b, 0, 0))]
                 + [_const_spec(p) for p in kparams],
        out_specs=pl.BlockSpec((1, 1, PAD_CLASSES), lambda b: (b, 0, 0)),
        compiler_params=pltpu.CompilerParams(dimension_semantics=("parallel",)),
    )(patches_padded, *kparams)
    return out[:, 0, :CLASSES]


# ---------------- glue (plain JAX, layout only) ----------------
def extract_patches(x_nchw):
    # (B, C, H, W) -> (B, N_PATCH, C*P*P), channel-major per patch, matching
    # PyTorch Conv2d(kernel=stride=PATCH) weight layout (out, in, kh, kw).
    x = x_nchw.reshape(B, C_IN, GRID_HW, PATCH, GRID_HW, PATCH)
    x = x.transpose(0, 2, 4, 1, 3, 5)
    return x.reshape(B, N_PATCH, PATCH_DIM)


def pad_patches(patches):
    # row 0 (CLS slot) and rows SEQ..SEQ_PAD-1 are zero.
    out = jnp.zeros((B, SEQ_PAD, PATCH_DIM), jnp.float32)
    return out.at[:, 1:SEQ, :].set(patches)


def pack_params(params):
    """Host-side repack into a handful of large slabs for the kernel."""
    Ls = params["layers"]

    def stack(i):
        return jnp.stack([lp[i] for lp in Ls], axis=0)

    ln1w, ln1b = stack(0), stack(1)                  # (L, 1, HIDDEN)
    wq, bq = stack(2), stack(3)
    wk, bk = stack(4), stack(5)
    wv, bv = stack(6), stack(7)
    wo, bo = stack(8), stack(9)
    ln2w, ln2b = stack(10), stack(11)
    w1, b1 = stack(12), stack(13)
    w2, b2 = stack(14), stack(15)

    # embed slab: [patch_w ; bias_full] along rows — (PATCH_DIM + SEQ_PAD, HIDDEN)
    pos = params["pos"][0]                           # (SEQ, HIDDEN)
    bias_full = jnp.zeros((SEQ_PAD, HIDDEN), jnp.float32)
    bias_full = bias_full.at[0].set(params["cls"][0, 0] + pos[0])
    bias_full = bias_full.at[1:SEQ].set(params["patch_b"][0] + pos[1:])
    embed = jnp.concatenate([params["patch_w"], bias_full], axis=0)

    # big weight slab: per layer [wqkv | pad | wo | pad | w1], lane-tile aligned
    wqkv = jnp.concatenate([wq, wk, wv], axis=2)     # (L, HIDDEN, 3*HIDDEN)
    wbig = jnp.zeros((LAYERS, HIDDEN, WBIG_COLS), jnp.float32)
    wbig = wbig.at[:, :, QKV_OFF:QKV_OFF + 3 * HIDDEN].set(wqkv)
    wbig = wbig.at[:, :, WO_OFF:WO_OFF + HIDDEN].set(wo)
    wbig = wbig.at[:, :, W1_OFF:W1_OFF + MLP].set(w1)

    # bias / LayerNorm slab: (L, 8, 128)
    vecs = jnp.zeros((LAYERS, 8, 128), jnp.float32)
    vecs = vecs.at[:, ROW_LN1W, :HIDDEN].set(ln1w[:, 0])
    vecs = vecs.at[:, ROW_LN1B, :HIDDEN].set(ln1b[:, 0])
    vecs = vecs.at[:, ROW_LN2W, :HIDDEN].set(ln2w[:, 0])
    vecs = vecs.at[:, ROW_LN2B, :HIDDEN].set(ln2b[:, 0])
    vecs = vecs.at[:, ROW_BO, :HIDDEN].set(bo[:, 0])
    vecs = vecs.at[:, ROW_B2, :HIDDEN].set(b2[:, 0])
    vecs = vecs.at[:, ROW_BQKV, :3 * HIDDEN].set(
        jnp.concatenate([bq, bk, bv], axis=2)[:, 0])
    vecs = vecs.at[:, ROW_B1, :MLP].set(b1[:, 0])

    # head slab: classifier weight/bias (lane-padded) + final LN params
    head = jnp.zeros((HEAD_ROWS, PAD_CLASSES), jnp.float32)
    head = head.at[:HIDDEN, :CLASSES].set(params["cls_w"])
    head = head.at[HIDDEN, :CLASSES].set(params["cls_b"][0])
    head = head.at[HIDDEN + 1, :HIDDEN].set(params["final_ln_w"][0])
    head = head.at[HIDDEN + 2, :HIDDEN].set(params["final_ln_b"][0])

    return [embed, wbig, w2, vecs, head]


# ---------------- pure-JAX reference (same math, no Pallas) ----------------
def vit_reference(x_nchw, params):
    patches = extract_patches(x_nchw)
    tokens = patches @ params["patch_w"] + params["patch_b"]
    cls = jnp.broadcast_to(params["cls"], (B, 1, HIDDEN))
    tokens = jnp.concatenate([cls, tokens], axis=1) + params["pos"]
    for (ln1w, ln1b, wq, bq, wk, bk, wv, bv, wo, bo,
         ln2w, ln2b, w1, b1, w2, b2) in params["layers"]:
        x = tokens
        hp = _layernorm(x, ln1w, ln1b)
        q = hp @ wq + bq
        k = hp @ wk + bk
        v = hp @ wv + bv
        qh = q.reshape(B, SEQ, HEADS, HEAD_DIM).transpose(0, 2, 1, 3)
        kh = k.reshape(B, SEQ, HEADS, HEAD_DIM).transpose(0, 2, 1, 3)
        vh = v.reshape(B, SEQ, HEADS, HEAD_DIM).transpose(0, 2, 1, 3)
        scores = jnp.einsum("bhqd,bhkd->bhqk", qh, kh) / math.sqrt(HEAD_DIM)
        probs = jax.nn.softmax(scores, axis=-1)
        ctx = jnp.einsum("bhqk,bhkd->bhqd", probs, vh)
        ctx = ctx.transpose(0, 2, 1, 3).reshape(B, SEQ, HIDDEN)
        h1 = x + (ctx @ wo + bo)
        hp2 = _layernorm(h1, ln2w, ln2b)
        m = _gelu(hp2 @ w1 + b1) @ w2 + b2
        tokens = h1 + m
    seq_out = _layernorm(tokens, params["final_ln_w"], params["final_ln_b"])
    return seq_out[:, 0, :] @ params["cls_w"] + params["cls_b"]


# ---------------- deterministic synthetic parameters ----------------
def init_params(key):
    keys = list(jax.random.split(key, 40))
    it = iter(keys)

    def nrm(shape, scale=0.02):
        return scale * jax.random.normal(next(it), shape, dtype=jnp.float32)

    params = {}
    w_conv = nrm((HIDDEN, C_IN, PATCH, PATCH))                 # PyTorch conv weight layout
    params["patch_w"] = w_conv.reshape(HIDDEN, PATCH_DIM).T    # (PATCH_DIM, HIDDEN)
    params["patch_b"] = nrm((1, HIDDEN))
    params["cls"] = nrm((1, 1, HIDDEN))
    params["pos"] = nrm((1, SEQ, HIDDEN))

    layers = []
    for _ in range(LAYERS):
        ln1w = jnp.ones((1, HIDDEN), jnp.float32)
        ln1b = jnp.zeros((1, HIDDEN), jnp.float32)
        wq, bq = nrm((HIDDEN, HIDDEN)), nrm((1, HIDDEN))
        wk, bk = nrm((HIDDEN, HIDDEN)), nrm((1, HIDDEN))
        wv, bv = nrm((HIDDEN, HIDDEN)), nrm((1, HIDDEN))
        wo, bo = nrm((HIDDEN, HIDDEN)), nrm((1, HIDDEN))
        ln2w = jnp.ones((1, HIDDEN), jnp.float32)
        ln2b = jnp.zeros((1, HIDDEN), jnp.float32)
        w1, b1 = nrm((HIDDEN, MLP)), nrm((1, MLP))
        w2, b2 = nrm((MLP, HIDDEN)), nrm((1, HIDDEN))
        layers.append((ln1w, ln1b, wq, bq, wk, bk, wv, bv, wo, bo,
                       ln2w, ln2b, w1, b1, w2, b2))
    params["layers"] = layers

    params["final_ln_w"] = jnp.ones((1, HIDDEN), jnp.float32)
    params["final_ln_b"] = jnp.zeros((1, HIDDEN), jnp.float32)
    params["cls_w"] = nrm((HIDDEN, CLASSES))
    params["cls_b"] = nrm((1, CLASSES))
    return params


if __name__ == "__main__":
    key = jax.random.PRNGKey(0)
    kx, kp = jax.random.split(key)
    x = jax.random.normal(kx, (B, C_IN, IMG, IMG), dtype=jnp.float32)
    params = init_params(kp)
    kparams = pack_params(params)
    patches_padded = pad_patches(extract_patches(x))

    logits = jax.block_until_ready(vit_forward(patches_padded, kparams))
    assert logits.shape == (B, CLASSES), logits.shape

    ref = vit_reference(x, params)
    np.testing.assert_allclose(np.asarray(logits), np.asarray(ref), rtol=1e-4, atol=1e-4)

    print("KERNEL_OK")
</pallas_src>

<mosaic_0001>
module attributes {stable_mosaic.version = 11 : i64} {
  func.func @vit_kernel(%arg0: i32, %arg1: memref<1x24x48xf32, #tpu.memory_space<vmem>>, %arg2: memref<72x32xf32, #tpu.memory_space<vmem>>, %arg3: memref<2x32x384xf32, #tpu.memory_space<vmem>>, %arg4: memref<2x128x32xf32, #tpu.memory_space<vmem>>, %arg5: memref<2x8x128xf32, #tpu.memory_space<vmem>>, %arg6: memref<40x128xf32, #tpu.memory_space<vmem>>, %arg7: memref<1x1x128xf32, #tpu.memory_space<vmem>>) attributes {dimension_semantics = [#tpu.dimension_semantics<parallel>], iteration_bounds = array<i64: 2>, scalar_prefetch = 0 : i64, scratch_operands = 0 : i64, tpu.core_type = #tpu.core_type<tc>, window_params = [{transform_indices = @transform_0, window_bounds = array<i64: 1, 24, 48>}, {pipeline_mode = #tpu.pipeline_mode<synchronous>, transform_indices = @transform_1, window_bounds = array<i64: 72, 32>}, {pipeline_mode = #tpu.pipeline_mode<synchronous>, transform_indices = @transform_2, window_bounds = array<i64: 2, 32, 384>}, {pipeline_mode = #tpu.pipeline_mode<synchronous>, transform_indices = @transform_3, window_bounds = array<i64: 2, 128, 32>}, {pipeline_mode = #tpu.pipeline_mode<synchronous>, transform_indices = @transform_4, window_bounds = array<i64: 2, 8, 128>}, {pipeline_mode = #tpu.pipeline_mode<synchronous>, transform_indices = @transform_5, window_bounds = array<i64: 40, 128>}, {transform_indices = @transform_6, window_bounds = array<i64: 1, 1, 128>}]} {
    %c0 = arith.constant 0 : index
    %c0_0 = arith.constant 0 : index
    %0 = vector.load %arg2[%c0, %c0_0] : memref<72x32xf32, #tpu.memory_space<vmem>>, vector<48x32xf32>
    %c48 = arith.constant 48 : index
    %c0_1 = arith.constant 0 : index
    %1 = vector.load %arg2[%c48, %c0_1] : memref<72x32xf32, #tpu.memory_space<vmem>>, vector<24x32xf32>
    %c0_2 = arith.constant 0 : index
    %c0_3 = arith.constant 0 : index
    %c0_4 = arith.constant 0 : index
    %2 = vector.load %arg1[%c0_2, %c0_3, %c0_4] : memref<1x24x48xf32, #tpu.memory_space<vmem>>, vector<1x24x48xf32>
    %3 = vector.shape_cast %2 : vector<1x24x48xf32> to vector<24x48xf32>
    %cst = arith.constant dense<0.000000e+00> : vector<24x32xf32>
    %4 = tpu.matmul %3, %0, %cst {dimension_numbers = #tpu.dot_dimension_numbers<[1], [0], [0], [1], [0, 0, 1, 1], [], []>} : vector<24x48xf32>, vector<48x32xf32>, vector<24x32xf32> -> vector<24x32xf32>
    %5 = arith.addf %4, %1 : vector<24x32xf32>
    %6 = tpu.iota {dimensions = array<i32: 2>} : vector<1x1x24xi32>
    %c17_i32 = arith.constant 17 : i32
    %7 = vector.broadcast %c17_i32 : i32 to vector<1x1x24xi32>
    %8 = arith.cmpi slt, %6, %7 : vector<1x1x24xi32>
    %cst_5 = arith.constant 0.000000e+00 : f32
    %cst_6 = arith.constant -1.000000e+09 : f32
    %9 = vector.broadcast %cst_5 : f32 to vector<1x1x24xf32>
    %10 = vector.broadcast %cst_6 : f32 to vector<1x1x24xf32>
    %11 = arith.select %8, %9, %10 : vector<1x1x24xi1>, vector<1x1x24xf32>
    %c0_7 = arith.constant 0 : index
    %c0_8 = arith.constant 0 : index
    %c0_9 = arith.constant 0 : index
    %12 = vector.load %arg5[%c0_7, %c0_8, %c0_9] : memref<2x8x128xf32, #tpu.memory_space<vmem>>, vector<1x1x32xf32>
    %13 = vector.shape_cast %12 : vector<1x1x32xf32> to vector<1x32xf32>
    %c0_10 = arith.constant 0 : index
    %c1 = arith.constant 1 : index
    %c0_11 = arith.constant 0 : index
    %14 = vector.load %arg5[%c0_10, %c1, %c0_11] : memref<2x8x128xf32, #tpu.memory_space<vmem>>, vector<1x1x32xf32>
    %15 = vector.shape_cast %14 : vector<1x1x32xf32> to vector<1x32xf32>
    %cst_12 = arith.constant dense<0.000000e+00> : vector<24xf32>
    %16 = vector.multi_reduction <add>, %5, %cst_12 [1] : vector<24x32xf32> to vector<24xf32>
    %17 = vector.shape_cast %16 : vector<24xf32> to vector<24x1xf32>
    %cst_13 = arith.constant 3.200000e+01 : f32
    %18 = vector.broadcast %cst_13 : f32 to vector<24x1xf32>
    %19 = arith.divf %17, %18 : vector<24x1xf32>
    %20 = vector.broadcast %19 : vector<24x1xf32> to vector<24x32xf32>
    %21 = arith.subf %5, %20 : vector<24x32xf32>
    %22 = arith.mulf %21, %21 : vector<24x32xf32>
    %cst_14 = arith.constant dense<0.000000e+00> : vector<24xf32>
    %23 = vector.multi_reduction <add>, %22, %cst_14 [1] : vector<24x32xf32> to vector<24xf32>
    %24 = vector.shape_cast %23 : vector<24xf32> to vector<24x1xf32>
    %cst_15 = arith.constant 3.200000e+01 : f32
    %25 = vector.broadcast %cst_15 : f32 to vector<24x1xf32>
    %26 = arith.divf %24, %25 : vector<24x1xf32>
    %27 = vector.broadcast %19 : vector<24x1xf32> to vector<24x32xf32>
    %28 = arith.subf %5, %27 : vector<24x32xf32>
    %cst_16 = arith.constant 9.99999996E-13 : f32
    %29 = vector.broadcast %cst_16 : f32 to vector<24x1xf32>
    %30 = arith.addf %26, %29 : vector<24x1xf32>
    %31 = math.rsqrt %30 : vector<24x1xf32>
    %32 = vector.broadcast %31 : vector<24x1xf32> to vector<24x32xf32>
    %33 = arith.mulf %28, %32 : vector<24x32xf32>
    %34 = vector.broadcast %13 : vector<1x32xf32> to vector<24x32xf32>
    %35 = arith.mulf %33, %34 : vector<24x32xf32>
    %36 = vector.broadcast %15 : vector<1x32xf32> to vector<24x32xf32>
    %37 = arith.addf %35, %36 : vector<24x32xf32>
    %c0_17 = arith.constant 0 : index
    %c0_18 = arith.constant 0 : index
    %c0_19 = arith.constant 0 : index
    %38 = vector.load %arg3[%c0_17, %c0_18, %c0_19] : memref<2x32x384xf32, #tpu.memory_space<vmem>>, vector<1x32x96xf32>
    %39 = vector.shape_cast %38 : vector<1x32x96xf32> to vector<32x96xf32>
    %cst_20 = arith.constant dense<0.000000e+00> : vector<24x96xf32>
    %40 = tpu.matmul %37, %39, %cst_20 {dimension_numbers = #tpu.dot_dimension_numbers<[1], [0], [0], [1], [0, 0, 1, 1], [], []>} : vector<24x32xf32>, vector<32x96xf32>, vector<24x96xf32> -> vector<24x96xf32>
    %c0_21 = arith.constant 0 : index
    %c6 = arith.constant 6 : index
    %c0_22 = arith.constant 0 : index
    %41 = vector.load %arg5[%c0_21, %c6, %c0_22] : memref<2x8x128xf32, #tpu.memory_space<vmem>>, vector<1x1x96xf32>
    %42 = vector.shape_cast %41 : vector<1x1x96xf32> to vector<1x96xf32>
    %43 = vector.broadcast %42 : vector<1x96xf32> to vector<24x96xf32>
    %44 = arith.addf %40, %43 : vector<24x96xf32>
    %45 = vector.shape_cast %44 : vector<24x96xf32> to vector<24x6x16xf32>
    %46 = tpu.transpose %45, [1, 0, 2] : vector<24x6x16xf32> -> vector<6x24x16xf32>
    %47 = vector.extract_strided_slice %46 {offsets = [0, 0, 0], sizes = [2, 24, 16], strides = [1, 1, 1]} : vector<6x24x16xf32> to vector<2x24x16xf32>
    %48 = vector.extract_strided_slice %46 {offsets = [2, 0, 0], sizes = [2, 24, 16], strides = [1, 1, 1]} : vector<6x24x16xf32> to vector<2x24x16xf32>
    %49 = vector.extract_strided_slice %46 {offsets = [4, 0, 0], sizes = [2, 24, 16], strides = [1, 1, 1]} : vector<6x24x16xf32> to vector<2x24x16xf32>
    %cst_23 = arith.constant dense<0.000000e+00> : vector<2x24x24xf32>
    %50 = tpu.matmul %47, %48, %cst_23 {dimension_numbers = #tpu.dot_dimension_numbers<[2], [2], [1], [1], [0, 0, 0, 1, 1, 1], [0], [0]>} : vector<2x24x16xf32>, vector<2x24x16xf32>, vector<2x24x24xf32> -> vector<2x24x24xf32>
    %cst_24 = arith.constant 2.500000e-01 : f32
    %51 = vector.broadcast %cst_24 : f32 to vector<2x24x24xf32>
    %52 = arith.mulf %50, %51 : vector<2x24x24xf32>
    %53 = vector.broadcast %11 : vector<1x1x24xf32> to vector<2x24x24xf32>
    %54 = arith.addf %52, %53 : vector<2x24x24xf32>
    %cst_25 = arith.constant dense<0xFF800000> : vector<2x24xf32>
    %55 = vector.multi_reduction <maximumf>, %54, %cst_25 [2] : vector<2x24x24xf32> to vector<2x24xf32>
    %56 = vector.shape_cast %55 : vector<2x24xf32> to vector<2x24x1xf32>
    %57 = vector.broadcast %56 : vector<2x24x1xf32> to vector<2x24x24xf32>
    %58 = arith.subf %54, %57 : vector<2x24x24xf32>
    %59 = math.exp %58 : vector<2x24x24xf32>
    %cst_26 = arith.constant dense<0.000000e+00> : vector<2x24xf32>
    %60 = vector.multi_reduction <add>, %59, %cst_26 [2] : vector<2x24x24xf32> to vector<2x24xf32>
    %61 = vector.shape_cast %60 : vector<2x24xf32> to vector<2x24x1xf32>
    %62 = tpu.reciprocal %61 {approx = true} : vector<2x24x1xf32> -> vector<2x24x1xf32>
    %63 = arith.mulf %61, %62 : vector<2x24x1xf32>
    %cst_27 = arith.constant 2.000000e+00 : f32
    %64 = vector.broadcast %cst_27 : f32 to vector<2x24x1xf32>
    %65 = arith.subf %64, %63 : vector<2x24x1xf32>
    %66 = arith.mulf %62, %65 : vector<2x24x1xf32>
    %67 = vector.broadcast %66 : vector<2x24x1xf32> to vector<2x24x24xf32>
    %68 = arith.mulf %59, %67 : vector<2x24x24xf32>
    %cst_28 = arith.constant dense<0.000000e+00> : vector<2x24x16xf32>
    %69 = tpu.matmul %68, %49, %cst_28 {dimension_numbers = #tpu.dot_dimension_numbers<[2], [1], [1], [2], [0, 0, 0, 1, 1, 2], [0], [0]>} : vector<2x24x24xf32>, vector<2x24x16xf32>, vector<2x24x16xf32> -> vector<2x24x16xf32>
    %70 = tpu.transpose %69, [1, 0, 2] : vector<2x24x16xf32> -> vector<24x2x16xf32>
    %71 = vector.shape_cast %70 : vector<24x2x16xf32> to vector<24x32xf32>
    %c0_29 = arith.constant 0 : index
    %c0_30 = arith.constant 0 : index
    %c128 = arith.constant 128 : index
    %72 = vector.load %arg3[%c0_29, %c0_30, %c128] : memref<2x32x384xf32, #tpu.memory_space<vmem>>, vector<1x32x32xf32>
    %73 = vector.shape_cast %72 : vector<1x32x32xf32> to vector<32x32xf32>
    %cst_31 = arith.constant dense<0.000000e+00> : vector<24x32xf32>
    %74 = tpu.matmul %71, %73, %cst_31 {dimension_numbers = #tpu.dot_dimension_numbers<[1], [0], [0], [1], [0, 0, 1, 1], [], []>} : vector<24x32xf32>, vector<32x32xf32>, vector<24x32xf32> -> vector<24x32xf32>
    %75 = arith.addf %5, %74 : vector<24x32xf32>
    %c0_32 = arith.constant 0 : index
    %c4 = arith.constant 4 : index
    %c0_33 = arith.constant 0 : index
    %76 = vector.load %arg5[%c0_32, %c4, %c0_33] : memref<2x8x128xf32, #tpu.memory_space<vmem>>, vector<1x1x32xf32>
    %77 = vector.shape_cast %76 : vector<1x1x32xf32> to vector<1x32xf32>
    %78 = vector.broadcast %77 : vector<1x32xf32> to vector<24x32xf32>
    %79 = arith.addf %75, %78 : vector<24x32xf32>
    %c0_34 = arith.constant 0 : index
    %c2 = arith.constant 2 : index
    %c0_35 = arith.constant 0 : index
    %80 = vector.load %arg5[%c0_34, %c2, %c0_35] : memref<2x8x128xf32, #tpu.memory_space<vmem>>, vector<1x1x32xf32>
    %81 = vector.shape_cast %80 : vector<1x1x32xf32> to vector<1x32xf32>
    %c0_36 = arith.constant 0 : index
    %c3 = arith.constant 3 : index
    %c0_37 = arith.constant 0 : index
    %82 = vector.load %arg5[%c0_36, %c3, %c0_37] : memref<2x8x128xf32, #tpu.memory_space<vmem>>, vector<1x1x32xf32>
    %83 = vector.shape_cast %82 : vector<1x1x32xf32> to vector<1x32xf32>
    %cst_38 = arith.constant dense<0.000000e+00> : vector<24xf32>
    %84 = vector.multi_reduction <add>, %79, %cst_38 [1] : vector<24x32xf32> to vector<24xf32>
    %85 = vector.shape_cast %84 : vector<24xf32> to vector<24x1xf32>
    %cst_39 = arith.constant 3.200000e+01 : f32
    %86 = vector.broadcast %cst_39 : f32 to vector<24x1xf32>
    %87 = arith.divf %85, %86 : vector<24x1xf32>
    %88 = vector.broadcast %87 : vector<24x1xf32> to vector<24x32xf32>
    %89 = arith.subf %79, %88 : vector<24x32xf32>
    %90 = arith.mulf %89, %89 : vector<24x32xf32>
    %cst_40 = arith.constant dense<0.000000e+00> : vector<24xf32>
    %91 = vector.multi_reduction <add>, %90, %cst_40 [1] : vector<24x32xf32> to vector<24xf32>
    %92 = vector.shape_cast %91 : vector<24xf32> to vector<24x1xf32>
    %cst_41 = arith.constant 3.200000e+01 : f32
    %93 = vector.broadcast %cst_41 : f32 to vector<24x1xf32>
    %94 = arith.divf %92, %93 : vector<24x1xf32>
    %95 = vector.broadcast %87 : vector<24x1xf32> to vector<24x32xf32>
    %96 = arith.subf %79, %95 : vector<24x32xf32>
    %cst_42 = arith.constant 9.99999996E-13 : f32
    %97 = vector.broadcast %cst_42 : f32 to vector<24x1xf32>
    %98 = arith.addf %94, %97 : vector<24x1xf32>
    %99 = math.rsqrt %98 : vector<24x1xf32>
    %100 = vector.broadcast %99 : vector<24x1xf32> to vector<24x32xf32>
    %101 = arith.mulf %96, %100 : vector<24x32xf32>
    %102 = vector.broadcast %81 : vector<1x32xf32> to vector<24x32xf32>
    %103 = arith.mulf %101, %102 : vector<24x32xf32>
    %104 = vector.broadcast %83 : vector<1x32xf32> to vector<24x32xf32>
    %105 = arith.addf %103, %104 : vector<24x32xf32>
    %c0_43 = arith.constant 0 : index
    %c0_44 = arith.constant 0 : index
    %c256 = arith.constant 256 : index
    %106 = vector.load %arg3[%c0_43, %c0_44, %c256] : memref<2x32x384xf32, #tpu.memory_space<vmem>>, vector<1x32x128xf32>
    %107 = vector.shape_cast %106 : vector<1x32x128xf32> to vector<32x128xf32>
    %cst_45 = arith.constant dense<0.000000e+00> : vector<24x128xf32>
    %108 = tpu.matmul %105, %107, %cst_45 {dimension_numbers = #tpu.dot_dimension_numbers<[1], [0], [0], [1], [0, 0, 1, 1], [], []>} : vector<24x32xf32>, vector<32x128xf32>, vector<24x128xf32> -> vector<24x128xf32>
    %c0_46 = arith.constant 0 : index
    %c7 = arith.constant 7 : index
    %c0_47 = arith.constant 0 : index
    %109 = vector.load %arg5[%c0_46, %c7, %c0_47] : memref<2x8x128xf32, #tpu.memory_space<vmem>>, vector<1x1x128xf32>
    %110 = vector.shape_cast %109 : vector<1x1x128xf32> to vector<1x128xf32>
    %111 = vector.broadcast %110 : vector<1x128xf32> to vector<24x128xf32>
    %112 = arith.addf %108, %111 : vector<24x128xf32>
    %cst_48 = arith.constant 5.000000e-01 : f32
    %113 = vector.broadcast %cst_48 : f32 to vector<24x128xf32>
    %114 = arith.mulf %113, %112 : vector<24x128xf32>
    %cst_49 = arith.constant 4.471500e-02 : f32
    %115 = vector.broadcast %cst_49 : f32 to vector<24x128xf32>
    %116 = arith.mulf %115, %112 : vector<24x128xf32>
    %117 = arith.mulf %116, %112 : vector<24x128xf32>
    %118 = arith.mulf %117, %112 : vector<24x128xf32>
    %119 = arith.addf %112, %118 : vector<24x128xf32>
    %cst_50 = arith.constant 0.797884583 : f32
    %120 = vector.broadcast %cst_50 : f32 to vector<24x128xf32>
    %121 = arith.mulf %120, %119 : vector<24x128xf32>
    %122 = math.tanh %121 : vector<24x128xf32>
    %cst_51 = arith.constant 1.000000e+00 : f32
    %123 = vector.broadcast %cst_51 : f32 to vector<24x128xf32>
    %124 = arith.addf %123, %122 : vector<24x128xf32>
    %125 = arith.mulf %114, %124 : vector<24x128xf32>
    %c0_52 = arith.constant 0 : index
    %c0_53 = arith.constant 0 : index
    %c0_54 = arith.constant 0 : index
    %126 = vector.load %arg4[%c0_52, %c0_53, %c0_54] : memref<2x128x32xf32, #tpu.memory_space<vmem>>, vector<1x128x32xf32>
    %127 = vector.shape_cast %126 : vector<1x128x32xf32> to vector<128x32xf32>
    %cst_55 = arith.constant dense<0.000000e+00> : vector<24x32xf32>
    %128 = tpu.matmul %125, %127, %cst_55 {dimension_numbers = #tpu.dot_dimension_numbers<[1], [0], [0], [1], [0, 0, 1, 1], [], []>} : vector<24x128xf32>, vector<128x32xf32>, vector<24x32xf32> -> vector<24x32xf32>
    %129 = arith.addf %79, %128 : vector<24x32xf32>
    %c0_56 = arith.constant 0 : index
    %c5 = arith.constant 5 : index
    %c0_57 = arith.constant 0 : index
    %130 = vector.load %arg5[%c0_56, %c5, %c0_57] : memref<2x8x128xf32, #tpu.memory_space<vmem>>, vector<1x1x32xf32>
    %131 = vector.shape_cast %130 : vector<1x1x32xf32> to vector<1x32xf32>
    %132 = vector.broadcast %131 : vector<1x32xf32> to vector<24x32xf32>
    %133 = arith.addf %129, %132 : vector<24x32xf32>
    %c1_58 = arith.constant 1 : index
    %c0_59 = arith.constant 0 : index
    %c0_60 = arith.constant 0 : index
    %134 = vector.load %arg5[%c1_58, %c0_59, %c0_60] : memref<2x8x128xf32, #tpu.memory_space<vmem>>, vector<1x1x32xf32>
    %135 = vector.shape_cast %134 : vector<1x1x32xf32> to vector<1x32xf32>
    %c1_61 = arith.constant 1 : index
    %c1_62 = arith.constant 1 : index
    %c0_63 = arith.constant 0 : index
    %136 = vector.load %arg5[%c1_61, %c1_62, %c0_63] : memref<2x8x128xf32, #tpu.memory_space<vmem>>, vector<1x1x32xf32>
    %137 = vector.shape_cast %136 : vector<1x1x32xf32> to vector<1x32xf32>
    %cst_64 = arith.constant dense<0.000000e+00> : vector<24xf32>
    %138 = vector.multi_reduction <add>, %133, %cst_64 [1] : vector<24x32xf32> to vector<24xf32>
    %139 = vector.shape_cast %138 : vector<24xf32> to vector<24x1xf32>
    %cst_65 = arith.constant 3.200000e+01 : f32
    %140 = vector.broadcast %cst_65 : f32 to vector<24x1xf32>
    %141 = arith.divf %139, %140 : vector<24x1xf32>
    %142 = vector.broadcast %141 : vector<24x1xf32> to vector<24x32xf32>
    %143 = arith.subf %133, %142 : vector<24x32xf32>
    %144 = arith.mulf %143, %143 : vector<24x32xf32>
    %cst_66 = arith.constant dense<0.000000e+00> : vector<24xf32>
    %145 = vector.multi_reduction <add>, %144, %cst_66 [1] : vector<24x32xf32> to vector<24xf32>
    %146 = vector.shape_cast %145 : vector<24xf32> to vector<24x1xf32>
    %cst_67 = arith.constant 3.200000e+01 : f32
    %147 = vector.broadcast %cst_67 : f32 to vector<24x1xf32>
    %148 = arith.divf %146, %147 : vector<24x1xf32>
    %149 = vector.broadcast %141 : vector<24x1xf32> to vector<24x32xf32>
    %150 = arith.subf %133, %149 : vector<24x32xf32>
    %cst_68 = arith.constant 9.99999996E-13 : f32
    %151 = vector.broadcast %cst_68 : f32 to vector<24x1xf32>
    %152 = arith.addf %148, %151 : vector<24x1xf32>
    %153 = math.rsqrt %152 : vector<24x1xf32>
    %154 = vector.broadcast %153 : vector<24x1xf32> to vector<24x32xf32>
    %155 = arith.mulf %150, %154 : vector<24x32xf32>
    %156 = vector.broadcast %135 : vector<1x32xf32> to vector<24x32xf32>
    %157 = arith.mulf %155, %156 : vector<24x32xf32>
    %158 = vector.broadcast %137 : vector<1x32xf32> to vector<24x32xf32>
    %159 = arith.addf %157, %158 : vector<24x32xf32>
    %c1_69 = arith.constant 1 : index
    %c0_70 = arith.constant 0 : index
    %c0_71 = arith.constant 0 : index
    %160 = vector.load %arg3[%c1_69, %c0_70, %c0_71] : memref<2x32x384xf32, #tpu.memory_space<vmem>>, vector<1x32x96xf32>
    %161 = vector.shape_cast %160 : vector<1x32x96xf32> to vector<32x96xf32>
    %cst_72 = arith.constant dense<0.000000e+00> : vector<24x96xf32>
    %162 = tpu.matmul %159, %161, %cst_72 {dimension_numbers = #tpu.dot_dimension_numbers<[1], [0], [0], [1], [0, 0, 1, 1], [], []>} : vector<24x32xf32>, vector<32x96xf32>, vector<24x96xf32> -> vector<24x96xf32>
    %c1_73 = arith.constant 1 : index
    %c6_74 = arith.constant 6 : index
    %c0_75 = arith.constant 0 : index
    %163 = vector.load %arg5[%c1_73, %c6_74, %c0_75] : memref<2x8x128xf32, #tpu.memory_space<vmem>>, vector<1x1x96xf32>
    %164 = vector.shape_cast %163 : vector<1x1x96xf32> to vector<1x96xf32>
    %165 = vector.broadcast %164 : vector<1x96xf32> to vector<24x96xf32>
    %166 = arith.addf %162, %165 : vector<24x96xf32>
    %167 = vector.shape_cast %166 : vector<24x96xf32> to vector<24x6x16xf32>
    %168 = tpu.transpose %167, [1, 0, 2] : vector<24x6x16xf32> -> vector<6x24x16xf32>
    %169 = vector.extract_strided_slice %168 {offsets = [0, 0, 0], sizes = [2, 24, 16], strides = [1, 1, 1]} : vector<6x24x16xf32> to vector<2x24x16xf32>
    %170 = vector.extract_strided_slice %168 {offsets = [2, 0, 0], sizes = [2, 24, 16], strides = [1, 1, 1]} : vector<6x24x16xf32> to vector<2x24x16xf32>
    %171 = vector.extract_strided_slice %168 {offsets = [4, 0, 0], sizes = [2, 24, 16], strides = [1, 1, 1]} : vector<6x24x16xf32> to vector<2x24x16xf32>
    %cst_76 = arith.constant dense<0.000000e+00> : vector<2x24x24xf32>
    %172 = tpu.matmul %169, %170, %cst_76 {dimension_numbers = #tpu.dot_dimension_numbers<[2], [2], [1], [1], [0, 0, 0, 1, 1, 1], [0], [0]>} : vector<2x24x16xf32>, vector<2x24x16xf32>, vector<2x24x24xf32> -> vector<2x24x24xf32>
    %cst_77 = arith.constant 2.500000e-01 : f32
    %173 = vector.broadcast %cst_77 : f32 to vector<2x24x24xf32>
    %174 = arith.mulf %172, %173 : vector<2x24x24xf32>
    %175 = vector.broadcast %11 : vector<1x1x24xf32> to vector<2x24x24xf32>
    %176 = arith.addf %174, %175 : vector<2x24x24xf32>
    %cst_78 = arith.constant dense<0xFF800000> : vector<2x24xf32>
    %177 = vector.multi_reduction <maximumf>, %176, %cst_78 [2] : vector<2x24x24xf32> to vector<2x24xf32>
    %178 = vector.shape_cast %177 : vector<2x24xf32> to vector<2x24x1xf32>
    %179 = vector.broadcast %178 : vector<2x24x1xf32> to vector<2x24x24xf32>
    %180 = arith.subf %176, %179 : vector<2x24x24xf32>
    %181 = math.exp %180 : vector<2x24x24xf32>
    %cst_79 = arith.constant dense<0.000000e+00> : vector<2x24xf32>
    %182 = vector.multi_reduction <add>, %181, %cst_79 [2] : vector<2x24x24xf32> to vector<2x24xf32>
    %183 = vector.shape_cast %182 : vector<2x24xf32> to vector<2x24x1xf32>
    %184 = tpu.reciprocal %183 {approx = true} : vector<2x24x1xf32> -> vector<2x24x1xf32>
    %185 = arith.mulf %183, %184 : vector<2x24x1xf32>
    %cst_80 = arith.constant 2.000000e+00 : f32
    %186 = vector.broadcast %cst_80 : f32 to vector<2x24x1xf32>
    %187 = arith.subf %186, %185 : vector<2x24x1xf32>
    %188 = arith.mulf %184, %187 : vector<2x24x1xf32>
    %189 = vector.broadcast %188 : vector<2x24x1xf32> to vector<2x24x24xf32>
    %190 = arith.mulf %181, %189 : vector<2x24x24xf32>
    %cst_81 = arith.constant dense<0.000000e+00> : vector<2x24x16xf32>
    %191 = tpu.matmul %190, %171, %cst_81 {dimension_numbers = #tpu.dot_dimension_numbers<[2], [1], [1], [2], [0, 0, 0, 1, 1, 2], [0], [0]>} : vector<2x24x24xf32>, vector<2x24x16xf32>, vector<2x24x16xf32> -> vector<2x24x16xf32>
    %192 = tpu.transpose %191, [1, 0, 2] : vector<2x24x16xf32> -> vector<24x2x16xf32>
    %193 = vector.shape_cast %192 : vector<24x2x16xf32> to vector<24x32xf32>
    %c1_82 = arith.constant 1 : index
    %c0_83 = arith.constant 0 : index
    %c128_84 = arith.constant 128 : index
    %194 = vector.load %arg3[%c1_82, %c0_83, %c128_84] : memref<2x32x384xf32, #tpu.memory_space<vmem>>, vector<1x32x32xf32>
    %195 = vector.shape_cast %194 : vector<1x32x32xf32> to vector<32x32xf32>
    %cst_85 = arith.constant dense<0.000000e+00> : vector<24x32xf32>
    %196 = tpu.matmul %193, %195, %cst_85 {dimension_numbers = #tpu.dot_dimension_numbers<[1], [0], [0], [1], [0, 0, 1, 1], [], []>} : vector<24x32xf32>, vector<32x32xf32>, vector<24x32xf32> -> vector<24x32xf32>
    %197 = arith.addf %133, %196 : vector<24x32xf32>
    %c1_86 = arith.constant 1 : index
    %c4_87 = arith.constant 4 : index
    %c0_88 = arith.constant 0 : index
    %198 = vector.load %arg5[%c1_86, %c4_87, %c0_88] : memref<2x8x128xf32, #tpu.memory_space<vmem>>, vector<1x1x32xf32>
    %199 = vector.shape_cast %198 : vector<1x1x32xf32> to vector<1x32xf32>
    %200 = vector.broadcast %199 : vector<1x32xf32> to vector<24x32xf32>
    %201 = arith.addf %197, %200 : vector<24x32xf32>
    %c1_89 = arith.constant 1 : index
    %c2_90 = arith.constant 2 : index
    %c0_91 = arith.constant 0 : index
    %202 = vector.load %arg5[%c1_89, %c2_90, %c0_91] : memref<2x8x128xf32, #tpu.memory_space<vmem>>, vector<1x1x32xf32>
    %203 = vector.shape_cast %202 : vector<1x1x32xf32> to vector<1x32xf32>
    %c1_92 = arith.constant 1 : index
    %c3_93 = arith.constant 3 : index
    %c0_94 = arith.constant 0 : index
    %204 = vector.load %arg5[%c1_92, %c3_93, %c0_94] : memref<2x8x128xf32, #tpu.memory_space<vmem>>, vector<1x1x32xf32>
    %205 = vector.shape_cast %204 : vector<1x1x32xf32> to vector<1x32xf32>
    %cst_95 = arith.constant dense<0.000000e+00> : vector<24xf32>
    %206 = vector.multi_reduction <add>, %201, %cst_95 [1] : vector<24x32xf32> to vector<24xf32>
    %207 = vector.shape_cast %206 : vector<24xf32> to vector<24x1xf32>
    %cst_96 = arith.constant 3.200000e+01 : f32
    %208 = vector.broadcast %cst_96 : f32 to vector<24x1xf32>
    %209 = arith.divf %207, %208 : vector<24x1xf32>
    %210 = vector.broadcast %209 : vector<24x1xf32> to vector<24x32xf32>
    %211 = arith.subf %201, %210 : vector<24x32xf32>
    %212 = arith.mulf %211, %211 : vector<24x32xf32>
    %cst_97 = arith.constant dense<0.000000e+00> : vector<24xf32>
    %213 = vector.multi_reduction <add>, %212, %cst_97 [1] : vector<24x32xf32> to vector<24xf32>
    %214 = vector.shape_cast %213 : vector<24xf32> to vector<24x1xf32>
    %cst_98 = arith.constant 3.200000e+01 : f32
    %215 = vector.broadcast %cst_98 : f32 to vector<24x1xf32>
    %216 = arith.divf %214, %215 : vector<24x1xf32>
    %217 = vector.broadcast %209 : vector<24x1xf32> to vector<24x32xf32>
    %218 = arith.subf %201, %217 : vector<24x32xf32>
    %cst_99 = arith.constant 9.99999996E-13 : f32
    %219 = vector.broadcast %cst_99 : f32 to vector<24x1xf32>
    %220 = arith.addf %216, %219 : vector<24x1xf32>
    %221 = math.rsqrt %220 : vector<24x1xf32>
    %222 = vector.broadcast %221 : vector<24x1xf32> to vector<24x32xf32>
    %223 = arith.mulf %218, %222 : vector<24x32xf32>
    %224 = vector.broadcast %203 : vector<1x32xf32> to vector<24x32xf32>
    %225 = arith.mulf %223, %224 : vector<24x32xf32>
    %226 = vector.broadcast %205 : vector<1x32xf32> to vector<24x32xf32>
    %227 = arith.addf %225, %226 : vector<24x32xf32>
    %c1_100 = arith.constant 1 : index
    %c0_101 = arith.constant 0 : index
    %c256_102 = arith.constant 256 : index
    %228 = vector.load %arg3[%c1_100, %c0_101, %c256_102] : memref<2x32x384xf32, #tpu.memory_space<vmem>>, vector<1x32x128xf32>
    %229 = vector.shape_cast %228 : vector<1x32x128xf32> to vector<32x128xf32>
    %cst_103 = arith.constant dense<0.000000e+00> : vector<24x128xf32>
    %230 = tpu.matmul %227, %229, %cst_103 {dimension_numbers = #tpu.dot_dimension_numbers<[1], [0], [0], [1], [0, 0, 1, 1], [], []>} : vector<24x32xf32>, vector<32x128xf32>, vector<24x128xf32> -> vector<24x128xf32>
    %c1_104 = arith.constant 1 : index
    %c7_105 = arith.constant 7 : index
    %c0_106 = arith.constant 0 : index
    %231 = vector.load %arg5[%c1_104, %c7_105, %c0_106] : memref<2x8x128xf32, #tpu.memory_space<vmem>>, vector<1x1x128xf32>
    %232 = vector.shape_cast %231 : vector<1x1x128xf32> to vector<1x128xf32>
    %233 = vector.broadcast %232 : vector<1x128xf32> to vector<24x128xf32>
    %234 = arith.addf %230, %233 : vector<24x128xf32>
    %cst_107 = arith.constant 5.000000e-01 : f32
    %235 = vector.broadcast %cst_107 : f32 to vector<24x128xf32>
    %236 = arith.mulf %235, %234 : vector<24x128xf32>
    %cst_108 = arith.constant 4.471500e-02 : f32
    %237 = vector.broadcast %cst_108 : f32 to vector<24x128xf32>
    %238 = arith.mulf %237, %234 : vector<24x128xf32>
    %239 = arith.mulf %238, %234 : vector<24x128xf32>
    %240 = arith.mulf %239, %234 : vector<24x128xf32>
    %241 = arith.addf %234, %240 : vector<24x128xf32>
    %cst_109 = arith.constant 0.797884583 : f32
    %242 = vector.broadcast %cst_109 : f32 to vector<24x128xf32>
    %243 = arith.mulf %242, %241 : vector<24x128xf32>
    %244 = math.tanh %243 : vector<24x128xf32>
    %cst_110 = arith.constant 1.000000e+00 : f32
    %245 = vector.broadcast %cst_110 : f32 to vector<24x128xf32>
    %246 = arith.addf %245, %244 : vector<24x128xf32>
    %247 = arith.mulf %236, %246 : vector<24x128xf32>
    %c1_111 = arith.constant 1 : index
    %c0_112 = arith.constant 0 : index
    %c0_113 = arith.constant 0 : index
    %248 = vector.load %arg4[%c1_111, %c0_112, %c0_113] : memref<2x128x32xf32, #tpu.memory_space<vmem>>, vector<1x128x32xf32>
    %249 = vector.shape_cast %248 : vector<1x128x32xf32> to vector<128x32xf32>
    %cst_114 = arith.constant dense<0.000000e+00> : vector<24x32xf32>
    %250 = tpu.matmul %247, %249, %cst_114 {dimension_numbers = #tpu.dot_dimension_numbers<[1], [0], [0], [1], [0, 0, 1, 1], [], []>} : vector<24x128xf32>, vector<128x32xf32>, vector<24x32xf32> -> vector<24x32xf32>
    %251 = arith.addf %201, %250 : vector<24x32xf32>
    %c1_115 = arith.constant 1 : index
    %c5_116 = arith.constant 5 : index
    %c0_117 = arith.constant 0 : index
    %252 = vector.load %arg5[%c1_115, %c5_116, %c0_117] : memref<2x8x128xf32, #tpu.memory_space<vmem>>, vector<1x1x32xf32>
    %253 = vector.shape_cast %252 : vector<1x1x32xf32> to vector<1x32xf32>
    %254 = vector.broadcast %253 : vector<1x32xf32> to vector<24x32xf32>
    %255 = arith.addf %251, %254 : vector<24x32xf32>
    %256 = vector.extract_strided_slice %255 {offsets = [0, 0], sizes = [1, 32], strides = [1, 1]} : vector<24x32xf32> to vector<1x32xf32>
    %c33 = arith.constant 33 : index
    %c0_118 = arith.constant 0 : index
    %257 = vector.load %arg6[%c33, %c0_118] : memref<40x128xf32, #tpu.memory_space<vmem>>, vector<1x32xf32>
    %c34 = arith.constant 34 : index
    %c0_119 = arith.constant 0 : index
    %258 = vector.load %arg6[%c34, %c0_119] : memref<40x128xf32, #tpu.memory_space<vmem>>, vector<1x32xf32>
    %cst_120 = arith.constant dense<0.000000e+00> : vector<1xf32>
    %259 = vector.multi_reduction <add>, %256, %cst_120 [1] : vector<1x32xf32> to vector<1xf32>
    %260 = vector.shape_cast %259 : vector<1xf32> to vector<1x1xf32>
    %cst_121 = arith.constant 3.200000e+01 : f32
    %261 = vector.broadcast %cst_121 : f32 to vector<1x1xf32>
    %262 = arith.divf %260, %261 : vector<1x1xf32>
    %263 = vector.broadcast %262 : vector<1x1xf32> to vector<1x32xf32>
    %264 = arith.subf %256, %263 : vector<1x32xf32>
    %265 = arith.mulf %264, %264 : vector<1x32xf32>
    %cst_122 = arith.constant dense<0.000000e+00> : vector<1xf32>
    %266 = vector.multi_reduction <add>, %265, %cst_122 [1] : vector<1x32xf32> to vector<1xf32>
    %267 = vector.shape_cast %266 : vector<1xf32> to vector<1x1xf32>
    %cst_123 = arith.constant 3.200000e+01 : f32
    %268 = vector.broadcast %cst_123 : f32 to vector<1x1xf32>
    %269 = arith.divf %267, %268 : vector<1x1xf32>
    %270 = vector.broadcast %262 : vector<1x1xf32> to vector<1x32xf32>
    %271 = arith.subf %256, %270 : vector<1x32xf32>
    %cst_124 = arith.constant 9.99999996E-13 : f32
    %272 = vector.broadcast %cst_124 : f32 to vector<1x1xf32>
    %273 = arith.addf %269, %272 : vector<1x1xf32>
    %274 = math.rsqrt %273 : vector<1x1xf32>
    %275 = vector.broadcast %274 : vector<1x1xf32> to vector<1x32xf32>
    %276 = arith.mulf %271, %275 : vector<1x32xf32>
    %277 = arith.mulf %276, %257 : vector<1x32xf32>
    %278 = arith.addf %277, %258 : vector<1x32xf32>
    %c0_125 = arith.constant 0 : index
    %c0_126 = arith.constant 0 : index
    %279 = vector.load %arg6[%c0_125, %c0_126] : memref<40x128xf32, #tpu.memory_space<vmem>>, vector<32x128xf32>
    %cst_127 = arith.constant dense<0.000000e+00> : vector<1x128xf32>
    %280 = tpu.matmul %278, %279, %cst_127 {dimension_numbers = #tpu.dot_dimension_numbers<[1], [0], [0], [1], [0, 0, 1, 1], [], []>} : vector<1x32xf32>, vector<32x128xf32>, vector<1x128xf32> -> vector<1x128xf32>
    %c32 = arith.constant 32 : index
    %c0_128 = arith.constant 0 : index
    %281 = vector.load %arg6[%c32, %c0_128] : memref<40x128xf32, #tpu.memory_space<vmem>>, vector<1x128xf32>
    %282 = arith.addf %280, %281 : vector<1x128xf32>
    %c0_129 = arith.constant 0 : index
    %c0_130 = arith.constant 0 : index
    %c0_131 = arith.constant 0 : index
    %283 = vector.load %arg7[%c0_129, %c0_130, %c0_131] : memref<1x1x128xf32, #tpu.memory_space<vmem>>, vector<1x1x128xf32>
    %284 = vector.shape_cast %283 : vector<1x1x128xf32> to vector<1x128xf32>
    %285 = vector.shape_cast %282 : vector<1x128xf32> to vector<1x1x128xf32>
    tpu.vector_store %arg7[%c0_129, %c0_130, %c0_131], %285 {strides = array<i32>} : memref<1x1x128xf32, #tpu.memory_space<vmem>>, vector<1x1x128xf32>,
    return
  }
  func.func @transform_0(%arg0: i32) -> (i32, i32, i32) {
    %c0_i32 = arith.constant 0 : i32
    %c0_i32_0 = arith.constant 0 : i32
    %c0_i32_1 = arith.constant 0 : i32
    return %arg0, %c0_i32, %c0_i32_0 : i32, i32, i32
  }
  func.func @transform_1(%arg0: i32) -> (i32, i32) {
    %c0_i32 = arith.constant 0 : i32
    %c0_i32_0 = arith.constant 0 : i32
    %c0_i32_1 = arith.constant 0 : i32
    return %c0_i32, %c0_i32_0 : i32, i32
  }
  func.func @transform_2(%arg0: i32) -> (i32, i32, i32) {
    %c0_i32 = arith.constant 0 : i32
    %c0_i32_0 = arith.constant 0 : i32
    %c0_i32_1 = arith.constant 0 : i32
    %c0_i32_2 = arith.constant 0 : i32
    return %c0_i32, %c0_i32_0, %c0_i32_1 : i32, i32, i32
  }
  func.func @transform_3(%arg0: i32) -> (i32, i32, i32) {
    %c0_i32 = arith.constant 0 : i32
    %c0_i32_0 = arith.constant 0 : i32
    %c0_i32_1 = arith.constant 0 : i32
    %c0_i32_2 = arith.constant 0 : i32
    return %c0_i32, %c0_i32_0, %c0_i32_1 : i32, i32, i32
  }
  func.func @transform_4(%arg0: i32) -> (i32, i32, i32) {
    %c0_i32 = arith.constant 0 : i32
    %c0_i32_0 = arith.constant 0 : i32
    %c0_i32_1 = arith.constant 0 : i32
    %c0_i32_2 = arith.constant 0 : i32
    return %c0_i32, %c0_i32_0, %c0_i32_1 : i32, i32, i32
  }
  func.func @transform_5(%arg0: i32) -> (i32, i32) {
    %c0_i32 = arith.constant 0 : i32
    %c0_i32_0 = arith.constant 0 : i32
    %c0_i32_1 = arith.constant 0 : i32
    return %c0_i32, %c0_i32_0 : i32, i32
  }
  func.func @transform_6(%arg0: i32) -> (i32, i32, i32) {
    %c0_i32 = arith.constant 0 : i32
    %c0_i32_0 = arith.constant 0 : i32
    %c0_i32_1 = arith.constant 0 : i32
    return %arg0, %c0_i32, %c0_i32_0 : i32, i32, i32
  }
}

</mosaic_0001>

<llo_original>
// kernel: tpu_custom_call.1
$region0: #{tpu_custom_call.1}
  #allocation0 [shape = 'u32[]', space=smem, size = 0x4, offset = 0x4, fixed_abs, tag = 'smem constant byte address 0x4 - core index']
  #allocation1 [shape = 'u32[144,128]{1,0:T(1,128)}', space=vmem, size = 0x12000, scoped, tag = 'internal scratch']
  %s0 = inlined_call_operand.vmem [shape: f32[2,24,48], index: 0, kind: input, shape index: {}]
  %s1 = inlined_call_operand.vmem [shape: f32[72,32], index: 1, kind: input, shape index: {}]
  %s2 = inlined_call_operand.vmem [shape: f32[2,32,384], index: 2, kind: input, shape index: {}]
  %s3 = inlined_call_operand.vmem [shape: f32[2,128,32], index: 3, kind: input, shape index: {}]
  %s4 = inlined_call_operand.vmem [shape: f32[2,8,128], index: 4, kind: input, shape index: {}]
  %s5 = inlined_call_operand.vmem [shape: f32[40,128], index: 5, kind: input, shape index: {}]
  %s6 = inlined_call_operand.hbm [shape: f32[2,1,128], index: 6, kind: output, shape index: {}]
  %s7 = sld [smem:[#allocation0]]
  $region57: #{tpu_custom_call.1} parent=0
    _
  %s9 = ssub.s32 1, %s7
  %s10 = scalar_select 0, %s9, %s7
  $region1: #{tpu_custom_call.1} parent=0
    #allocation2 [shape = 'u8[1024]{0}', space=vmem, size = 0x400, scoped, tag = 'output window, operand 0']
    #allocation3 [shape = 's32[2]{0}', space=sflag, size = 0x8, scoped, tag = 'scoped memory for tpu_custom_call.1']
    %11 = vsyncpa [#allocation3], 0
    %s12 = scalar_lea.sflag [#allocation3], 1
    %13 = vsyncpa %s12, 0
    loop: start=0, step=1, limit=4
    $region2: #{tpu_custom_call.1} parent=1 // loop_pre_header
      _
    $region3: #{tpu_custom_call.1} parent=1 // loop_header
      %s15 = sphi 0, %s19
      %p16 = scmp.ge.s32.totalorder %s15, 4
      %s25 = sphi 0, %s27
      %s28 = sphi 0, %s25
      %s29 = sphi 0, %s28
      %s45 = sphi 0, %s29
      %s49 = sphi 0, %s49
      %s51 = sphi 0, %s49
      %s52 = sphi 0, %s51
      %s66 = sphi 0, %s52
      %s70 = sphi 0, %s70
      %s72 = sphi 0, %s70
      %s73 = sphi 0, %s72
      %s87 = sphi 0, %s73
      %s91 = sphi 0, %s91
      %s93 = sphi 0, %s91
      %s94 = sphi 0, %s93
      %s108 = sphi 0, %s94
      %s112 = sphi 0, %s112
      %s114 = sphi 0, %s112
      %s115 = sphi 0, %s114
      %s129 = sphi 0, %s115
      %s133 = sphi 0, %s133
      %s135 = sphi 0, %s133
      %s136 = sphi 0, %s135
      %s150 = sphi 0, %s136
      %s156 = sphi 0, %s158
      %s159 = sphi 0, %s156
      %s160 = sphi 0, %s159
      %s176 = sphi 0, %s160
    $region4: #{tpu_custom_call.1} parent=1 // loop_header_branch
      %18 = sbr.rel (%p16) target = $region8
    $region5: #{tpu_custom_call.1} parent=1 // loop_body
      %s20 = ssub.s32 %s15, 1
      %s21 = ssub.s32 %s15, 2
      %s22 = sadd.s32 %s15, 1
      %s23 = ssub.s32 %s15, %s22
      %p24 = scmp.eq.s32.totalorder %s23, 0
      %s26 = sadd.s32 %s25, 1
      %s27 = scalar_select %p24, %s25, %s26
      %p30 = pneg %p24
      %p31 = scmp.eq.s32.totalorder %s15, 1
      %p32 = por %p30, %p31
      %p33 = scmp.ne.s32.totalorder %s25, %s28
      %p34 = scmp.eq.s32.totalorder %s15, 0
      %p35 = por %p33, %p34
      %p36 = scmp.ne.s32.totalorder %s25, %s28
      %p37 = scmp.eq.s32.totalorder %s20, 1
      %p38 = por %p36, %p37
      %p39 = scmp.ne.s32.totalorder %s28, %s29
      %p40 = scmp.eq.s32.totalorder %s20, 0
      %p41 = por %p39, %p40
      %p42 = scmp.ne.s32.totalorder %s28, %s29
      %p43 = scmp.eq.s32.totalorder %s21, 1
      %p44 = por %p42, %p43
      %p46 = scmp.ne.s32.totalorder %s29, %s45
      %p47 = scmp.eq.s32.totalorder %s21, 0
      %p48 = por %p46, %p47
      %s50 = sadd.s32 %s49, 1
      %p53 = scmp.eq.s32.totalorder %s15, 1
      %p54 = scmp.ne.s32.totalorder %s49, %s51
      %p55 = scmp.eq.s32.totalorder %s15, 0
      %p56 = por %p54, %p55
      %p57 = scmp.ne.s32.totalorder %s49, %s51
      %p58 = scmp.eq.s32.totalorder %s20, 1
      %p59 = por %p57, %p58
      %p60 = scmp.ne.s32.totalorder %s51, %s52
      %p61 = scmp.eq.s32.totalorder %s20, 0
      %p62 = por %p60, %p61
      %p63 = scmp.ne.s32.totalorder %s51, %s52
      %p64 = scmp.eq.s32.totalorder %s21, 1
      %p65 = por %p63, %p64
      %p67 = scmp.ne.s32.totalorder %s52, %s66
      %p68 = scmp.eq.s32.totalorder %s21, 0
      %p69 = por %p67, %p68
      %s71 = sadd.s32 %s70, 1
      %p74 = scmp.eq.s32.totalorder %s15, 1
      %p75 = scmp.ne.s32.totalorder %s70, %s72
      %p76 = scmp.eq.s32.totalorder %s15, 0
      %p77 = por %p75, %p76
      %p78 = scmp.ne.s32.totalorder %s70, %s72
      %p79 = scmp.eq.s32.totalorder %s20, 1
      %p80 = por %p78, %p79
      %p81 = scmp.ne.s32.totalorder %s72, %s73
      %p82 = scmp.eq.s32.totalorder %s20, 0
      %p83 = por %p81, %p82
      %p84 = scmp.ne.s32.totalorder %s72, %s73
      %p85 = scmp.eq.s32.totalorder %s21, 1
      %p86 = por %p84, %p85
      %p88 = scmp.ne.s32.totalorder %s73, %s87
      %p89 = scmp.eq.s32.totalorder %s21, 0
      %p90 = por %p88, %p89
      %s92 = sadd.s32 %s91, 1
      %p95 = scmp.eq.s32.totalorder %s15, 1
      %p96 = scmp.ne.s32.totalorder %s91, %s93
      %p97 = scmp.eq.s32.totalorder %s15, 0
      %p98 = por %p96, %p97
      %p99 = scmp.ne.s32.totalorder %s91, %s93
      %p100 = scmp.eq.s32.totalorder %s20, 1
      %p101 = por %p99, %p100
      %p102 = scmp.ne.s32.totalorder %s93, %s94
      %p103 = scmp.eq.s32.totalorder %s20, 0
      %p104 = por %p102, %p103
      %p105 = scmp.ne.s32.totalorder %s93, %s94
      %p106 = scmp.eq.s32.totalorder %s21, 1
      %p107 = por %p105, %p106
      %p109 = scmp.ne.s32.totalorder %s94, %s108
      %p110 = scmp.eq.s32.totalorder %s21, 0
      %p111 = por %p109, %p110
      %s113 = sadd.s32 %s112, 1
      %p116 = scmp.eq.s32.totalorder %s15, 1
      %p117 = scmp.ne.s32.totalorder %s112, %s114
      %p118 = scmp.eq.s32.totalorder %s15, 0
      %p119 = por %p117, %p118
      %p120 = scmp.ne.s32.totalorder %s112, %s114
      %p121 = scmp.eq.s32.totalorder %s20, 1
      %p122 = por %p120, %p121
      %p123 = scmp.ne.s32.totalorder %s114, %s115
      %p124 = scmp.eq.s32.totalorder %s20, 0
      %p125 = por %p123, %p124
      %p126 = scmp.ne.s32.totalorder %s114, %s115
      %p127 = scmp.eq.s32.totalorder %s21, 1
      %p128 = por %p126, %p127
      %p130 = scmp.ne.s32.totalorder %s115, %s129
      %p131 = scmp.eq.s32.totalorder %s21, 0
      %p132 = por %p130, %p131
      %s134 = sadd.s32 %s133, 1
      %p137 = scmp.eq.s32.totalorder %s15, 1
      %p138 = scmp.ne.s32.totalorder %s133, %s135
      %p139 = scmp.eq.s32.totalorder %s15, 0
      %p140 = por %p138, %p139
      %p141 = scmp.ne.s32.totalorder %s133, %s135
      %p142 = scmp.eq.s32.totalorder %s20, 1
      %p143 = por %p141, %p142
      %p144 = scmp.ne.s32.totalorder %s135, %s136
      %p145 = scmp.eq.s32.totalorder %s20, 0
      %p146 = por %p144, %p145
      %p147 = scmp.ne.s32.totalorder %s135, %s136
      %p148 = scmp.eq.s32.totalorder %s21, 1
      %p149 = por %p147, %p148
      %p151 = scmp.ne.s32.totalorder %s136, %s150
      %p152 = scmp.eq.s32.totalorder %s21, 0
      %p153 = por %p151, %p152
      %s154 = ssub.s32 %s15, %s22
      %p155 = scmp.eq.s32.totalorder %s154, 0
      %s157 = sadd.s32 %s156, 1
      %s158 = scalar_select %p155, %s156, %s157
      %p161 = pneg %p155
      %p162 = scmp.eq.s32.totalorder %s15, 1
      %p163 = por %p161, %p162
      %p164 = scmp.ne.s32.totalorder %s156, %s159
      %p165 = scmp.eq.s32.totalorder %s15, 0
      %p166 = por %p164, %p165
      %p167 = scmp.ne.s32.totalorder %s156, %s159
      %p168 = scmp.eq.s32.totalorder %s20, 1
      %p169 = por %p167, %p168
      %p170 = scmp.ne.s32.totalorder %s159, %s160
      %p171 = scmp.eq.s32.totalorder %s20, 0
      %p172 = por %p170, %p171
      %p173 = scmp.ne.s32.totalorder %s159, %s160
      %p174 = scmp.eq.s32.totalorder %s21, 1
      %p175 = por %p173, %p174
      %p177 = scmp.ne.s32.totalorder %s160, %s176
      %p178 = scmp.eq.s32.totalorder %s21, 0
      %p179 = por %p177, %p178
      %p180 = scmp.le.s32.totalorder 1, %s15
      %p181 = scmp.lt.s32.totalorder %s15, 3
      %p182 = pnand %p180, %p181
      %p183 = pneg %p182
      // Predicated region
      $region9: #{tpu_custom_call.1} parent=5 // pred_check
        _
      $region10: #{tpu_custom_call.1} parent=5 // pred_check_branch
        %185 = sbr.rel (%p182) target = $region12
      $region11: #{tpu_custom_call.1} parent=5 // pred_region
        %s186 = ssub.s32 %s15, 1
        // Predicated region
        $region13: #{tpu_custom_call.1} parent=11 // pred_check
          %p187 = pneg %p62
        $region14: #{tpu_custom_call.1} parent=11 // pred_check_branch
          %189 = sbr.rel (%p187) target = $region16
        $region15: #{tpu_custom_call.1} parent=11 // pred_region
          _
        $region16: #{tpu_custom_call.1} parent=11 // pred_fallthru
          _
        // Predicated region
        $region17: #{tpu_custom_call.1} parent=11 // pred_check
          %p190 = pneg %p83
        $region18: #{tpu_custom_call.1} parent=11 // pred_check_branch
          %192 = sbr.rel (%p190) target = $region20
        $region19: #{tpu_custom_call.1} parent=11 // pred_region
          _
        $region20: #{tpu_custom_call.1} parent=11 // pred_fallthru
          _
        // Predicated region
        $region21: #{tpu_custom_call.1} parent=11 // pred_check
          %p193 = pneg %p104
        $region22: #{tpu_custom_call.1} parent=11 // pred_check_branch
          %195 = sbr.rel (%p193) target = $region24
        $region23: #{tpu_custom_call.1} parent=11 // pred_region
          _
        $region24: #{tpu_custom_call.1} parent=11 // pred_fallthru
          _
        // Predicated region
        $region25: #{tpu_custom_call.1} parent=11 // pred_check
          %p196 = pneg %p125
        $region26: #{tpu_custom_call.1} parent=11 // pred_check_branch
          %198 = sbr.rel (%p196) target = $region28
        $region27: #{tpu_custom_call.1} parent=11 // pred_region
          _
        $region28: #{tpu_custom_call.1} parent=11 // pred_fallthru
          _
        // Predicated region
        $region29: #{tpu_custom_call.1} parent=11 // pred_check
          %p199 = pneg %p146
        $region30: #{tpu_custom_call.1} parent=11 // pred_check_branch
          %201 = sbr.rel (%p199) target = $region32
        $region31: #{tpu_custom_call.1} parent=11 // pred_region
          _
        $region32: #{tpu_custom_call.1} parent=11 // pred_fallthru
          _
      $region12: #{tpu_custom_call.1} parent=5 // pred_fallthru
        _
      %p202 = scmp.lt.s32.totalorder %s15, 2
      // Predicated region
      $region33: #{tpu_custom_call.1} parent=5 // pred_check
        %p203 = pneg %p202
      $region34: #{tpu_custom_call.1} parent=5 // pred_check_branch
        %205 = sbr.rel (%p203) target = $region36
      $region35: #{tpu_custom_call.1} parent=5 // pred_region
        // Predicated region
        $region37: #{tpu_custom_call.1} parent=35 // pred_check
          %p206 = pneg %p35
        $region38: #{tpu_custom_call.1} parent=35 // pred_check_branch
          %208 = sbr.rel (%p206) target = $region40
        $region39: #{tpu_custom_call.1} parent=35 // pred_region
          %p209 = scmp.lt.s32.totalorder %s15, 1
          %s210 = scalar_select %p209, %s15, 1
          %s211 = smul.addr %s210, 3
          %s212 = smul.addr %s211, 8
          %s213 = scalar_lea.vmem %s0, %s212
        $region40: #{tpu_custom_call.1} parent=35 // pred_fallthru
          _
      $region36: #{tpu_custom_call.1} parent=5 // pred_fallthru
        _
      %p214 = scmp.le.s32.totalorder 1, %s15
      %p215 = scmp.lt.s32.totalorder %s15, 3
      %p216 = pnand %p214, %p215
      %p217 = pneg %p216
      // Predicated region
      $region41: #{tpu_custom_call.1} parent=5 // pred_check
        _
      $region42: #{tpu_custom_call.1} parent=5 // pred_check_branch
        %219 = sbr.rel (%p216) target = $region44
      $region43: #{tpu_custom_call.1} parent=5 // pred_region
        %s220 = ssub.s32 %s15, 1
        %p221 = scmp.lt.s32.totalorder %s20, 1
        %s222 = scalar_select %p221, %s20, 1
        %s223 = smul.addr %s222, 3
        %s224 = smul.addr %s223, 8
        %s225 = scalar_lea.vmem %s0, %s224
        %p226 = pneg %p41
        %p227 = pneg %p38
        %p228 = pneg %p62
        %p229 = pneg %p59
        %p230 = pneg %p83
        %p231 = pneg %p80
        %p232 = pneg %p104
        %p233 = pneg %p101
        %p234 = pneg %p125
        %p235 = pneg %p122
        %p236 = pneg %p146
        %p237 = pneg %p143
        %p238 = pneg %p172
        %p239 = pneg %p169
        %s240 = sand.u32 %s159, 1
        %s241 = scalar_lea.sflag [#allocation3], %s240
        %s242 = sand.u32 %s159, 1
        %s243 = scalar_lea.vmem [#allocation2], %s242
        %p244 = scmp.lt.s32.totalorder %s20, 1
        %s245 = scalar_select %p244, %s20, 1
        %s246 = smul.addr %s245, 3
        %s247 = smul.addr %s246, 8
        %s248 = scalar_lea.vmem %s0, %s247
        %v249 = vld [vmem:[%s1] sm:$0xff]
        %v250 = vld [vmem:[%s1 + $0x8] sm:$0xff]
        %v251 = vld [vmem:[%s1 + $0x10] sm:$0xff]
        %v252 = vld [vmem:[%s1 + $0x18] sm:$0xff]
        %v253 = vld [vmem:[%s1 + $0x20] sm:$0xff]
        %v254 = vld [vmem:[%s1 + $0x28] sm:$0xff]
        %v255 = vld [vmem:[%s1 + $0x30] sm:$0xff]
        %v256 = vld [vmem:[%s1 + $0x38] sm:$0xff]
        %v257 = vld [vmem:[%s1 + $0x40] sm:$0xff]
        %v258 = vld [vmem:[%s248] sm:$0xff]
        %v259 = vld [vmem:[%s248 + $0x8] sm:$0xff]
        %v260 = vld [vmem:[%s248 + $0x10] sm:$0xff]
        %vm261 = vcmask 392192
        %v263 = vsel %vm261, %v258, 0
        %v266 = vsel %vm261, %v259, 0
        %v269 = vsel %vm261, %v260, 0
        %271 = vmatprep.subr.mxu0 0.0
        %272 = vmatpush1.msra.mxu0 0.0
        %273 = vmatprep.subr.mxu0 0.0
        %274 = vmatpush1.msra.mxu0 0.0
        %275 = vmatprep.subr.mxu0 0.0
        %276 = vmatpush1.msra.mxu0 0.0
        %277 = vmatprep.subr.mxu0 0.0
        %278 = vmatpush1.msra.mxu0 0.0
        %279 = vmatprep.subr.mxu0 0.0
        %280 = vmatpush1.msra.mxu0 0.0
        %281 = vmatprep.subr.mxu0 0.0
        %282 = vmatpush1.msra.mxu0 0.0
        %283 = vmatprep.subr.mxu0 0.0
        %284 = vmatpush1.msra.mxu0 0.0
        %285 = vmatprep.subr.mxu0 0.0
        %286 = vmatpush1.msra.mxu0 0.0
        %287 = vmatprep.subr.mxu0 0.0
        %288 = vmatpush1.msra.mxu0 0.0
        %289 = vmatprep.subr.mxu0 0.0
        %290 = vmatpush1.msra.mxu0 0.0
        %291 = vmatprep.subr.mxu0 0.0
        %292 = vmatpush1.msra.mxu0 %v254
        %293 = vmatprep.subr.mxu0 0.0
        %294 = vmatpush1.msra.mxu0 %v253
        %295 = vmatprep.subr.mxu0 0.0
        %296 = vmatpush1.msra.mxu0 %v252
        %297 = vmatprep.subr.mxu0 0.0
        %298 = vmatpush1.msra.mxu0 %v251
        %299 = vmatprep.subr.mxu0 0.0
        %300 = vmatpush1.msra.mxu0 %v250
        %301 = vmatprep.subr.mxu0 0.0
        %302 = vmatpush1.msra.mxu0 %v249
        %303 = vmatprep.subr.mxu0 0.0
        %304 = vmatpush2.msra.mxu0 0.0
        %305 = vmatprep.subr.mxu0 0.0
        %306 = vmatpush2.msra.mxu0 0.0
        %307 = vmatprep.subr.mxu0 0.0
        %308 = vmatpush2.msra.mxu0 0.0
        %309 = vmatprep.subr.mxu0 0.0
        %310 = vmatpush2.msra.mxu0 0.0
        %311 = vmatprep.subr.mxu0 0.0
        %312 = vmatpush2.msra.mxu0 0.0
        %313 = vmatprep.subr.mxu0 0.0
        %314 = vmatpush2.msra.mxu0 0.0
        %315 = vmatprep.subr.mxu0 0.0
        %316 = vmatpush2.msra.mxu0 0.0
        %317 = vmatprep.subr.mxu0 0.0
        %318 = vmatpush2.msra.mxu0 0.0
        %319 = vmatprep.subr.mxu0 0.0
        %320 = vmatpush2.msra.mxu0 0.0
        %321 = vmatprep.subr.mxu0 0.0
        %322 = vmatpush2.msra.mxu0 0.0
        %323 = vmatprep.subr.mxu0 0.0
        %324 = vmatpush2.msra.mxu0 0.0
        %325 = vmatprep.subr.mxu0 0.0
        %326 = vmatpush2.msra.mxu0 0.0
        %327 = vmatprep.subr.mxu0 0.0
        %328 = vmatpush2.msra.mxu0 0.0
        %329 = vmatprep.subr.mxu0 0.0
        %330 = vmatpush2.msra.mxu0 0.0
        %331 = vmatprep.subr.mxu0 0.0
        %332 = vmatpush2.msra.mxu0 0.0
        %333 = vmatprep.subr.mxu0 0.0
        %334 = vmatpush2.msra.mxu0 0.0
        %335 = vmatprep.mubr.f32.mxu0 0.0
        %336 = vmatmul.mubr.f32.gmra.mxu0 %v263
        %v337 = vpop.f32.mrf.mxu0
        %v338 = vadd.f32 %v255, %v337
        %v339 = vpop.f32.mrf.mxu0
        %340 = vmatprep.mubr.f32.mxu0 0.0
        %341 = vmatmul.mubr.f32.gmra.mxu0 %v266
        %v342 = vpop.f32.mrf.mxu0
        %v343 = vadd.f32 %v256, %v342
        %v344 = vpop.f32.mrf.mxu0
        %345 = vmatprep.mubr.f32.mxu0 0.0
        %346 = vmatmul.mubr.f32.gmra.mxu0 %v269
        %v347 = vpop.f32.mrf.mxu0
        %v348 = vadd.f32 %v257, %v347
        %v349 = vpop.f32.mrf.mxu0
        %350 = vdwg.mxu0
        %v351 = vlaneseq
        %v352 = vand.u32 %v351, 127
        %vm353 = vcmp.lt.s32.totalorder %v352, 17
        %v354 = vsel %vm353, 0.0, -1e+09
        %v355 = vld [vmem:[%s4] sm:$0x1]
        %v356 = vld [vmem:[%s4 + $0x1] sm:$0x1]
        %vm357 = vcmask 261120
        %v358 = vsel %vm357, %v338, 0.0
        %359 = vadd.xlane.f32.xlu0 %v358
        %v360 = vpop.xlane.xlu0 %359
        %v361 = vsel %vm357, %v343, 0.0
        %362 = vadd.xlane.f32.xlu0 %v361
        %v363 = vpop.xlane.xlu0 %362
        %v364 = vsel %vm357, %v348, 0.0
        %365 = vadd.xlane.f32.xlu0 %v364
        %v366 = vpop.xlane.xlu0 %365
        %v367 = vrcp.pop 32.0
        %v368 = vmul.f32 %v360, %v367
        %v369 = vmul.f32 %v363, %v367
        %v370 = vmul.f32 %v366, %v367
        %v371 = vsub.f32 %v338, %v368
        %v372 = vsub.f32 %v343, %v369
        %v373 = vsub.f32 %v348, %v370
        %v374 = vmul.f32 %v371, %v371
        %v375 = vmul.f32 %v372, %v372
        %v376 = vmul.f32 %v373, %v373
        %v377 = vsel %vm357, %v374, 0.0
        %378 = vadd.xlane.f32.xlu0 %v377
        %v379 = vpop.xlane.xlu0 %378
        %v380 = vsel %vm357, %v375, 0.0
        %381 = vadd.xlane.f32.xlu0 %v380
        %v382 = vpop.xlane.xlu0 %381
        %v383 = vsel %vm357, %v376, 0.0
        %384 = vadd.xlane.f32.xlu0 %v383
        %v385 = vpop.xlane.xlu0 %384
        %v386 = vmul.f32 %v379, %v367
        %v387 = vmul.f32 %v382, %v367
        %v388 = vmul.f32 %v385, %v367
        %v389 = vadd.f32 %v386, 1e-12
        %v390 = vadd.f32 %v387, 1e-12
        %v391 = vadd.f32 %v388, 1e-12
        %v392 = vrsqrt.pop %v389
        %v393 = vrsqrt.pop %v390
        %v394 = vrsqrt.pop %v391
        %v395 = vmul.f32 %v371, %v392
        %v396 = vmul.f32 %v372, %v393
        %v397 = vmul.f32 %v373, %v394
        %v398 = vlaneseq
        %v399 = vshrl.u32 %v398, 7
        %v400 = vsub.s32 0, %v399
        %v401 = vrot.slane %v355, %v400
        %v402 = vmul.f32 %v395, %v401
        %v403 = vmul.f32 %v396, %v401
        %v404 = vmul.f32 %v397, %v401
        %v405 = vlaneseq
        %v406 = vshrl.u32 %v405, 7
        %v407 = vsub.s32 0, %v406
        %v408 = vrot.slane %v356, %v407
        %v409 = vadd.f32 %v402, %v408
        %v410 = vadd.f32 %v403, %v408
        %v411 = vadd.f32 %v404, %v408
        %v412 = vld [vmem:[%s2] sm:$0xff]
        %v413 = vld [vmem:[%s2 + $0x18] sm:$0xff]
        %v414 = vld [vmem:[%s2 + $0x30] sm:$0xff]
        %v415 = vld [vmem:[%s2 + $0x48] sm:$0xff]
        %v416 = vld [vmem:[%s4 + $0x6] sm:$0x1]
        %v417 = vlaneseq
        %v418 = vshrl.u32 %v417, 7
        %v419 = vsub.s32 0, %v418
        %v420 = vrot.slane %v416, %v419
        %v422 = vsel %vm357, %v409, 0
        %v425 = vsel %vm357, %v410, 0
        %v428 = vsel %vm357, %v411, 0
        %430 = vmatprep.subr.mxu0 0.0
        %431 = vmatpush1.msra.mxu0 0.0
        %432 = vmatprep.subr.mxu0 0.0
        %433 = vmatpush1.msra.mxu0 0.0
        %434 = vmatprep.subr.mxu0 0.0
        %435 = vmatpush1.msra.mxu0 0.0
        %436 = vmatprep.subr.mxu0 0.0
        %437 = vmatpush1.msra.mxu0 0.0
        %438 = vmatprep.subr.mxu0 0.0
        %439 = vmatpush1.msra.mxu0 0.0
        %440 = vmatprep.subr.mxu0 0.0
        %441 = vmatpush1.msra.mxu0 0.0
        %442 = vmatprep.subr.mxu0 0.0
        %443 = vmatpush1.msra.mxu0 0.0
        %444 = vmatprep.subr.mxu0 0.0
        %445 = vmatpush1.msra.mxu0 0.0
        %446 = vmatprep.subr.mxu0 0.0
        %447 = vmatpush1.msra.mxu0 0.0
        %448 = vmatprep.subr.mxu0 0.0
        %449 = vmatpush1.msra.mxu0 0.0
        %450 = vmatprep.subr.mxu0 0.0
        %451 = vmatpush1.msra.mxu0 0.0
        %452 = vmatprep.subr.mxu0 0.0
        %453 = vmatpush1.msra.mxu0 0.0
        %454 = vmatprep.subr.mxu0 0.0
        %455 = vmatpush1.msra.mxu0 %v415
        %456 = vmatprep.subr.mxu0 0.0
        %457 = vmatpush1.msra.mxu0 %v414
        %458 = vmatprep.subr.mxu0 0.0
        %459 = vmatpush1.msra.mxu0 %v413
        %460 = vmatprep.subr.mxu0 0.0
        %461 = vmatpush1.msra.mxu0 %v412
        %462 = vmatprep.subr.mxu0 0.0
        %463 = vmatpush2.msra.mxu0 0.0
        %464 = vmatprep.subr.mxu0 0.0
        %465 = vmatpush2.msra.mxu0 0.0
        %466 = vmatprep.subr.mxu0 0.0
        %467 = vmatpush2.msra.mxu0 0.0
        %468 = vmatprep.subr.mxu0 0.0
        %469 = vmatpush2.msra.mxu0 0.0
        %470 = vmatprep.subr.mxu0 0.0
        %471 = vmatpush2.msra.mxu0 0.0
        %472 = vmatprep.subr.mxu0 0.0
        %473 = vmatpush2.msra.mxu0 0.0
        %474 = vmatprep.subr.mxu0 0.0
        %475 = vmatpush2.msra.mxu0 0.0
        %476 = vmatprep.subr.mxu0 0.0
        %477 = vmatpush2.msra.mxu0 0.0
        %478 = vmatprep.subr.mxu0 0.0
        %479 = vmatpush2.msra.mxu0 0.0
        %480 = vmatprep.subr.mxu0 0.0
        %481 = vmatpush2.msra.mxu0 0.0
        %482 = vmatprep.subr.mxu0 0.0
        %483 = vmatpush2.msra.mxu0 0.0
        %484 = vmatprep.subr.mxu0 0.0
        %485 = vmatpush2.msra.mxu0 0.0
        %486 = vmatprep.subr.mxu0 0.0
        %487 = vmatpush2.msra.mxu0 0.0
        %488 = vmatprep.subr.mxu0 0.0
        %489 = vmatpush2.msra.mxu0 0.0
        %490 = vmatprep.subr.mxu0 0.0
        %491 = vmatpush2.msra.mxu0 0.0
        %492 = vmatprep.subr.mxu0 0.0
        %493 = vmatpush2.msra.mxu0 0.0
        %494 = vmatprep.mubr.f32.mxu0 0.0
        %495 = vmatmul.mubr.f32.gmra.mxu0 %v422
        %v496 = vpop.f32.mrf.mxu0
        %v497 = vadd.f32 %v420, %v496
        %v498 = vpop.f32.mrf.mxu0
        %499 = vmatprep.mubr.f32.mxu0 0.0
        %500 = vmatmul.mubr.f32.gmra.mxu0 %v425
        %v501 = vpop.f32.mrf.mxu0
        %v502 = vadd.f32 %v420, %v501
        %v503 = vpop.f32.mrf.mxu0
        %504 = vmatprep.mubr.f32.mxu0 0.0
        %505 = vmatmul.mubr.f32.gmra.mxu0 %v428
        %v506 = vpop.f32.mrf.mxu0
        %v507 = vadd.f32 %v420, %v506
        %v508 = vpop.f32.mrf.mxu0
        %509 = vdwg.mxu0
        %513 = vrot.lane.b32.xlu0 %v497, 112
        %v514 = vpop.permute.xlu0 %513
        %515 = vrot.lane.b32.xlu0 %v502, 112
        %v516 = vpop.permute.xlu0 %515
        %517 = vrot.lane.b32.xlu0 %v507, 112
        %v518 = vpop.permute.xlu0 %517
        %522 = vrot.lane.b32.xlu0 %v497, 96
        %v523 = vpop.permute.xlu0 %522
        %524 = vrot.lane.b32.xlu0 %v502, 96
        %v525 = vpop.permute.xlu0 %524
        %526 = vrot.lane.b32.xlu0 %v507, 96
        %v527 = vpop.permute.xlu0 %526
        %531 = vrot.lane.b32.xlu0 %v497, 80
        %v532 = vpop.permute.xlu0 %531
        %533 = vrot.lane.b32.xlu0 %v502, 80
        %v534 = vpop.permute.xlu0 %533
        %535 = vrot.lane.b32.xlu0 %v507, 80
        %v536 = vpop.permute.xlu0 %535
        %540 = vrot.lane.b32.xlu0 %v497, 64
        %v541 = vpop.permute.xlu0 %540
        %542 = vrot.lane.b32.xlu0 %v502, 64
        %v543 = vpop.permute.xlu0 %542
        %544 = vrot.lane.b32.xlu0 %v507, 64
        %v545 = vpop.permute.xlu0 %544
        %549 = vrot.lane.b32.xlu0 %v497, 48
        %v550 = vpop.permute.xlu0 %549
        %551 = vrot.lane.b32.xlu0 %v502, 48
        %v552 = vpop.permute.xlu0 %551
        %553 = vrot.lane.b32.xlu0 %v507, 48
        %v554 = vpop.permute.xlu0 %553
        %v558 = vcombine.low %v497, %v523
        %v559 = vcombine.high %v497, %v523
        %v561 = vunpack.c.l.s4 1983009808
        %v562 = vunpack.c.0.s8 %v561
        %v563 = vlaneseq
        %v564 = vshrl.u32 %v563, 7
        %v565 = vsub.s32 %v562, %v564
        %v566 = vrot.slane %v558, %v565
        %v568 = vunpack.c.l.s4 1983009808
        %v569 = vunpack.c.0.s8 %v568
        %v570 = vlaneseq
        %v571 = vshrl.u32 %v570, 7
        %v572 = vsub.s32 %v569, %v571
        %v573 = vrot.slane %v559, %v572
        %v574 = vcombine.low %v514, %v532
        %v575 = vcombine.high %v514, %v532
        %v577 = vunpack.c.l.s4 1983009808
        %v578 = vunpack.c.0.s8 %v577
        %v579 = vlaneseq
        %v580 = vshrl.u32 %v579, 7
        %v581 = vsub.s32 %v578, %v580
        %v582 = vrot.slane %v574, %v581
        %v584 = vunpack.c.l.s4 1983009808
        %v585 = vunpack.c.0.s8 %v584
        %v586 = vlaneseq
        %v587 = vshrl.u32 %v586, 7
        %v588 = vsub.s32 %v585, %v587
        %v589 = vrot.slane %v575, %v588
        %v590 = vcombine.high %v541, 0.0
        %v592 = vunpack.c.l.s4 1983009808
        %v593 = vunpack.c.0.s8 %v592
        %v594 = vlaneseq
        %v595 = vshrl.u32 %v594, 7
        %v596 = vsub.s32 %v593, %v595
        %v597 = vrot.slane %v541, %v596
        %v599 = vunpack.c.l.s4 1983009808
        %v600 = vunpack.c.0.s8 %v599
        %v601 = vlaneseq
        %v602 = vshrl.u32 %v601, 7
        %v603 = vsub.s32 %v600, %v602
        %v604 = vrot.slane %v590, %v603
        %v605 = vcombine.high %v550, 0.0
        %v607 = vunpack.c.l.s4 1983009808
        %v608 = vunpack.c.0.s8 %v607
        %v609 = vlaneseq
        %v610 = vshrl.u32 %v609, 7
        %v611 = vsub.s32 %v608, %v610
        %v612 = vrot.slane %v550, %v611
        %v614 = vunpack.c.l.s4 1983009808
        %v615 = vunpack.c.0.s8 %v614
        %v616 = vlaneseq
        %v617 = vshrl.u32 %v616, 7
        %v618 = vsub.s32 %v615, %v617
        %v619 = vrot.slane %v605, %v618
        %v620 = vcombine.low %v566, %v582
        %v621 = vcombine.high %v566, %v582
        %v623 = vunpack.c.l.s4 1934713408
        %v624 = vunpack.c.0.s8 %v623
        %v625 = vlaneseq
        %v626 = vshrl.u32 %v625, 7
        %v627 = vsub.s32 %v624, %v626
        %v628 = vrot.slane %v620, %v627
        %v630 = vunpack.c.l.s4 1934713408
        %v631 = vunpack.c.0.s8 %v630
        %v632 = vlaneseq
        %v633 = vshrl.u32 %v632, 7
        %v634 = vsub.s32 %v631, %v633
        %v635 = vrot.slane %v621, %v634
        %v636 = vcombine.low %v573, %v589
        %v637 = vcombine.high %v573, %v589
        %v639 = vunpack.c.l.s4 1934713408
        %v640 = vunpack.c.0.s8 %v639
        %v641 = vlaneseq
        %v642 = vshrl.u32 %v641, 7
        %v643 = vsub.s32 %v640, %v642
        %v644 = vrot.slane %v636, %v643
        %v646 = vunpack.c.l.s4 1934713408
        %v647 = vunpack.c.0.s8 %v646
        %v648 = vlaneseq
        %v649 = vshrl.u32 %v648, 7
        %v650 = vsub.s32 %v647, %v649
        %v651 = vrot.slane %v637, %v650
        %v652 = vcombine.low %v597, %v612
        %v653 = vcombine.high %v597, %v612
        %v655 = vunpack.c.l.s4 1934713408
        %v656 = vunpack.c.0.s8 %v655
        %v657 = vlaneseq
        %v658 = vshrl.u32 %v657, 7
        %v659 = vsub.s32 %v656, %v658
        %v660 = vrot.slane %v652, %v659
        %v662 = vunpack.c.l.s4 1934713408
        %v663 = vunpack.c.0.s8 %v662
        %v664 = vlaneseq
        %v665 = vshrl.u32 %v664, 7
        %v666 = vsub.s32 %v663, %v665
        %v667 = vrot.slane %v653, %v666
        %v668 = vcombine.low %v604, %v619
        %v669 = vcombine.high %v604, %v619
        %v671 = vunpack.c.l.s4 1934713408
        %v672 = vunpack.c.0.s8 %v671
        %v673 = vlaneseq
        %v674 = vshrl.u32 %v673, 7
        %v675 = vsub.s32 %v672, %v674
        %v676 = vrot.slane %v668, %v675
        %v678 = vunpack.c.l.s4 1934713408
        %v679 = vunpack.c.0.s8 %v678
        %v680 = vlaneseq
        %v681 = vshrl.u32 %v680, 7
        %v682 = vsub.s32 %v679, %v681
        %v683 = vrot.slane %v669, %v682
        %v684 = vcombine.low %v628, %v660
        %v685 = vcombine.high %v628, %v660
        %v686 = vcombine.low %v635, %v667
        %v687 = vcombine.high %v635, %v667
        %v688 = vcombine.low %v644, %v676
        %v689 = vcombine.high %v644, %v676
        %v690 = vcombine.low %v651, %v683
        %v691 = vcombine.high %v651, %v683
        %v692 = vcombine.low %v502, %v525
        %v693 = vcombine.high %v502, %v525
        %v695 = vunpack.c.l.s4 1983009808
        %v696 = vunpack.c.0.s8 %v695
        %v697 = vlaneseq
        %v698 = vshrl.u32 %v697, 7
        %v699 = vsub.s32 %v696, %v698
        %v700 = vrot.slane %v692, %v699
        %v702 = vunpack.c.l.s4 1983009808
        %v703 = vunpack.c.0.s8 %v702
        %v704 = vlaneseq
        %v705 = vshrl.u32 %v704, 7
        %v706 = vsub.s32 %v703, %v705
        %v707 = vrot.slane %v693, %v706
        %v708 = vcombine.low %v516, %v534
        %v709 = vcombine.high %v516, %v534
        %v711 = vunpack.c.l.s4 1983009808
        %v712 = vunpack.c.0.s8 %v711
        %v713 = vlaneseq
        %v714 = vshrl.u32 %v713, 7
        %v715 = vsub.s32 %v712, %v714
        %v716 = vrot.slane %v708, %v715
        %v718 = vunpack.c.l.s4 1983009808
        %v719 = vunpack.c.0.s8 %v718
        %v720 = vlaneseq
        %v721 = vshrl.u32 %v720, 7
        %v722 = vsub.s32 %v719, %v721
        %v723 = vrot.slane %v709, %v722
        %v724 = vcombine.high %v543, 0.0
        %v726 = vunpack.c.l.s4 1983009808
        %v727 = vunpack.c.0.s8 %v726
        %v728 = vlaneseq
        %v729 = vshrl.u32 %v728, 7
        %v730 = vsub.s32 %v727, %v729
        %v731 = vrot.slane %v543, %v730
        %v733 = vunpack.c.l.s4 1983009808
        %v734 = vunpack.c.0.s8 %v733
        %v735 = vlaneseq
        %v736 = vshrl.u32 %v735, 7
        %v737 = vsub.s32 %v734, %v736
        %v738 = vrot.slane %v724, %v737
        %v739 = vcombine.high %v552, 0.0
        %v741 = vunpack.c.l.s4 1983009808
        %v742 = vunpack.c.0.s8 %v741
        %v743 = vlaneseq
        %v744 = vshrl.u32 %v743, 7
        %v745 = vsub.s32 %v742, %v744
        %v746 = vrot.slane %v552, %v745
        %v748 = vunpack.c.l.s4 1983009808
        %v749 = vunpack.c.0.s8 %v748
        %v750 = vlaneseq
        %v751 = vshrl.u32 %v750, 7
        %v752 = vsub.s32 %v749, %v751
        %v753 = vrot.slane %v739, %v752
        %v754 = vcombine.low %v700, %v716
        %v755 = vcombine.high %v700, %v716
        %v757 = vunpack.c.l.s4 1934713408
        %v758 = vunpack.c.0.s8 %v757
        %v759 = vlaneseq
        %v760 = vshrl.u32 %v759, 7
        %v761 = vsub.s32 %v758, %v760
        %v762 = vrot.slane %v754, %v761
        %v764 = vunpack.c.l.s4 1934713408
        %v765 = vunpack.c.0.s8 %v764
        %v766 = vlaneseq
        %v767 = vshrl.u32 %v766, 7
        %v768 = vsub.s32 %v765, %v767
        %v769 = vrot.slane %v755, %v768
        %v770 = vcombine.low %v707, %v723
        %v771 = vcombine.high %v707, %v723
        %v773 = vunpack.c.l.s4 1934713408
        %v774 = vunpack.c.0.s8 %v773
        %v775 = vlaneseq
        %v776 = vshrl.u32 %v775, 7
        %v777 = vsub.s32 %v774, %v776
        %v778 = vrot.slane %v770, %v777
        %v780 = vunpack.c.l.s4 1934713408
        %v781 = vunpack.c.0.s8 %v780
        %v782 = vlaneseq
        %v783 = vshrl.u32 %v782, 7
        %v784 = vsub.s32 %v781, %v783
        %v785 = vrot.slane %v771, %v784
        %v786 = vcombine.low %v731, %v746
        %v787 = vcombine.high %v731, %v746
        %v789 = vunpack.c.l.s4 1934713408
        %v790 = vunpack.c.0.s8 %v789
        %v791 = vlaneseq
        %v792 = vshrl.u32 %v791, 7
        %v793 = vsub.s32 %v790, %v792
        %v794 = vrot.slane %v786, %v793
        %v796 = vunpack.c.l.s4 1934713408
        %v797 = vunpack.c.0.s8 %v796
        %v798 = vlaneseq
        %v799 = vshrl.u32 %v798, 7
        %v800 = vsub.s32 %v797, %v799
        %v801 = vrot.slane %v787, %v800
        %v802 = vcombine.low %v738, %v753
        %v803 = vcombine.high %v738, %v753
        %v805 = vunpack.c.l.s4 1934713408
        %v806 = vunpack.c.0.s8 %v805
        %v807 = vlaneseq
        %v808 = vshrl.u32 %v807, 7
        %v809 = vsub.s32 %v806, %v808
        %v810 = vrot.slane %v802, %v809
        %v812 = vunpack.c.l.s4 1934713408
        %v813 = vunpack.c.0.s8 %v812
        %v814 = vlaneseq
        %v815 = vshrl.u32 %v814, 7
        %v816 = vsub.s32 %v813, %v815
        %v817 = vrot.slane %v803, %v816
        %v818 = vcombine.low %v762, %v794
        %v819 = vcombine.high %v762, %v794
        %v820 = vcombine.low %v769, %v801
        %v821 = vcombine.high %v769, %v801
        %v822 = vcombine.low %v778, %v810
        %v823 = vcombine.high %v778, %v810
        %v824 = vcombine.low %v785, %v817
        %v825 = vcombine.high %v785, %v817
        %v826 = vcombine.low %v507, %v527
        %v827 = vcombine.high %v507, %v527
        %v829 = vunpack.c.l.s4 1983009808
        %v830 = vunpack.c.0.s8 %v829
        %v831 = vlaneseq
        %v832 = vshrl.u32 %v831, 7
        %v833 = vsub.s32 %v830, %v832
        %v834 = vrot.slane %v826, %v833
        %v836 = vunpack.c.l.s4 1983009808
        %v837 = vunpack.c.0.s8 %v836
        %v838 = vlaneseq
        %v839 = vshrl.u32 %v838, 7
        %v840 = vsub.s32 %v837, %v839
        %v841 = vrot.slane %v827, %v840
        %v842 = vcombine.low %v518, %v536
        %v843 = vcombine.high %v518, %v536
        %v845 = vunpack.c.l.s4 1983009808
        %v846 = vunpack.c.0.s8 %v845
        %v847 = vlaneseq
        %v848 = vshrl.u32 %v847, 7
        %v849 = vsub.s32 %v846, %v848
        %v850 = vrot.slane %v842, %v849
        %v852 = vunpack.c.l.s4 1983009808
        %v853 = vunpack.c.0.s8 %v852
        %v854 = vlaneseq
        %v855 = vshrl.u32 %v854, 7
        %v856 = vsub.s32 %v853, %v855
        %v857 = vrot.slane %v843, %v856
        %v858 = vcombine.high %v545, 0.0
        %v860 = vunpack.c.l.s4 1983009808
        %v861 = vunpack.c.0.s8 %v860
        %v862 = vlaneseq
        %v863 = vshrl.u32 %v862, 7
        %v864 = vsub.s32 %v861, %v863
        %v865 = vrot.slane %v545, %v864
        %v867 = vunpack.c.l.s4 1983009808
        %v868 = vunpack.c.0.s8 %v867
        %v869 = vlaneseq
        %v870 = vshrl.u32 %v869, 7
        %v871 = vsub.s32 %v868, %v870
        %v872 = vrot.slane %v858, %v871
        %v873 = vcombine.high %v554, 0.0
        %v875 = vunpack.c.l.s4 1983009808
        %v876 = vunpack.c.0.s8 %v875
        %v877 = vlaneseq
        %v878 = vshrl.u32 %v877, 7
        %v879 = vsub.s32 %v876, %v878
        %v880 = vrot.slane %v554, %v879
        %v882 = vunpack.c.l.s4 1983009808
        %v883 = vunpack.c.0.s8 %v882
        %v884 = vlaneseq
        %v885 = vshrl.u32 %v884, 7
        %v886 = vsub.s32 %v883, %v885
        %v887 = vrot.slane %v873, %v886
        %v888 = vcombine.low %v834, %v850
        %v889 = vcombine.high %v834, %v850
        %v891 = vunpack.c.l.s4 1934713408
        %v892 = vunpack.c.0.s8 %v891
        %v893 = vlaneseq
        %v894 = vshrl.u32 %v893, 7
        %v895 = vsub.s32 %v892, %v894
        %v896 = vrot.slane %v888, %v895
        %v898 = vunpack.c.l.s4 1934713408
        %v899 = vunpack.c.0.s8 %v898
        %v900 = vlaneseq
        %v901 = vshrl.u32 %v900, 7
        %v902 = vsub.s32 %v899, %v901
        %v903 = vrot.slane %v889, %v902
        %v904 = vcombine.low %v841, %v857
        %v905 = vcombine.high %v841, %v857
        %v907 = vunpack.c.l.s4 1934713408
        %v908 = vunpack.c.0.s8 %v907
        %v909 = vlaneseq
        %v910 = vshrl.u32 %v909, 7
        %v911 = vsub.s32 %v908, %v910
        %v912 = vrot.slane %v904, %v911
        %v914 = vunpack.c.l.s4 1934713408
        %v915 = vunpack.c.0.s8 %v914
        %v916 = vlaneseq
        %v917 = vshrl.u32 %v916, 7
        %v918 = vsub.s32 %v915, %v917
        %v919 = vrot.slane %v905, %v918
        %v920 = vcombine.low %v865, %v880
        %v921 = vcombine.high %v865, %v880
        %v923 = vunpack.c.l.s4 1934713408
        %v924 = vunpack.c.0.s8 %v923
        %v925 = vlaneseq
        %v926 = vshrl.u32 %v925, 7
        %v927 = vsub.s32 %v924, %v926
        %v928 = vrot.slane %v920, %v927
        %v930 = vunpack.c.l.s4 1934713408
        %v931 = vunpack.c.0.s8 %v930
        %v932 = vlaneseq
        %v933 = vshrl.u32 %v932, 7
        %v934 = vsub.s32 %v931, %v933
        %v935 = vrot.slane %v921, %v934
        %v936 = vcombine.low %v872, %v887
        %v937 = vcombine.high %v872, %v887
        %v939 = vunpack.c.l.s4 1934713408
        %v940 = vunpack.c.0.s8 %v939
        %v941 = vlaneseq
        %v942 = vshrl.u32 %v941, 7
        %v943 = vsub.s32 %v940, %v942
        %v944 = vrot.slane %v936, %v943
        %v946 = vunpack.c.l.s4 1934713408
        %v947 = vunpack.c.0.s8 %v946
        %v948 = vlaneseq
        %v949 = vshrl.u32 %v948, 7
        %v950 = vsub.s32 %v947, %v949
        %v951 = vrot.slane %v937, %v950
        %v952 = vcombine.low %v896, %v928
        %v953 = vcombine.high %v896, %v928
        %v954 = vcombine.low %v903, %v935
        %v955 = vcombine.high %v903, %v935
        %v956 = vcombine.low %v912, %v944
        %v957 = vcombine.high %v912, %v944
        %v958 = vcombine.low %v919, %v951
        %v959 = vcombine.high %v919, %v951
        %v960 = vcombine.low %v684, %v686
        %v961 = vcombine.high %v684, %v686
        %v963 = vunpack.c.l.s4 1983009808
        %v964 = vunpack.c.0.s8 %v963
        %v965 = vlaneseq
        %v966 = vshrl.u32 %v965, 7
        %v967 = vsub.s32 %v964, %v966
        %v968 = vrot.slane %v960, %v967
        %v970 = vunpack.c.l.s4 1983009808
        %v971 = vunpack.c.0.s8 %v970
        %v972 = vlaneseq
        %v973 = vshrl.u32 %v972, 7
        %v974 = vsub.s32 %v971, %v973
        %v975 = vrot.slane %v961, %v974
        %v976 = vcombine.low %v685, %v687
        %v977 = vcombine.high %v685, %v687
        %v979 = vunpack.c.l.s4 1983009808
        %v980 = vunpack.c.0.s8 %v979
        %v981 = vlaneseq
        %v982 = vshrl.u32 %v981, 7
        %v983 = vsub.s32 %v980, %v982
        %v984 = vrot.slane %v976, %v983
        %v986 = vunpack.c.l.s4 1983009808
        %v987 = vunpack.c.0.s8 %v986
        %v988 = vlaneseq
        %v989 = vshrl.u32 %v988, 7
        %v990 = vsub.s32 %v987, %v989
        %v991 = vrot.slane %v977, %v990
        %v992 = vcombine.low %v688, %v690
        %v993 = vcombine.high %v688, %v690
        %v995 = vunpack.c.l.s4 1983009808
        %v996 = vunpack.c.0.s8 %v995
        %v997 = vlaneseq
        %v998 = vshrl.u32 %v997, 7
        %v999 = vsub.s32 %v996, %v998
        %v1000 = vrot.slane %v992, %v999
        %v1002 = vunpack.c.l.s4 1983009808
        %v1003 = vunpack.c.0.s8 %v1002
        %v1004 = vlaneseq
        %v1005 = vshrl.u32 %v1004, 7
        %v1006 = vsub.s32 %v1003, %v1005
        %v1007 = vrot.slane %v993, %v1006
        %v1008 = vcombine.low %v689, %v691
        %v1009 = vcombine.high %v689, %v691
        %v1011 = vunpack.c.l.s4 1983009808
        %v1012 = vunpack.c.0.s8 %v1011
        %v1013 = vlaneseq
        %v1014 = vshrl.u32 %v1013, 7
        %v1015 = vsub.s32 %v1012, %v1014
        %v1016 = vrot.slane %v1008, %v1015
        %v1018 = vunpack.c.l.s4 1983009808
        %v1019 = vunpack.c.0.s8 %v1018
        %v1020 = vlaneseq
        %v1021 = vshrl.u32 %v1020, 7
        %v1022 = vsub.s32 %v1019, %v1021
        %v1023 = vrot.slane %v1009, %v1022
        %v1024 = vcombine.low %v968, %v984
        %v1025 = vcombine.high %v968, %v984
        %v1027 = vunpack.c.l.s4 1934713408
        %v1028 = vunpack.c.0.s8 %v1027
        %v1029 = vlaneseq
        %v1030 = vshrl.u32 %v1029, 7
        %v1031 = vsub.s32 %v1028, %v1030
        %v1032 = vrot.slane %v1024, %v1031
        %v1034 = vunpack.c.l.s4 1934713408
        %v1035 = vunpack.c.0.s8 %v1034
        %v1036 = vlaneseq
        %v1037 = vshrl.u32 %v1036, 7
        %v1038 = vsub.s32 %v1035, %v1037
        %v1039 = vrot.slane %v1025, %v1038
        %v1040 = vcombine.low %v975, %v991
        %v1042 = vunpack.c.l.s4 1934713408
        %v1043 = vunpack.c.0.s8 %v1042
        %v1044 = vlaneseq
        %v1045 = vshrl.u32 %v1044, 7
        %v1046 = vsub.s32 %v1043, %v1045
        %v1047 = vrot.slane %v1040, %v1046
        %v1048 = vcombine.low %v1000, %v1016
        %v1049 = vcombine.high %v1000, %v1016
        %v1051 = vunpack.c.l.s4 1934713408
        %v1052 = vunpack.c.0.s8 %v1051
        %v1053 = vlaneseq
        %v1054 = vshrl.u32 %v1053, 7
        %v1055 = vsub.s32 %v1052, %v1054
        %v1056 = vrot.slane %v1048, %v1055
        %v1058 = vunpack.c.l.s4 1934713408
        %v1059 = vunpack.c.0.s8 %v1058
        %v1060 = vlaneseq
        %v1061 = vshrl.u32 %v1060, 7
        %v1062 = vsub.s32 %v1059, %v1061
        %v1063 = vrot.slane %v1049, %v1062
        %v1064 = vcombine.low %v1007, %v1023
        %v1066 = vunpack.c.l.s4 1934713408
        %v1067 = vunpack.c.0.s8 %v1066
        %v1068 = vlaneseq
        %v1069 = vshrl.u32 %v1068, 7
        %v1070 = vsub.s32 %v1067, %v1069
        %v1071 = vrot.slane %v1064, %v1070
        %v1072 = vcombine.low %v1032, %v1056
        %v1073 = vcombine.high %v1032, %v1056
        %v1074 = vcombine.low %v1039, %v1063
        %v1075 = vcombine.high %v1039, %v1063
        %v1076 = vcombine.low %v1047, %v1071
        %v1077 = vcombine.high %v1047, %v1071
        %v1078 = vcombine.low %v818, %v820
        %v1079 = vcombine.high %v818, %v820
        %v1081 = vunpack.c.l.s4 1983009808
        %v1082 = vunpack.c.0.s8 %v1081
        %v1083 = vlaneseq
        %v1084 = vshrl.u32 %v1083, 7
        %v1085 = vsub.s32 %v1082, %v1084
        %v1086 = vrot.slane %v1078, %v1085
        %v1088 = vunpack.c.l.s4 1983009808
        %v1089 = vunpack.c.0.s8 %v1088
        %v1090 = vlaneseq
        %v1091 = vshrl.u32 %v1090, 7
        %v1092 = vsub.s32 %v1089, %v1091
        %v1093 = vrot.slane %v1079, %v1092
        %v1094 = vcombine.low %v819, %v821
        %v1095 = vcombine.high %v819, %v821
        %v1097 = vunpack.c.l.s4 1983009808
        %v1098 = vunpack.c.0.s8 %v1097
        %v1099 = vlaneseq
        %v1100 = vshrl.u32 %v1099, 7
        %v1101 = vsub.s32 %v1098, %v1100
        %v1102 = vrot.slane %v1094, %v1101
        %v1104 = vunpack.c.l.s4 1983009808
        %v1105 = vunpack.c.0.s8 %v1104
        %v1106 = vlaneseq
        %v1107 = vshrl.u32 %v1106, 7
        %v1108 = vsub.s32 %v1105, %v1107
        %v1109 = vrot.slane %v1095, %v1108
        %v1110 = vcombine.low %v822, %v824
        %v1111 = vcombine.high %v822, %v824
        %v1113 = vunpack.c.l.s4 1983009808
        %v1114 = vunpack.c.0.s8 %v1113
        %v1115 = vlaneseq
        %v1116 = vshrl.u32 %v1115, 7
        %v1117 = vsub.s32 %v1114, %v1116
        %v1118 = vrot.slane %v1110, %v1117
        %v1120 = vunpack.c.l.s4 1983009808
        %v1121 = vunpack.c.0.s8 %v1120
        %v1122 = vlaneseq
        %v1123 = vshrl.u32 %v1122, 7
        %v1124 = vsub.s32 %v1121, %v1123
        %v1125 = vrot.slane %v1111, %v1124
        %v1126 = vcombine.low %v823, %v825
        %v1127 = vcombine.high %v823, %v825
        %v1129 = vunpack.c.l.s4 1983009808
        %v1130 = vunpack.c.0.s8 %v1129
        %v1131 = vlaneseq
        %v1132 = vshrl.u32 %v1131, 7
        %v1133 = vsub.s32 %v1130, %v1132
        %v1134 = vrot.slane %v1126, %v1133
        %v1136 = vunpack.c.l.s4 1983009808
        %v1137 = vunpack.c.0.s8 %v1136
        %v1138 = vlaneseq
        %v1139 = vshrl.u32 %v1138, 7
        %v1140 = vsub.s32 %v1137, %v1139
        %v1141 = vrot.slane %v1127, %v1140
        %v1142 = vcombine.low %v1086, %v1102
        %v1143 = vcombine.high %v1086, %v1102
        %v1145 = vunpack.c.l.s4 1934713408
        %v1146 = vunpack.c.0.s8 %v1145
        %v1147 = vlaneseq
        %v1148 = vshrl.u32 %v1147, 7
        %v1149 = vsub.s32 %v1146, %v1148
        %v1150 = vrot.slane %v1142, %v1149
        %v1152 = vunpack.c.l.s4 1934713408
        %v1153 = vunpack.c.0.s8 %v1152
        %v1154 = vlaneseq
        %v1155 = vshrl.u32 %v1154, 7
        %v1156 = vsub.s32 %v1153, %v1155
        %v1157 = vrot.slane %v1143, %v1156
        %v1158 = vcombine.low %v1093, %v1109
        %v1160 = vunpack.c.l.s4 1934713408
        %v1161 = vunpack.c.0.s8 %v1160
        %v1162 = vlaneseq
        %v1163 = vshrl.u32 %v1162, 7
        %v1164 = vsub.s32 %v1161, %v1163
        %v1165 = vrot.slane %v1158, %v1164
        %v1166 = vcombine.low %v1118, %v1134
        %v1167 = vcombine.high %v1118, %v1134
        %v1169 = vunpack.c.l.s4 1934713408
        %v1170 = vunpack.c.0.s8 %v1169
        %v1171 = vlaneseq
        %v1172 = vshrl.u32 %v1171, 7
        %v1173 = vsub.s32 %v1170, %v1172
        %v1174 = vrot.slane %v1166, %v1173
        %v1176 = vunpack.c.l.s4 1934713408
        %v1177 = vunpack.c.0.s8 %v1176
        %v1178 = vlaneseq
        %v1179 = vshrl.u32 %v1178, 7
        %v1180 = vsub.s32 %v1177, %v1179
        %v1181 = vrot.slane %v1167, %v1180
        %v1182 = vcombine.low %v1125, %v1141
        %v1184 = vunpack.c.l.s4 1934713408
        %v1185 = vunpack.c.0.s8 %v1184
        %v1186 = vlaneseq
        %v1187 = vshrl.u32 %v1186, 7
        %v1188 = vsub.s32 %v1185, %v1187
        %v1189 = vrot.slane %v1182, %v1188
        %v1190 = vcombine.low %v1150, %v1174
        %v1191 = vcombine.high %v1150, %v1174
        %v1192 = vcombine.low %v1157, %v1181
        %v1193 = vcombine.high %v1157, %v1181
        %v1194 = vcombine.low %v1165, %v1189
        %v1195 = vcombine.high %v1165, %v1189
        %v1196 = vcombine.low %v952, %v954
        %v1197 = vcombine.high %v952, %v954
        %v1199 = vunpack.c.l.s4 1983009808
        %v1200 = vunpack.c.0.s8 %v1199
        %v1201 = vlaneseq
        %v1202 = vshrl.u32 %v1201, 7
        %v1203 = vsub.s32 %v1200, %v1202
        %v1204 = vrot.slane %v1196, %v1203
        %v1206 = vunpack.c.l.s4 1983009808
        %v1207 = vunpack.c.0.s8 %v1206
        %v1208 = vlaneseq
        %v1209 = vshrl.u32 %v1208, 7
        %v1210 = vsub.s32 %v1207, %v1209
        %v1211 = vrot.slane %v1197, %v1210
        %v1212 = vcombine.low %v953, %v955
        %v1213 = vcombine.high %v953, %v955
        %v1215 = vunpack.c.l.s4 1983009808
        %v1216 = vunpack.c.0.s8 %v1215
        %v1217 = vlaneseq
        %v1218 = vshrl.u32 %v1217, 7
        %v1219 = vsub.s32 %v1216, %v1218
        %v1220 = vrot.slane %v1212, %v1219
        %v1222 = vunpack.c.l.s4 1983009808
        %v1223 = vunpack.c.0.s8 %v1222
        %v1224 = vlaneseq
        %v1225 = vshrl.u32 %v1224, 7
        %v1226 = vsub.s32 %v1223, %v1225
        %v1227 = vrot.slane %v1213, %v1226
        %v1228 = vcombine.low %v956, %v958
        %v1229 = vcombine.high %v956, %v958
        %v1231 = vunpack.c.l.s4 1983009808
        %v1232 = vunpack.c.0.s8 %v1231
        %v1233 = vlaneseq
        %v1234 = vshrl.u32 %v1233, 7
        %v1235 = vsub.s32 %v1232, %v1234
        %v1236 = vrot.slane %v1228, %v1235
        %v1238 = vunpack.c.l.s4 1983009808
        %v1239 = vunpack.c.0.s8 %v1238
        %v1240 = vlaneseq
        %v1241 = vshrl.u32 %v1240, 7
        %v1242 = vsub.s32 %v1239, %v1241
        %v1243 = vrot.slane %v1229, %v1242
        %v1244 = vcombine.low %v957, %v959
        %v1245 = vcombine.high %v957, %v959
        %v1247 = vunpack.c.l.s4 1983009808
        %v1248 = vunpack.c.0.s8 %v1247
        %v1249 = vlaneseq
        %v1250 = vshrl.u32 %v1249, 7
        %v1251 = vsub.s32 %v1248, %v1250
        %v1252 = vrot.slane %v1244, %v1251
        %v1254 = vunpack.c.l.s4 1983009808
        %v1255 = vunpack.c.0.s8 %v1254
        %v1256 = vlaneseq
        %v1257 = vshrl.u32 %v1256, 7
        %v1258 = vsub.s32 %v1255, %v1257
        %v1259 = vrot.slane %v1245, %v1258
        %v1260 = vcombine.low %v1204, %v1220
        %v1261 = vcombine.high %v1204, %v1220
        %v1263 = vunpack.c.l.s4 1934713408
        %v1264 = vunpack.c.0.s8 %v1263
        %v1265 = vlaneseq
        %v1266 = vshrl.u32 %v1265, 7
        %v1267 = vsub.s32 %v1264, %v1266
        %v1268 = vrot.slane %v1260, %v1267
        %v1270 = vunpack.c.l.s4 1934713408
        %v1271 = vunpack.c.0.s8 %v1270
        %v1272 = vlaneseq
        %v1273 = vshrl.u32 %v1272, 7
        %v1274 = vsub.s32 %v1271, %v1273
        %v1275 = vrot.slane %v1261, %v1274
        %v1276 = vcombine.low %v1211, %v1227
        %v1278 = vunpack.c.l.s4 1934713408
        %v1279 = vunpack.c.0.s8 %v1278
        %v1280 = vlaneseq
        %v1281 = vshrl.u32 %v1280, 7
        %v1282 = vsub.s32 %v1279, %v1281
        %v1283 = vrot.slane %v1276, %v1282
        %v1284 = vcombine.low %v1236, %v1252
        %v1285 = vcombine.high %v1236, %v1252
        %v1287 = vunpack.c.l.s4 1934713408
        %v1288 = vunpack.c.0.s8 %v1287
        %v1289 = vlaneseq
        %v1290 = vshrl.u32 %v1289, 7
        %v1291 = vsub.s32 %v1288, %v1290
        %v1292 = vrot.slane %v1284, %v1291
        %v1294 = vunpack.c.l.s4 1934713408
        %v1295 = vunpack.c.0.s8 %v1294
        %v1296 = vlaneseq
        %v1297 = vshrl.u32 %v1296, 7
        %v1298 = vsub.s32 %v1295, %v1297
        %v1299 = vrot.slane %v1285, %v1298
        %v1300 = vcombine.low %v1243, %v1259
        %v1302 = vunpack.c.l.s4 1934713408
        %v1303 = vunpack.c.0.s8 %v1302
        %v1304 = vlaneseq
        %v1305 = vshrl.u32 %v1304, 7
        %v1306 = vsub.s32 %v1303, %v1305
        %v1307 = vrot.slane %v1300, %v1306
        %v1308 = vcombine.low %v1268, %v1292
        %v1309 = vcombine.high %v1268, %v1292
        %v1310 = vcombine.low %v1275, %v1299
        %v1311 = vcombine.high %v1275, %v1299
        %v1312 = vcombine.low %v1283, %v1307
        %v1313 = vcombine.high %v1283, %v1307
        %vm1314 = vcmask 130048
        %v1316 = vsel %vm1314, %v1072, 0
        %v1319 = vsel %vm1314, %v1190, 0
        %v1322 = vsel %vm1314, %v1308, 0
        %v1325 = vsel %vm1314, %v1074, 0
        %v1328 = vsel %vm1314, %v1192, 0
        %v1331 = vsel %vm1314, %v1310, 0
        %1333 = vmatprep.subr.mxu0 0.0
        %1334 = vmatpush1.xpose.msra.mxu0 0.0
        %1335 = vmatprep.subr.mxu0 0.0
        %1336 = vmatpush1.xpose.msra.mxu0 0.0
        %1337 = vmatprep.subr.mxu0 0.0
        %1338 = vmatpush1.xpose.msra.mxu0 0.0
        %1339 = vmatprep.subr.mxu0 0.0
        %1340 = vmatpush1.xpose.msra.mxu0 0.0
        %1341 = vmatprep.subr.mxu0 0.0
        %1342 = vmatpush1.xpose.msra.mxu0 0.0
        %1343 = vmatprep.subr.mxu0 0.0
        %1344 = vmatpush1.xpose.msra.mxu0 0.0
        %1345 = vmatprep.subr.mxu0 0.0
        %1346 = vmatpush1.xpose.msra.mxu0 0.0
        %1347 = vmatprep.subr.mxu0 0.0
        %1348 = vmatpush1.xpose.msra.mxu0 0.0
        %1349 = vmatprep.subr.mxu0 0.0
        %1350 = vmatpush1.xpose.msra.mxu0 0.0
        %1351 = vmatprep.subr.mxu0 0.0
        %1352 = vmatpush1.xpose.msra.mxu0 0.0
        %1353 = vmatprep.subr.mxu0 0.0
        %1354 = vmatpush1.xpose.msra.mxu0 0.0
        %1355 = vmatprep.subr.mxu0 0.0
        %1356 = vmatpush1.xpose.msra.mxu0 0.0
        %1357 = vmatprep.subr.mxu0 0.0
        %1358 = vmatpush1.xpose.msra.mxu0 0.0
        %1359 = vmatprep.subr.mxu0 0.0
        %1360 = vmatpush1.xpose.msra.mxu0 %v1331
        %1361 = vmatprep.subr.mxu0 0.0
        %1362 = vmatpush1.xpose.msra.mxu0 %v1328
        %1363 = vmatprep.subr.mxu0 0.0
        %1364 = vmatpush1.xpose.msra.mxu0 %v1325
        %1365 = vmatprep.subr.mxu0 0.0
        %1366 = vmatpush2.xpose.msra.mxu0 0.0
        %1367 = vmatprep.subr.mxu0 0.0
        %1368 = vmatpush2.xpose.msra.mxu0 0.0
        %1369 = vmatprep.subr.mxu0 0.0
        %1370 = vmatpush2.xpose.msra.mxu0 0.0
        %1371 = vmatprep.subr.mxu0 0.0
        %1372 = vmatpush2.xpose.msra.mxu0 0.0
        %1373 = vmatprep.subr.mxu0 0.0
        %1374 = vmatpush2.xpose.msra.mxu0 0.0
        %1375 = vmatprep.subr.mxu0 0.0
        %1376 = vmatpush2.xpose.msra.mxu0 0.0
        %1377 = vmatprep.subr.mxu0 0.0
        %1378 = vmatpush2.xpose.msra.mxu0 0.0
        %1379 = vmatprep.subr.mxu0 0.0
        %1380 = vmatpush2.xpose.msra.mxu0 0.0
        %1381 = vmatprep.subr.mxu0 0.0
        %1382 = vmatpush2.xpose.msra.mxu0 0.0
        %1383 = vmatprep.subr.mxu0 0.0
        %1384 = vmatpush2.xpose.msra.mxu0 0.0
        %1385 = vmatprep.subr.mxu0 0.0
        %1386 = vmatpush2.xpose.msra.mxu0 0.0
        %1387 = vmatprep.subr.mxu0 0.0
        %1388 = vmatpush2.xpose.msra.mxu0 0.0
        %1389 = vmatprep.subr.mxu0 0.0
        %1390 = vmatpush2.xpose.msra.mxu0 0.0
        %1391 = vmatprep.subr.mxu0 0.0
        %1392 = vmatpush2.xpose.msra.mxu0 0.0
        %1393 = vmatprep.subr.mxu0 0.0
        %1394 = vmatpush2.xpose.msra.mxu0 0.0
        %1395 = vmatprep.subr.mxu0 0.0
        %1396 = vmatpush2.xpose.msra.mxu0 0.0
        %1397 = vmatprep.mubr.f32.mxu0 0.0
        %1398 = vmatmul.mubr.f32.gmra.mxu0 %v1316
        %v1399 = vpop.f32.mrf.mxu0
        %v1400 = vadd.f32 0.0, %v1399
        %v1401 = vpop.f32.mrf.mxu0
        %1402 = vmatprep.mubr.f32.mxu0 0.0
        %1403 = vmatmul.mubr.f32.gmra.mxu0 %v1319
        %v1404 = vpop.f32.mrf.mxu0
        %v1405 = vadd.f32 0.0, %v1404
        %v1406 = vpop.f32.mrf.mxu0
        %1407 = vmatprep.mubr.f32.mxu0 0.0
        %1408 = vmatmul.mubr.f32.gmra.mxu0 %v1322
        %v1409 = vpop.f32.mrf.mxu0
        %v1410 = vadd.f32 0.0, %v1409
        %v1411 = vpop.f32.mrf.mxu0
        %1412 = vdwg.mxu0
        %v1414 = vsel %vm1314, %v1073, 0
        %v1417 = vsel %vm1314, %v1191, 0
        %v1420 = vsel %vm1314, %v1309, 0
        %v1423 = vsel %vm1314, %v1075, 0
        %v1426 = vsel %vm1314, %v1193, 0
        %v1429 = vsel %vm1314, %v1311, 0
        %1431 = vmatprep.subr.mxu0 0.0
        %1432 = vmatpush1.xpose.msra.mxu0 0.0
        %1433 = vmatprep.subr.mxu0 0.0
        %1434 = vmatpush1.xpose.msra.mxu0 0.0
        %1435 = vmatprep.subr.mxu0 0.0
        %1436 = vmatpush1.xpose.msra.mxu0 0.0
        %1437 = vmatprep.subr.mxu0 0.0
        %1438 = vmatpush1.xpose.msra.mxu0 0.0
        %1439 = vmatprep.subr.mxu0 0.0
        %1440 = vmatpush1.xpose.msra.mxu0 0.0
        %1441 = vmatprep.subr.mxu0 0.0
        %1442 = vmatpush1.xpose.msra.mxu0 0.0
        %1443 = vmatprep.subr.mxu0 0.0
        %1444 = vmatpush1.xpose.msra.mxu0 0.0
        %1445 = vmatprep.subr.mxu0 0.0
        %1446 = vmatpush1.xpose.msra.mxu0 0.0
        %1447 = vmatprep.subr.mxu0 0.0
        %1448 = vmatpush1.xpose.msra.mxu0 0.0
        %1449 = vmatprep.subr.mxu0 0.0
        %1450 = vmatpush1.xpose.msra.mxu0 0.0
        %1451 = vmatprep.subr.mxu0 0.0
        %1452 = vmatpush1.xpose.msra.mxu0 0.0
        %1453 = vmatprep.subr.mxu0 0.0
        %1454 = vmatpush1.xpose.msra.mxu0 0.0
        %1455 = vmatprep.subr.mxu0 0.0
        %1456 = vmatpush1.xpose.msra.mxu0 0.0
        %1457 = vmatprep.subr.mxu0 0.0
        %1458 = vmatpush1.xpose.msra.mxu0 %v1429
        %1459 = vmatprep.subr.mxu0 0.0
        %1460 = vmatpush1.xpose.msra.mxu0 %v1426
        %1461 = vmatprep.subr.mxu0 0.0
        %1462 = vmatpush1.xpose.msra.mxu0 %v1423
        %1463 = vmatprep.subr.mxu0 0.0
        %1464 = vmatpush2.xpose.msra.mxu0 0.0
        %1465 = vmatprep.subr.mxu0 0.0
        %1466 = vmatpush2.xpose.msra.mxu0 0.0
        %1467 = vmatprep.subr.mxu0 0.0
        %1468 = vmatpush2.xpose.msra.mxu0 0.0
        %1469 = vmatprep.subr.mxu0 0.0
        %1470 = vmatpush2.xpose.msra.mxu0 0.0
        %1471 = vmatprep.subr.mxu0 0.0
        %1472 = vmatpush2.xpose.msra.mxu0 0.0
        %1473 = vmatprep.subr.mxu0 0.0
        %1474 = vmatpush2.xpose.msra.mxu0 0.0
        %1475 = vmatprep.subr.mxu0 0.0
        %1476 = vmatpush2.xpose.msra.mxu0 0.0
        %1477 = vmatprep.subr.mxu0 0.0
        %1478 = vmatpush2.xpose.msra.mxu0 0.0
        %1479 = vmatprep.subr.mxu0 0.0
        %1480 = vmatpush2.xpose.msra.mxu0 0.0
        %1481 = vmatprep.subr.mxu0 0.0
        %1482 = vmatpush2.xpose.msra.mxu0 0.0
        %1483 = vmatprep.subr.mxu0 0.0
        %1484 = vmatpush2.xpose.msra.mxu0 0.0
        %1485 = vmatprep.subr.mxu0 0.0
        %1486 = vmatpush2.xpose.msra.mxu0 0.0
        %1487 = vmatprep.subr.mxu0 0.0
        %1488 = vmatpush2.xpose.msra.mxu0 0.0
        %1489 = vmatprep.subr.mxu0 0.0
        %1490 = vmatpush2.xpose.msra.mxu0 0.0
        %1491 = vmatprep.subr.mxu0 0.0
        %1492 = vmatpush2.xpose.msra.mxu0 0.0
        %1493 = vmatprep.subr.mxu0 0.0
        %1494 = vmatpush2.xpose.msra.mxu0 0.0
        %1495 = vmatprep.mubr.f32.mxu0 0.0
        %1496 = vmatmul.mubr.f32.gmra.mxu0 %v1414
        %v1497 = vpop.f32.mrf.mxu0
        %v1498 = vadd.f32 0.0, %v1497
        %v1499 = vpop.f32.mrf.mxu0
        %1500 = vmatprep.mubr.f32.mxu0 0.0
        %1501 = vmatmul.mubr.f32.gmra.mxu0 %v1417
        %v1502 = vpop.f32.mrf.mxu0
        %v1503 = vadd.f32 0.0, %v1502
        %v1504 = vpop.f32.mrf.mxu0
        %1505 = vmatprep.mubr.f32.mxu0 0.0
        %1506 = vmatmul.mubr.f32.gmra.mxu0 %v1420
        %v1507 = vpop.f32.mrf.mxu0
        %v1508 = vadd.f32 0.0, %v1507
        %v1509 = vpop.f32.mrf.mxu0
        %1510 = vdwg.mxu0
        %v1511 = vmul.f32 %v1400, 0.25
        %v1512 = vmul.f32 %v1405, 0.25
        %v1513 = vmul.f32 %v1410, 0.25
        %v1514 = vmul.f32 %v1498, 0.25
        %v1515 = vmul.f32 %v1503, 0.25
        %v1516 = vmul.f32 %v1508, 0.25
        %v1517 = vadd.f32 %v1511, %v354
        %v1518 = vadd.f32 %v1512, %v354
        %v1519 = vadd.f32 %v1513, %v354
        %v1520 = vadd.f32 %v1514, %v354
        %v1521 = vadd.f32 %v1515, %v354
        %v1522 = vadd.f32 %v1516, %v354
        %vm1523 = vcmask 195584
        %v1524 = vsel %vm1523, %v1517, -inf
        %1525 = vmax.xlane.f32.xlu0 %v1524
        %v1526 = vpop.xlane.xlu0 %1525
        %v1527 = vsel %vm1523, %v1518, -inf
        %1528 = vmax.xlane.f32.xlu0 %v1527
        %v1529 = vpop.xlane.xlu0 %1528
        %v1530 = vsel %vm1523, %v1519, -inf
        %1531 = vmax.xlane.f32.xlu0 %v1530
        %v1532 = vpop.xlane.xlu0 %1531
        %v1533 = vsel %vm1523, %v1520, -inf
        %1534 = vmax.xlane.f32.xlu0 %v1533
        %v1535 = vpop.xlane.xlu0 %1534
        %v1536 = vsel %vm1523, %v1521, -inf
        %1537 = vmax.xlane.f32.xlu0 %v1536
        %v1538 = vpop.xlane.xlu0 %1537
        %v1539 = vsel %vm1523, %v1522, -inf
        %1540 = vmax.xlane.f32.xlu0 %v1539
        %v1541 = vpop.xlane.xlu0 %1540
        %v1542 = vsub.f32 %v1517, %v1526
        %v1543 = vsub.f32 %v1518, %v1529
        %v1544 = vsub.f32 %v1519, %v1532
        %v1545 = vsub.f32 %v1520, %v1535
        %v1546 = vsub.f32 %v1521, %v1538
        %v1547 = vsub.f32 %v1522, %v1541
        %v1548 = vmul.f32 %v1542, 1.442695
        %v1549 = vpow.pop %v1548
        %v1550 = vmul.f32 %v1543, 1.442695
        %v1551 = vpow.pop %v1550
        %v1552 = vmul.f32 %v1544, 1.442695
        %v1553 = vpow.pop %v1552
        %v1554 = vmul.f32 %v1545, 1.442695
        %v1555 = vpow.pop %v1554
        %v1556 = vmul.f32 %v1546, 1.442695
        %v1557 = vpow.pop %v1556
        %v1558 = vmul.f32 %v1547, 1.442695
        %v1559 = vpow.pop %v1558
        %v1560 = vsel %vm1523, %v1549, 0.0
        %1561 = vadd.xlane.f32.xlu0 %v1560
        %v1562 = vpop.xlane.xlu0 %1561
        %v1563 = vsel %vm1523, %v1551, 0.0
        %1564 = vadd.xlane.f32.xlu0 %v1563
        %v1565 = vpop.xlane.xlu0 %1564
        %v1566 = vsel %vm1523, %v1553, 0.0
        %1567 = vadd.xlane.f32.xlu0 %v1566
        %v1568 = vpop.xlane.xlu0 %1567
        %v1569 = vsel %vm1523, %v1555, 0.0
        %1570 = vadd.xlane.f32.xlu0 %v1569
        %v1571 = vpop.xlane.xlu0 %1570
        %v1572 = vsel %vm1523, %v1557, 0.0
        %1573 = vadd.xlane.f32.xlu0 %v1572
        %v1574 = vpop.xlane.xlu0 %1573
        %v1575 = vsel %vm1523, %v1559, 0.0
        %1576 = vadd.xlane.f32.xlu0 %v1575
        %v1577 = vpop.xlane.xlu0 %1576
        %v1578 = vrcp.pop %v1562
        %v1579 = vrcp.pop %v1565
        %v1580 = vrcp.pop %v1568
        %v1581 = vrcp.pop %v1571
        %v1582 = vrcp.pop %v1574
        %v1583 = vrcp.pop %v1577
        %v1584 = vmul.f32 %v1562, %v1578
        %v1585 = vmul.f32 %v1565, %v1579
        %v1586 = vmul.f32 %v1568, %v1580
        %v1587 = vmul.f32 %v1571, %v1581
        %v1588 = vmul.f32 %v1574, %v1582
        %v1589 = vmul.f32 %v1577, %v1583
        %v1590 = vsub.f32 2.0, %v1584
        %v1591 = vsub.f32 2.0, %v1585
        %v1592 = vsub.f32 2.0, %v1586
        %v1593 = vsub.f32 2.0, %v1587
        %v1594 = vsub.f32 2.0, %v1588
        %v1595 = vsub.f32 2.0, %v1589
        %v1596 = vmul.f32 %v1578, %v1590
        %v1597 = vmul.f32 %v1579, %v1591
        %v1598 = vmul.f32 %v1580, %v1592
        %v1599 = vmul.f32 %v1581, %v1593
        %v1600 = vmul.f32 %v1582, %v1594
        %v1601 = vmul.f32 %v1583, %v1595
        %v1602 = vmul.f32 %v1549, %v1596
        %v1603 = vmul.f32 %v1551, %v1597
        %v1604 = vmul.f32 %v1553, %v1598
        %v1605 = vmul.f32 %v1555, %v1599
        %v1606 = vmul.f32 %v1557, %v1600
        %v1607 = vmul.f32 %v1559, %v1601
        %v1609 = vsel %vm1523, %v1602, 0
        %v1612 = vsel %vm1523, %v1603, 0
        %v1615 = vsel %vm1523, %v1604, 0
        %1617 = vmatprep.subr.mxu0 0.0
        %1618 = vmatpush1.msra.mxu0 0.0
        %1619 = vmatprep.subr.mxu0 0.0
        %1620 = vmatpush1.msra.mxu0 0.0
        %1621 = vmatprep.subr.mxu0 0.0
        %1622 = vmatpush1.msra.mxu0 0.0
        %1623 = vmatprep.subr.mxu0 0.0
        %1624 = vmatpush1.msra.mxu0 0.0
        %1625 = vmatprep.subr.mxu0 0.0
        %1626 = vmatpush1.msra.mxu0 0.0
        %1627 = vmatprep.subr.mxu0 0.0
        %1628 = vmatpush1.msra.mxu0 0.0
        %1629 = vmatprep.subr.mxu0 0.0
        %1630 = vmatpush1.msra.mxu0 0.0
        %1631 = vmatprep.subr.mxu0 0.0
        %1632 = vmatpush1.msra.mxu0 0.0
        %1633 = vmatprep.subr.mxu0 0.0
        %1634 = vmatpush1.msra.mxu0 0.0
        %1635 = vmatprep.subr.mxu0 0.0
        %1636 = vmatpush1.msra.mxu0 0.0
        %1637 = vmatprep.subr.mxu0 0.0
        %1638 = vmatpush1.msra.mxu0 0.0
        %1639 = vmatprep.subr.mxu0 0.0
        %1640 = vmatpush1.msra.mxu0 0.0
        %1641 = vmatprep.subr.mxu0 0.0
        %1642 = vmatpush1.msra.mxu0 0.0
        %1643 = vmatprep.subr.mxu0 0.0
        %1644 = vmatpush1.msra.mxu0 %v1312
        %1645 = vmatprep.subr.mxu0 0.0
        %1646 = vmatpush1.msra.mxu0 %v1194
        %1647 = vmatprep.subr.mxu0 0.0
        %1648 = vmatpush1.msra.mxu0 %v1076
        %1649 = vmatprep.subr.mxu0 0.0
        %1650 = vmatpush2.msra.mxu0 0.0
        %1651 = vmatprep.subr.mxu0 0.0
        %1652 = vmatpush2.msra.mxu0 0.0
        %1653 = vmatprep.subr.mxu0 0.0
        %1654 = vmatpush2.msra.mxu0 0.0
        %1655 = vmatprep.subr.mxu0 0.0
        %1656 = vmatpush2.msra.mxu0 0.0
        %1657 = vmatprep.subr.mxu0 0.0
        %1658 = vmatpush2.msra.mxu0 0.0
        %1659 = vmatprep.subr.mxu0 0.0
        %1660 = vmatpush2.msra.mxu0 0.0
        %1661 = vmatprep.subr.mxu0 0.0
        %1662 = vmatpush2.msra.mxu0 0.0
        %1663 = vmatprep.subr.mxu0 0.0
        %1664 = vmatpush2.msra.mxu0 0.0
        %1665 = vmatprep.subr.mxu0 0.0
        %1666 = vmatpush2.msra.mxu0 0.0
        %1667 = vmatprep.subr.mxu0 0.0
        %1668 = vmatpush2.msra.mxu0 0.0
        %1669 = vmatprep.subr.mxu0 0.0
        %1670 = vmatpush2.msra.mxu0 0.0
        %1671 = vmatprep.subr.mxu0 0.0
        %1672 = vmatpush2.msra.mxu0 0.0
        %1673 = vmatprep.subr.mxu0 0.0
        %1674 = vmatpush2.msra.mxu0 0.0
        %1675 = vmatprep.subr.mxu0 0.0
        %1676 = vmatpush2.msra.mxu0 0.0
        %1677 = vmatprep.subr.mxu0 0.0
        %1678 = vmatpush2.msra.mxu0 0.0
        %1679 = vmatprep.subr.mxu0 0.0
        %1680 = vmatpush2.msra.mxu0 0.0
        %1681 = vmatprep.mubr.f32.mxu0 0.0
        %1682 = vmatmul.mubr.f32.gmra.mxu0 %v1609
        %v1683 = vpop.f32.mrf.mxu0
        %v1684 = vadd.f32 0.0, %v1683
        %v1685 = vpop.f32.mrf.mxu0
        %1686 = vmatprep.mubr.f32.mxu0 0.0
        %1687 = vmatmul.mubr.f32.gmra.mxu0 %v1612
        %v1688 = vpop.f32.mrf.mxu0
        %v1689 = vadd.f32 0.0, %v1688
        %v1690 = vpop.f32.mrf.mxu0
        %1691 = vmatprep.mubr.f32.mxu0 0.0
        %1692 = vmatmul.mubr.f32.gmra.mxu0 %v1615
        %v1693 = vpop.f32.mrf.mxu0
        %v1694 = vadd.f32 0.0, %v1693
        %v1695 = vpop.f32.mrf.mxu0
        %1696 = vdwg.mxu0
        %v1698 = vsel %vm1523, %v1605, 0
        %v1701 = vsel %vm1523, %v1606, 0
        %v1704 = vsel %vm1523, %v1607, 0
        %1706 = vmatprep.subr.mxu0 0.0
        %1707 = vmatpush1.msra.mxu0 0.0
        %1708 = vmatprep.subr.mxu0 0.0
        %1709 = vmatpush1.msra.mxu0 0.0
        %1710 = vmatprep.subr.mxu0 0.0
        %1711 = vmatpush1.msra.mxu0 0.0
        %1712 = vmatprep.subr.mxu0 0.0
        %1713 = vmatpush1.msra.mxu0 0.0
        %1714 = vmatprep.subr.mxu0 0.0
        %1715 = vmatpush1.msra.mxu0 0.0
        %1716 = vmatprep.subr.mxu0 0.0
        %1717 = vmatpush1.msra.mxu0 0.0
        %1718 = vmatprep.subr.mxu0 0.0
        %1719 = vmatpush1.msra.mxu0 0.0
        %1720 = vmatprep.subr.mxu0 0.0
        %1721 = vmatpush1.msra.mxu0 0.0
        %1722 = vmatprep.subr.mxu0 0.0
        %1723 = vmatpush1.msra.mxu0 0.0
        %1724 = vmatprep.subr.mxu0 0.0
        %1725 = vmatpush1.msra.mxu0 0.0
        %1726 = vmatprep.subr.mxu0 0.0
        %1727 = vmatpush1.msra.mxu0 0.0
        %1728 = vmatprep.subr.mxu0 0.0
        %1729 = vmatpush1.msra.mxu0 0.0
        %1730 = vmatprep.subr.mxu0 0.0
        %1731 = vmatpush1.msra.mxu0 0.0
        %1732 = vmatprep.subr.mxu0 0.0
        %1733 = vmatpush1.msra.mxu0 %v1313
        %1734 = vmatprep.subr.mxu0 0.0
        %1735 = vmatpush1.msra.mxu0 %v1195
        %1736 = vmatprep.subr.mxu0 0.0
        %1737 = vmatpush1.msra.mxu0 %v1077
        %1738 = vmatprep.subr.mxu0 0.0
        %1739 = vmatpush2.msra.mxu0 0.0
        %1740 = vmatprep.subr.mxu0 0.0
        %1741 = vmatpush2.msra.mxu0 0.0
        %1742 = vmatprep.subr.mxu0 0.0
        %1743 = vmatpush2.msra.mxu0 0.0
        %1744 = vmatprep.subr.mxu0 0.0
        %1745 = vmatpush2.msra.mxu0 0.0
        %1746 = vmatprep.subr.mxu0 0.0
        %1747 = vmatpush2.msra.mxu0 0.0
        %1748 = vmatprep.subr.mxu0 0.0
        %1749 = vmatpush2.msra.mxu0 0.0
        %1750 = vmatprep.subr.mxu0 0.0
        %1751 = vmatpush2.msra.mxu0 0.0
        %1752 = vmatprep.subr.mxu0 0.0
        %1753 = vmatpush2.msra.mxu0 0.0
        %1754 = vmatprep.subr.mxu0 0.0
        %1755 = vmatpush2.msra.mxu0 0.0
        %1756 = vmatprep.subr.mxu0 0.0
        %1757 = vmatpush2.msra.mxu0 0.0
        %1758 = vmatprep.subr.mxu0 0.0
        %1759 = vmatpush2.msra.mxu0 0.0
        %1760 = vmatprep.subr.mxu0 0.0
        %1761 = vmatpush2.msra.mxu0 0.0
        %1762 = vmatprep.subr.mxu0 0.0
        %1763 = vmatpush2.msra.mxu0 0.0
        %1764 = vmatprep.subr.mxu0 0.0
        %1765 = vmatpush2.msra.mxu0 0.0
        %1766 = vmatprep.subr.mxu0 0.0
        %1767 = vmatpush2.msra.mxu0 0.0
        %1768 = vmatprep.subr.mxu0 0.0
        %1769 = vmatpush2.msra.mxu0 0.0
        %1770 = vmatprep.mubr.f32.mxu0 0.0
        %1771 = vmatmul.mubr.f32.gmra.mxu0 %v1698
        %v1772 = vpop.f32.mrf.mxu0
        %v1773 = vadd.f32 0.0, %v1772
        %v1774 = vpop.f32.mrf.mxu0
        %1775 = vmatprep.mubr.f32.mxu0 0.0
        %1776 = vmatmul.mubr.f32.gmra.mxu0 %v1701
        %v1777 = vpop.f32.mrf.mxu0
        %v1778 = vadd.f32 0.0, %v1777
        %v1779 = vpop.f32.mrf.mxu0
        %1780 = vmatprep.mubr.f32.mxu0 0.0
        %1781 = vmatmul.mubr.f32.gmra.mxu0 %v1704
        %v1782 = vpop.f32.mrf.mxu0
        %v1783 = vadd.f32 0.0, %v1782
        %v1784 = vpop.f32.mrf.mxu0
        %1785 = vdwg.mxu0
        %v1786 = vcombine.high %v1684, 0.0
        %v1788 = vunpack.c.l.s4 1983009808
        %v1789 = vunpack.c.0.s8 %v1788
        %v1790 = vlaneseq
        %v1791 = vshrl.u32 %v1790, 7
        %v1792 = vsub.s32 %v1789, %v1791
        %v1793 = vrot.slane %v1684, %v1792
        %v1795 = vunpack.c.l.s4 1983009808
        %v1796 = vunpack.c.0.s8 %v1795
        %v1797 = vlaneseq
        %v1798 = vshrl.u32 %v1797, 7
        %v1799 = vsub.s32 %v1796, %v1798
        %v1800 = vrot.slane %v1786, %v1799
        %v1801 = vcombine.high %v1773, 0.0
        %v1803 = vunpack.c.l.s4 1983009808
        %v1804 = vunpack.c.0.s8 %v1803
        %v1805 = vlaneseq
        %v1806 = vshrl.u32 %v1805, 7
        %v1807 = vsub.s32 %v1804, %v1806
        %v1808 = vrot.slane %v1773, %v1807
        %v1810 = vunpack.c.l.s4 1983009808
        %v1811 = vunpack.c.0.s8 %v1810
        %v1812 = vlaneseq
        %v1813 = vshrl.u32 %v1812, 7
        %v1814 = vsub.s32 %v1811, %v1813
        %v1815 = vrot.slane %v1801, %v1814
        %v1816 = vcombine.low %v1793, %v1808
        %v1817 = vcombine.high %v1793, %v1808
        %v1819 = vunpack.c.l.s4 1934713408
        %v1820 = vunpack.c.0.s8 %v1819
        %v1821 = vlaneseq
        %v1822 = vshrl.u32 %v1821, 7
        %v1823 = vsub.s32 %v1820, %v1822
        %v1824 = vrot.slane %v1816, %v1823
        %v1826 = vunpack.c.l.s4 1934713408
        %v1827 = vunpack.c.0.s8 %v1826
        %v1828 = vlaneseq
        %v1829 = vshrl.u32 %v1828, 7
        %v1830 = vsub.s32 %v1827, %v1829
        %v1831 = vrot.slane %v1817, %v1830
        %v1832 = vcombine.low %v1800, %v1815
        %v1833 = vcombine.high %v1800, %v1815
        %v1835 = vunpack.c.l.s4 1934713408
        %v1836 = vunpack.c.0.s8 %v1835
        %v1837 = vlaneseq
        %v1838 = vshrl.u32 %v1837, 7
        %v1839 = vsub.s32 %v1836, %v1838
        %v1840 = vrot.slane %v1832, %v1839
        %v1842 = vunpack.c.l.s4 1934713408
        %v1843 = vunpack.c.0.s8 %v1842
        %v1844 = vlaneseq
        %v1845 = vshrl.u32 %v1844, 7
        %v1846 = vsub.s32 %v1843, %v1845
        %v1847 = vrot.slane %v1833, %v1846
        %v1848 = vcombine.high %v1824, 0.0
        %v1849 = vcombine.high %v1831, 0.0
        %v1850 = vcombine.high %v1840, 0.0
        %v1851 = vcombine.high %v1847, 0.0
        %v1852 = vcombine.high %v1689, 0.0
        %v1854 = vunpack.c.l.s4 1983009808
        %v1855 = vunpack.c.0.s8 %v1854
        %v1856 = vlaneseq
        %v1857 = vshrl.u32 %v1856, 7
        %v1858 = vsub.s32 %v1855, %v1857
        %v1859 = vrot.slane %v1689, %v1858
        %v1861 = vunpack.c.l.s4 1983009808
        %v1862 = vunpack.c.0.s8 %v1861
        %v1863 = vlaneseq
        %v1864 = vshrl.u32 %v1863, 7
        %v1865 = vsub.s32 %v1862, %v1864
        %v1866 = vrot.slane %v1852, %v1865
        %v1867 = vcombine.high %v1778, 0.0
        %v1869 = vunpack.c.l.s4 1983009808
        %v1870 = vunpack.c.0.s8 %v1869
        %v1871 = vlaneseq
        %v1872 = vshrl.u32 %v1871, 7
        %v1873 = vsub.s32 %v1870, %v1872
        %v1874 = vrot.slane %v1778, %v1873
        %v1876 = vunpack.c.l.s4 1983009808
        %v1877 = vunpack.c.0.s8 %v1876
        %v1878 = vlaneseq
        %v1879 = vshrl.u32 %v1878, 7
        %v1880 = vsub.s32 %v1877, %v1879
        %v1881 = vrot.slane %v1867, %v1880
        %v1882 = vcombine.low %v1859, %v1874
        %v1883 = vcombine.high %v1859, %v1874
        %v1885 = vunpack.c.l.s4 1934713408
        %v1886 = vunpack.c.0.s8 %v1885
        %v1887 = vlaneseq
        %v1888 = vshrl.u32 %v1887, 7
        %v1889 = vsub.s32 %v1886, %v1888
        %v1890 = vrot.slane %v1882, %v1889
        %v1892 = vunpack.c.l.s4 1934713408
        %v1893 = vunpack.c.0.s8 %v1892
        %v1894 = vlaneseq
        %v1895 = vshrl.u32 %v1894, 7
        %v1896 = vsub.s32 %v1893, %v1895
        %v1897 = vrot.slane %v1883, %v1896
        %v1898 = vcombine.low %v1866, %v1881
        %v1899 = vcombine.high %v1866, %v1881
        %v1901 = vunpack.c.l.s4 1934713408
        %v1902 = vunpack.c.0.s8 %v1901
        %v1903 = vlaneseq
        %v1904 = vshrl.u32 %v1903, 7
        %v1905 = vsub.s32 %v1902, %v1904
        %v1906 = vrot.slane %v1898, %v1905
        %v1908 = vunpack.c.l.s4 1934713408
        %v1909 = vunpack.c.0.s8 %v1908
        %v1910 = vlaneseq
        %v1911 = vshrl.u32 %v1910, 7
        %v1912 = vsub.s32 %v1909, %v1911
        %v1913 = vrot.slane %v1899, %v1912
        %v1914 = vcombine.high %v1890, 0.0
        %v1915 = vcombine.high %v1897, 0.0
        %v1916 = vcombine.high %v1906, 0.0
        %v1917 = vcombine.high %v1913, 0.0
        %v1918 = vcombine.high %v1694, 0.0
        %v1920 = vunpack.c.l.s4 1983009808
        %v1921 = vunpack.c.0.s8 %v1920
        %v1922 = vlaneseq
        %v1923 = vshrl.u32 %v1922, 7
        %v1924 = vsub.s32 %v1921, %v1923
        %v1925 = vrot.slane %v1694, %v1924
        %v1927 = vunpack.c.l.s4 1983009808
        %v1928 = vunpack.c.0.s8 %v1927
        %v1929 = vlaneseq
        %v1930 = vshrl.u32 %v1929, 7
        %v1931 = vsub.s32 %v1928, %v1930
        %v1932 = vrot.slane %v1918, %v1931
        %v1933 = vcombine.high %v1783, 0.0
        %v1935 = vunpack.c.l.s4 1983009808
        %v1936 = vunpack.c.0.s8 %v1935
        %v1937 = vlaneseq
        %v1938 = vshrl.u32 %v1937, 7
        %v1939 = vsub.s32 %v1936, %v1938
        %v1940 = vrot.slane %v1783, %v1939
        %v1942 = vunpack.c.l.s4 1983009808
        %v1943 = vunpack.c.0.s8 %v1942
        %v1944 = vlaneseq
        %v1945 = vshrl.u32 %v1944, 7
        %v1946 = vsub.s32 %v1943, %v1945
        %v1947 = vrot.slane %v1933, %v1946
        %v1948 = vcombine.low %v1925, %v1940
        %v1949 = vcombine.high %v1925, %v1940
        %v1951 = vunpack.c.l.s4 1934713408
        %v1952 = vunpack.c.0.s8 %v1951
        %v1953 = vlaneseq
        %v1954 = vshrl.u32 %v1953, 7
        %v1955 = vsub.s32 %v1952, %v1954
        %v1956 = vrot.slane %v1948, %v1955
        %v1958 = vunpack.c.l.s4 1934713408
        %v1959 = vunpack.c.0.s8 %v1958
        %v1960 = vlaneseq
        %v1961 = vshrl.u32 %v1960, 7
        %v1962 = vsub.s32 %v1959, %v1961
        %v1963 = vrot.slane %v1949, %v1962
        %v1964 = vcombine.low %v1932, %v1947
        %v1965 = vcombine.high %v1932, %v1947
        %v1967 = vunpack.c.l.s4 1934713408
        %v1968 = vunpack.c.0.s8 %v1967
        %v1969 = vlaneseq
        %v1970 = vshrl.u32 %v1969, 7
        %v1971 = vsub.s32 %v1968, %v1970
        %v1972 = vrot.slane %v1964, %v1971
        %v1974 = vunpack.c.l.s4 1934713408
        %v1975 = vunpack.c.0.s8 %v1974
        %v1976 = vlaneseq
        %v1977 = vshrl.u32 %v1976, 7
        %v1978 = vsub.s32 %v1975, %v1977
        %v1979 = vrot.slane %v1965, %v1978
        %v1980 = vcombine.high %v1956, 0.0
        %v1981 = vcombine.high %v1963, 0.0
        %v1982 = vcombine.high %v1972, 0.0
        %v1983 = vcombine.high %v1979, 0.0
        %v1984 = vcombine.low %v1824, %v1831
        %v1986 = vunpack.c.l.s4 1983009808
        %v1987 = vunpack.c.0.s8 %v1986
        %v1988 = vlaneseq
        %v1989 = vshrl.u32 %v1988, 7
        %v1990 = vsub.s32 %v1987, %v1989
        %v1991 = vrot.slane %v1984, %v1990
        %v1992 = vcombine.low %v1848, %v1849
        %v1994 = vunpack.c.l.s4 1983009808
        %v1995 = vunpack.c.0.s8 %v1994
        %v1996 = vlaneseq
        %v1997 = vshrl.u32 %v1996, 7
        %v1998 = vsub.s32 %v1995, %v1997
        %v1999 = vrot.slane %v1992, %v1998
        %v2000 = vcombine.low %v1840, %v1847
        %v2002 = vunpack.c.l.s4 1983009808
        %v2003 = vunpack.c.0.s8 %v2002
        %v2004 = vlaneseq
        %v2005 = vshrl.u32 %v2004, 7
        %v2006 = vsub.s32 %v2003, %v2005
        %v2007 = vrot.slane %v2000, %v2006
        %v2008 = vcombine.low %v1850, %v1851
        %v2010 = vunpack.c.l.s4 1983009808
        %v2011 = vunpack.c.0.s8 %v2010
        %v2012 = vlaneseq
        %v2013 = vshrl.u32 %v2012, 7
        %v2014 = vsub.s32 %v2011, %v2013
        %v2015 = vrot.slane %v2008, %v2014
        %v2016 = vcombine.low %v1991, %v1999
        %v2018 = vunpack.c.l.s4 1934713408
        %v2019 = vunpack.c.0.s8 %v2018
        %v2020 = vlaneseq
        %v2021 = vshrl.u32 %v2020, 7
        %v2022 = vsub.s32 %v2019, %v2021
        %v2023 = vrot.slane %v2016, %v2022
        %v2024 = vcombine.low %v2007, %v2015
        %v2026 = vunpack.c.l.s4 1934713408
        %v2027 = vunpack.c.0.s8 %v2026
        %v2028 = vlaneseq
        %v2029 = vshrl.u32 %v2028, 7
        %v2030 = vsub.s32 %v2027, %v2029
        %v2031 = vrot.slane %v2024, %v2030
        %v2032 = vcombine.low %v2023, %v2031
        %v2033 = vcombine.high %v2023, %v2031
        %v2034 = vcombine.low %v1890, %v1897
        %v2036 = vunpack.c.l.s4 1983009808
        %v2037 = vunpack.c.0.s8 %v2036
        %v2038 = vlaneseq
        %v2039 = vshrl.u32 %v2038, 7
        %v2040 = vsub.s32 %v2037, %v2039
        %v2041 = vrot.slane %v2034, %v2040
        %v2042 = vcombine.low %v1914, %v1915
        %v2044 = vunpack.c.l.s4 1983009808
        %v2045 = vunpack.c.0.s8 %v2044
        %v2046 = vlaneseq
        %v2047 = vshrl.u32 %v2046, 7
        %v2048 = vsub.s32 %v2045, %v2047
        %v2049 = vrot.slane %v2042, %v2048
        %v2050 = vcombine.low %v1906, %v1913
        %v2052 = vunpack.c.l.s4 1983009808
        %v2053 = vunpack.c.0.s8 %v2052
        %v2054 = vlaneseq
        %v2055 = vshrl.u32 %v2054, 7
        %v2056 = vsub.s32 %v2053, %v2055
        %v2057 = vrot.slane %v2050, %v2056
        %v2058 = vcombine.low %v1916, %v1917
        %v2060 = vunpack.c.l.s4 1983009808
        %v2061 = vunpack.c.0.s8 %v2060
        %v2062 = vlaneseq
        %v2063 = vshrl.u32 %v2062, 7
        %v2064 = vsub.s32 %v2061, %v2063
        %v2065 = vrot.slane %v2058, %v2064
        %v2066 = vcombine.low %v2041, %v2049
        %v2068 = vunpack.c.l.s4 1934713408
        %v2069 = vunpack.c.0.s8 %v2068
        %v2070 = vlaneseq
        %v2071 = vshrl.u32 %v2070, 7
        %v2072 = vsub.s32 %v2069, %v2071
        %v2073 = vrot.slane %v2066, %v2072
        %v2074 = vcombine.low %v2057, %v2065
        %v2076 = vunpack.c.l.s4 1934713408
        %v2077 = vunpack.c.0.s8 %v2076
        %v2078 = vlaneseq
        %v2079 = vshrl.u32 %v2078, 7
        %v2080 = vsub.s32 %v2077, %v2079
        %v2081 = vrot.slane %v2074, %v2080
        %v2082 = vcombine.low %v2073, %v2081
        %v2083 = vcombine.high %v2073, %v2081
        %v2084 = vcombine.low %v1956, %v1963
        %v2086 = vunpack.c.l.s4 1983009808
        %v2087 = vunpack.c.0.s8 %v2086
        %v2088 = vlaneseq
        %v2089 = vshrl.u32 %v2088, 7
        %v2090 = vsub.s32 %v2087, %v2089
        %v2091 = vrot.slane %v2084, %v2090
        %v2092 = vcombine.low %v1980, %v1981
        %v2094 = vunpack.c.l.s4 1983009808
        %v2095 = vunpack.c.0.s8 %v2094
        %v2096 = vlaneseq
        %v2097 = vshrl.u32 %v2096, 7
        %v2098 = vsub.s32 %v2095, %v2097
        %v2099 = vrot.slane %v2092, %v2098
        %v2100 = vcombine.low %v1972, %v1979
        %v2102 = vunpack.c.l.s4 1983009808
        %v2103 = vunpack.c.0.s8 %v2102
        %v2104 = vlaneseq
        %v2105 = vshrl.u32 %v2104, 7
        %v2106 = vsub.s32 %v2103, %v2105
        %v2107 = vrot.slane %v2100, %v2106
        %v2108 = vcombine.low %v1982, %v1983
        %v2110 = vunpack.c.l.s4 1983009808
        %v2111 = vunpack.c.0.s8 %v2110
        %v2112 = vlaneseq
        %v2113 = vshrl.u32 %v2112, 7
        %v2114 = vsub.s32 %v2111, %v2113
        %v2115 = vrot.slane %v2108, %v2114
        %v2116 = vcombine.low %v2091, %v2099
        %v2118 = vunpack.c.l.s4 1934713408
        %v2119 = vunpack.c.0.s8 %v2118
        %v2120 = vlaneseq
        %v2121 = vshrl.u32 %v2120, 7
        %v2122 = vsub.s32 %v2119, %v2121
        %v2123 = vrot.slane %v2116, %v2122
        %v2124 = vcombine.low %v2107, %v2115
        %v2126 = vunpack.c.l.s4 1934713408
        %v2127 = vunpack.c.0.s8 %v2126
        %v2128 = vlaneseq
        %v2129 = vshrl.u32 %v2128, 7
        %v2130 = vsub.s32 %v2127, %v2129
        %v2131 = vrot.slane %v2124, %v2130
        %v2132 = vcombine.low %v2123, %v2131
        %v2133 = vcombine.high %v2123, %v2131
        %2137 = vrot.lane.b32.xlu0 %v2033, 16
        %v2138 = vpop.permute.xlu0 %2137
        %2139 = vrot.lane.b32.xlu0 %v2083, 16
        %v2140 = vpop.permute.xlu0 %2139
        %2141 = vrot.lane.b32.xlu0 %v2133, 16
        %v2142 = vpop.permute.xlu0 %2141
        %v2146 = vsel %vm1314, %v2032, %v2138
        %v2147 = vsel %vm1314, %v2082, %v2140
        %v2148 = vsel %vm1314, %v2132, %v2142
        %v2149 = vld [vmem:[%s2 + $0x8] sm:$0xff]
        %v2150 = vld [vmem:[%s2 + $0x20] sm:$0xff]
        %v2151 = vld [vmem:[%s2 + $0x38] sm:$0xff]
        %v2152 = vld [vmem:[%s2 + $0x50] sm:$0xff]
        %v2154 = vsel %vm357, %v2146, 0
        %v2157 = vsel %vm357, %v2147, 0
        %v2160 = vsel %vm357, %v2148, 0
        %2162 = vmatprep.subr.mxu0 0.0
        %2163 = vmatpush1.msra.mxu0 0.0
        %2164 = vmatprep.subr.mxu0 0.0
        %2165 = vmatpush1.msra.mxu0 0.0
        %2166 = vmatprep.subr.mxu0 0.0
        %2167 = vmatpush1.msra.mxu0 0.0
        %2168 = vmatprep.subr.mxu0 0.0
        %2169 = vmatpush1.msra.mxu0 0.0
        %2170 = vmatprep.subr.mxu0 0.0
        %2171 = vmatpush1.msra.mxu0 0.0
        %2172 = vmatprep.subr.mxu0 0.0
        %2173 = vmatpush1.msra.mxu0 0.0
        %2174 = vmatprep.subr.mxu0 0.0
        %2175 = vmatpush1.msra.mxu0 0.0
        %2176 = vmatprep.subr.mxu0 0.0
        %2177 = vmatpush1.msra.mxu0 0.0
        %2178 = vmatprep.subr.mxu0 0.0
        %2179 = vmatpush1.msra.mxu0 0.0
        %2180 = vmatprep.subr.mxu0 0.0
        %2181 = vmatpush1.msra.mxu0 0.0
        %2182 = vmatprep.subr.mxu0 0.0
        %2183 = vmatpush1.msra.mxu0 0.0
        %2184 = vmatprep.subr.mxu0 0.0
        %2185 = vmatpush1.msra.mxu0 0.0
        %2186 = vmatprep.subr.mxu0 0.0
        %2187 = vmatpush1.msra.mxu0 %v2152
        %2188 = vmatprep.subr.mxu0 0.0
        %2189 = vmatpush1.msra.mxu0 %v2151
        %2190 = vmatprep.subr.mxu0 0.0
        %2191 = vmatpush1.msra.mxu0 %v2150
        %2192 = vmatprep.subr.mxu0 0.0
        %2193 = vmatpush1.msra.mxu0 %v2149
        %2194 = vmatprep.subr.mxu0 0.0
        %2195 = vmatpush2.msra.mxu0 0.0
        %2196 = vmatprep.subr.mxu0 0.0
        %2197 = vmatpush2.msra.mxu0 0.0
        %2198 = vmatprep.subr.mxu0 0.0
        %2199 = vmatpush2.msra.mxu0 0.0
        %2200 = vmatprep.subr.mxu0 0.0
        %2201 = vmatpush2.msra.mxu0 0.0
        %2202 = vmatprep.subr.mxu0 0.0
        %2203 = vmatpush2.msra.mxu0 0.0
        %2204 = vmatprep.subr.mxu0 0.0
        %2205 = vmatpush2.msra.mxu0 0.0
        %2206 = vmatprep.subr.mxu0 0.0
        %2207 = vmatpush2.msra.mxu0 0.0
        %2208 = vmatprep.subr.mxu0 0.0
        %2209 = vmatpush2.msra.mxu0 0.0
        %2210 = vmatprep.subr.mxu0 0.0
        %2211 = vmatpush2.msra.mxu0 0.0
        %2212 = vmatprep.subr.mxu0 0.0
        %2213 = vmatpush2.msra.mxu0 0.0
        %2214 = vmatprep.subr.mxu0 0.0
        %2215 = vmatpush2.msra.mxu0 0.0
        %2216 = vmatprep.subr.mxu0 0.0
        %2217 = vmatpush2.msra.mxu0 0.0
        %2218 = vmatprep.subr.mxu0 0.0
        %2219 = vmatpush2.msra.mxu0 0.0
        %2220 = vmatprep.subr.mxu0 0.0
        %2221 = vmatpush2.msra.mxu0 0.0
        %2222 = vmatprep.subr.mxu0 0.0
        %2223 = vmatpush2.msra.mxu0 0.0
        %2224 = vmatprep.subr.mxu0 0.0
        %2225 = vmatpush2.msra.mxu0 0.0
        %2226 = vmatprep.mubr.f32.mxu0 0.0
        %2227 = vmatmul.mubr.f32.gmra.mxu0 %v2154
        %v2228 = vpop.f32.mrf.mxu0
        %v2229 = vadd.f32 0.0, %v2228
        %v2230 = vpop.f32.mrf.mxu0
        %2231 = vmatprep.mubr.f32.mxu0 0.0
        %2232 = vmatmul.mubr.f32.gmra.mxu0 %v2157
        %v2233 = vpop.f32.mrf.mxu0
        %v2234 = vadd.f32 0.0, %v2233
        %v2235 = vpop.f32.mrf.mxu0
        %2236 = vmatprep.mubr.f32.mxu0 0.0
        %2237 = vmatmul.mubr.f32.gmra.mxu0 %v2160
        %v2238 = vpop.f32.mrf.mxu0
        %v2239 = vadd.f32 0.0, %v2238
        %v2240 = vpop.f32.mrf.mxu0
        %2241 = vdwg.mxu0
        %v2242 = vadd.f32 %v338, %v2229
        %v2243 = vadd.f32 %v343, %v2234
        %v2244 = vadd.f32 %v348, %v2239
        %v2245 = vld [vmem:[%s4 + $0x4] sm:$0x1]
        %v2246 = vlaneseq
        %v2247 = vshrl.u32 %v2246, 7
        %v2248 = vsub.s32 0, %v2247
        %v2249 = vrot.slane %v2245, %v2248
        %v2250 = vadd.f32 %v2242, %v2249
        %v2251 = vadd.f32 %v2243, %v2249
        %v2252 = vadd.f32 %v2244, %v2249
        %v2253 = vld [vmem:[%s4 + $0x2] sm:$0x1]
        %v2254 = vld [vmem:[%s4 + $0x3] sm:$0x1]
        %v2255 = vsel %vm357, %v2250, 0.0
        %2256 = vadd.xlane.f32.xlu0 %v2255
        %v2257 = vpop.xlane.xlu0 %2256
        %v2258 = vsel %vm357, %v2251, 0.0
        %2259 = vadd.xlane.f32.xlu0 %v2258
        %v2260 = vpop.xlane.xlu0 %2259
        %v2261 = vsel %vm357, %v2252, 0.0
        %2262 = vadd.xlane.f32.xlu0 %v2261
        %v2263 = vpop.xlane.xlu0 %2262
        %v2264 = vmul.f32 %v2257, %v367
        %v2265 = vmul.f32 %v2260, %v367
        %v2266 = vmul.f32 %v2263, %v367
        %v2267 = vsub.f32 %v2250, %v2264
        %v2268 = vsub.f32 %v2251, %v2265
        %v2269 = vsub.f32 %v2252, %v2266
        %v2270 = vmul.f32 %v2267, %v2267
        %v2271 = vmul.f32 %v2268, %v2268
        %v2272 = vmul.f32 %v2269, %v2269
        %v2273 = vsel %vm357, %v2270, 0.0
        %2274 = vadd.xlane.f32.xlu0 %v2273
        %v2275 = vpop.xlane.xlu0 %2274
        %v2276 = vsel %vm357, %v2271, 0.0
        %2277 = vadd.xlane.f32.xlu0 %v2276
        %v2278 = vpop.xlane.xlu0 %2277
        %v2279 = vsel %vm357, %v2272, 0.0
        %2280 = vadd.xlane.f32.xlu0 %v2279
        %v2281 = vpop.xlane.xlu0 %2280
        %v2282 = vmul.f32 %v2275, %v367
        %v2283 = vmul.f32 %v2278, %v367
        %v2284 = vmul.f32 %v2281, %v367
        %v2285 = vadd.f32 %v2282, 1e-12
        %v2286 = vadd.f32 %v2283, 1e-12
        %v2287 = vadd.f32 %v2284, 1e-12
        %v2288 = vrsqrt.pop %v2285
        %v2289 = vrsqrt.pop %v2286
        %v2290 = vrsqrt.pop %v2287
        %v2291 = vmul.f32 %v2267, %v2288
        %v2292 = vmul.f32 %v2268, %v2289
        %v2293 = vmul.f32 %v2269, %v2290
        %v2294 = vlaneseq
        %v2295 = vshrl.u32 %v2294, 7
        %v2296 = vsub.s32 0, %v2295
        %v2297 = vrot.slane %v2253, %v2296
        %v2298 = vmul.f32 %v2291, %v2297
        %v2299 = vmul.f32 %v2292, %v2297
        %v2300 = vmul.f32 %v2293, %v2297
        %v2301 = vlaneseq
        %v2302 = vshrl.u32 %v2301, 7
        %v2303 = vsub.s32 0, %v2302
        %v2304 = vrot.slane %v2254, %v2303
        %v2305 = vadd.f32 %v2298, %v2304
        %v2306 = vadd.f32 %v2299, %v2304
        %v2307 = vadd.f32 %v2300, %v2304
        %v2308 = vld [vmem:[%s2 + $0x10] sm:$0xff]
        %v2309 = vld [vmem:[%s2 + $0x28] sm:$0xff]
        %v2310 = vld [vmem:[%s2 + $0x40] sm:$0xff]
        %v2311 = vld [vmem:[%s2 + $0x58] sm:$0xff]
        %v2312 = vld [vmem:[%s4 + $0x7] sm:$0x1]
        %v2313 = vlaneseq
        %v2314 = vshrl.u32 %v2313, 7
        %v2315 = vsub.s32 0, %v2314
        %v2316 = vrot.slane %v2312, %v2315
        %v2318 = vsel %vm357, %v2305, 0
        %v2321 = vsel %vm357, %v2306, 0
        %v2324 = vsel %vm357, %v2307, 0
        %2326 = vmatprep.subr.mxu0 0.0
        %2327 = vmatpush1.msra.mxu0 0.0
        %2328 = vmatprep.subr.mxu0 0.0
        %2329 = vmatpush1.msra.mxu0 0.0
        %2330 = vmatprep.subr.mxu0 0.0
        %2331 = vmatpush1.msra.mxu0 0.0
        %2332 = vmatprep.subr.mxu0 0.0
        %2333 = vmatpush1.msra.mxu0 0.0
        %2334 = vmatprep.subr.mxu0 0.0
        %2335 = vmatpush1.msra.mxu0 0.0
        %2336 = vmatprep.subr.mxu0 0.0
        %2337 = vmatpush1.msra.mxu0 0.0
        %2338 = vmatprep.subr.mxu0 0.0
        %2339 = vmatpush1.msra.mxu0 0.0
        %2340 = vmatprep.subr.mxu0 0.0
        %2341 = vmatpush1.msra.mxu0 0.0
        %2342 = vmatprep.subr.mxu0 0.0
        %2343 = vmatpush1.msra.mxu0 0.0
        %2344 = vmatprep.subr.mxu0 0.0
        %2345 = vmatpush1.msra.mxu0 0.0
        %2346 = vmatprep.subr.mxu0 0.0
        %2347 = vmatpush1.msra.mxu0 0.0
        %2348 = vmatprep.subr.mxu0 0.0
        %2349 = vmatpush1.msra.mxu0 0.0
        %2350 = vmatprep.subr.mxu0 0.0
        %2351 = vmatpush1.msra.mxu0 %v2311
        %2352 = vmatprep.subr.mxu0 0.0
        %2353 = vmatpush1.msra.mxu0 %v2310
        %2354 = vmatprep.subr.mxu0 0.0
        %2355 = vmatpush1.msra.mxu0 %v2309
        %2356 = vmatprep.subr.mxu0 0.0
        %2357 = vmatpush1.msra.mxu0 %v2308
        %2358 = vmatprep.subr.mxu0 0.0
        %2359 = vmatpush2.msra.mxu0 0.0
        %2360 = vmatprep.subr.mxu0 0.0
        %2361 = vmatpush2.msra.mxu0 0.0
        %2362 = vmatprep.subr.mxu0 0.0
        %2363 = vmatpush2.msra.mxu0 0.0
        %2364 = vmatprep.subr.mxu0 0.0
        %2365 = vmatpush2.msra.mxu0 0.0
        %2366 = vmatprep.subr.mxu0 0.0
        %2367 = vmatpush2.msra.mxu0 0.0
        %2368 = vmatprep.subr.mxu0 0.0
        %2369 = vmatpush2.msra.mxu0 0.0
        %2370 = vmatprep.subr.mxu0 0.0
        %2371 = vmatpush2.msra.mxu0 0.0
        %2372 = vmatprep.subr.mxu0 0.0
        %2373 = vmatpush2.msra.mxu0 0.0
        %2374 = vmatprep.subr.mxu0 0.0
        %2375 = vmatpush2.msra.mxu0 0.0
        %2376 = vmatprep.subr.mxu0 0.0
        %2377 = vmatpush2.msra.mxu0 0.0
        %2378 = vmatprep.subr.mxu0 0.0
        %2379 = vmatpush2.msra.mxu0 0.0
        %2380 = vmatprep.subr.mxu0 0.0
        %2381 = vmatpush2.msra.mxu0 0.0
        %2382 = vmatprep.subr.mxu0 0.0
        %2383 = vmatpush2.msra.mxu0 0.0
        %2384 = vmatprep.subr.mxu0 0.0
        %2385 = vmatpush2.msra.mxu0 0.0
        %2386 = vmatprep.subr.mxu0 0.0
        %2387 = vmatpush2.msra.mxu0 0.0
        %2388 = vmatprep.subr.mxu0 0.0
        %2389 = vmatpush2.msra.mxu0 0.0
        %2390 = vmatprep.mubr.f32.mxu0 0.0
        %2391 = vmatmul.mubr.f32.gmra.mxu0 %v2318
        %v2392 = vpop.f32.mrf.mxu0
        %v2393 = vadd.f32 %v2316, %v2392
        %v2394 = vpop.f32.mrf.mxu0
        %2395 = vmatprep.mubr.f32.mxu0 0.0
        %2396 = vmatmul.mubr.f32.gmra.mxu0 %v2321
        %v2397 = vpop.f32.mrf.mxu0
        %v2398 = vadd.f32 %v2316, %v2397
        %v2399 = vpop.f32.mrf.mxu0
        %2400 = vmatprep.mubr.f32.mxu0 0.0
        %2401 = vmatmul.mubr.f32.gmra.mxu0 %v2324
        %v2402 = vpop.f32.mrf.mxu0
        %v2403 = vadd.f32 %v2316, %v2402
        %v2404 = vpop.f32.mrf.mxu0
        %2405 = vdwg.mxu0
        %v2406 = vmul.f32 %v2393, 0.5
        %v2407 = vmul.f32 %v2398, 0.5
        %v2408 = vmul.f32 %v2403, 0.5
        %v2409 = vmul.f32 %v2393, 0.044715
        %v2410 = vmul.f32 %v2398, 0.044715
        %v2411 = vmul.f32 %v2403, 0.044715
        %v2412 = vmul.f32 %v2409, %v2393
        %v2413 = vmul.f32 %v2410, %v2398
        %v2414 = vmul.f32 %v2411, %v2403
        %v2415 = vmul.f32 %v2412, %v2393
        %v2416 = vmul.f32 %v2413, %v2398
        %v2417 = vmul.f32 %v2414, %v2403
        %v2418 = vadd.f32 %v2393, %v2415
        %v2419 = vadd.f32 %v2398, %v2416
        %v2420 = vadd.f32 %v2403, %v2417
        %v2421 = vmul.f32 %v2418, 0.7978846
        %v2422 = vmul.f32 %v2419, 0.7978846
        %v2423 = vmul.f32 %v2420, 0.7978846
        %v2424 = vtanh.pop %v2421
        %v2425 = vtanh.pop %v2422
        %v2426 = vtanh.pop %v2423
        %v2427 = vadd.f32 %v2424, 1.0
        %v2428 = vadd.f32 %v2425, 1.0
        %v2429 = vadd.f32 %v2426, 1.0
        %v2430 = vmul.f32 %v2406, %v2427
        %v2431 = vmul.f32 %v2407, %v2428
        %v2432 = vmul.f32 %v2408, %v2429
        %v2433 = vld [vmem:[%s3] sm:$0xff]
        %v2434 = vld [vmem:[%s3 + $0x8] sm:$0xff]
        %v2435 = vld [vmem:[%s3 + $0x10] sm:$0xff]
        %v2436 = vld [vmem:[%s3 + $0x18] sm:$0xff]
        %v2437 = vld [vmem:[%s3 + $0x20] sm:$0xff]
        %v2438 = vld [vmem:[%s3 + $0x28] sm:$0xff]
        %v2439 = vld [vmem:[%s3 + $0x30] sm:$0xff]
        %v2440 = vld [vmem:[%s3 + $0x38] sm:$0xff]
        %v2441 = vld [vmem:[%s3 + $0x40] sm:$0xff]
        %v2442 = vld [vmem:[%s3 + $0x48] sm:$0xff]
        %v2443 = vld [vmem:[%s3 + $0x50] sm:$0xff]
        %v2444 = vld [vmem:[%s3 + $0x58] sm:$0xff]
        %v2445 = vld [vmem:[%s3 + $0x60] sm:$0xff]
        %v2446 = vld [vmem:[%s3 + $0x68] sm:$0xff]
        %v2447 = vld [vmem:[%s3 + $0x70] sm:$0xff]
        %v2448 = vld [vmem:[%s3 + $0x78] sm:$0xff]
        %2449 = vmatprep.subr.mxu0 0.0
        %2450 = vmatpush1.msra.mxu0 %v2448
        %2451 = vmatprep.subr.mxu0 0.0
        %2452 = vmatpush1.msra.mxu0 %v2447
        %2453 = vmatprep.subr.mxu0 0.0
        %2454 = vmatpush1.msra.mxu0 %v2446
        %2455 = vmatprep.subr.mxu0 0.0
        %2456 = vmatpush1.msra.mxu0 %v2445
        %2457 = vmatprep.subr.mxu0 0.0
        %2458 = vmatpush1.msra.mxu0 %v2444
        %2459 = vmatprep.subr.mxu0 0.0
        %2460 = vmatpush1.msra.mxu0 %v2443
        %2461 = vmatprep.subr.mxu0 0.0
        %2462 = vmatpush1.msra.mxu0 %v2442
        %2463 = vmatprep.subr.mxu0 0.0
        %2464 = vmatpush1.msra.mxu0 %v2441
        %2465 = vmatprep.subr.mxu0 0.0
        %2466 = vmatpush1.msra.mxu0 %v2440
        %2467 = vmatprep.subr.mxu0 0.0
        %2468 = vmatpush1.msra.mxu0 %v2439
        %2469 = vmatprep.subr.mxu0 0.0
        %2470 = vmatpush1.msra.mxu0 %v2438
        %2471 = vmatprep.subr.mxu0 0.0
        %2472 = vmatpush1.msra.mxu0 %v2437
        %2473 = vmatprep.subr.mxu0 0.0
        %2474 = vmatpush1.msra.mxu0 %v2436
        %2475 = vmatprep.subr.mxu0 0.0
        %2476 = vmatpush1.msra.mxu0 %v2435
        %2477 = vmatprep.subr.mxu0 0.0
        %2478 = vmatpush1.msra.mxu0 %v2434
        %2479 = vmatprep.subr.mxu0 0.0
        %2480 = vmatpush1.msra.mxu0 %v2433
        %2481 = vmatprep.subr.mxu0 0.0
        %2482 = vmatpush2.msra.mxu0 0.0
        %2483 = vmatprep.subr.mxu0 0.0
        %2484 = vmatpush2.msra.mxu0 0.0
        %2485 = vmatprep.subr.mxu0 0.0
        %2486 = vmatpush2.msra.mxu0 0.0
        %2487 = vmatprep.subr.mxu0 0.0
        %2488 = vmatpush2.msra.mxu0 0.0
        %2489 = vmatprep.subr.mxu0 0.0
        %2490 = vmatpush2.msra.mxu0 0.0
        %2491 = vmatprep.subr.mxu0 0.0
        %2492 = vmatpush2.msra.mxu0 0.0
        %2493 = vmatprep.subr.mxu0 0.0
        %2494 = vmatpush2.msra.mxu0 0.0
        %2495 = vmatprep.subr.mxu0 0.0
        %2496 = vmatpush2.msra.mxu0 0.0
        %2497 = vmatprep.subr.mxu0 0.0
        %2498 = vmatpush2.msra.mxu0 0.0
        %2499 = vmatprep.subr.mxu0 0.0
        %2500 = vmatpush2.msra.mxu0 0.0
        %2501 = vmatprep.subr.mxu0 0.0
        %2502 = vmatpush2.msra.mxu0 0.0
        %2503 = vmatprep.subr.mxu0 0.0
        %2504 = vmatpush2.msra.mxu0 0.0
        %2505 = vmatprep.subr.mxu0 0.0
        %2506 = vmatpush2.msra.mxu0 0.0
        %2507 = vmatprep.subr.mxu0 0.0
        %2508 = vmatpush2.msra.mxu0 0.0
        %2509 = vmatprep.subr.mxu0 0.0
        %2510 = vmatpush2.msra.mxu0 0.0
        %2511 = vmatprep.subr.mxu0 0.0
        %2512 = vmatpush2.msra.mxu0 0.0
        %2513 = vmatprep.mubr.f32.mxu0 0.0
        %2514 = vmatmul.mubr.f32.gmra.mxu0 %v2430
        %v2515 = vpop.f32.mrf.mxu0
        %v2516 = vadd.f32 0.0, %v2515
        %v2517 = vpop.f32.mrf.mxu0
        %2518 = vmatprep.mubr.f32.mxu0 0.0
        %2519 = vmatmul.mubr.f32.gmra.mxu0 %v2431
        %v2520 = vpop.f32.mrf.mxu0
        %v2521 = vadd.f32 0.0, %v2520
        %v2522 = vpop.f32.mrf.mxu0
        %2523 = vmatprep.mubr.f32.mxu0 0.0
        %2524 = vmatmul.mubr.f32.gmra.mxu0 %v2432
        %v2525 = vpop.f32.mrf.mxu0
        %v2526 = vadd.f32 0.0, %v2525
        %v2527 = vpop.f32.mrf.mxu0
        %2528 = vdwg.mxu0
        %v2529 = vadd.f32 %v2250, %v2516
        %v2530 = vadd.f32 %v2251, %v2521
        %v2531 = vadd.f32 %v2252, %v2526
        %v2532 = vld [vmem:[%s4 + $0x5] sm:$0x1]
        %v2533 = vlaneseq
        %v2534 = vshrl.u32 %v2533, 7
        %v2535 = vsub.s32 0, %v2534
        %v2536 = vrot.slane %v2532, %v2535
        %v2537 = vadd.f32 %v2529, %v2536
        %v2538 = vadd.f32 %v2530, %v2536
        %v2539 = vadd.f32 %v2531, %v2536
        %s2540 = scalar_lea.vmem %s4, 8
        %v2541 = vld [vmem:[%s2540] sm:$0x1]
        %v2542 = vld [vmem:[%s2540 + $0x1] sm:$0x1]
        %v2543 = vsel %vm357, %v2537, 0.0
        %2544 = vadd.xlane.f32.xlu0 %v2543
        %v2545 = vpop.xlane.xlu0 %2544
        %v2546 = vsel %vm357, %v2538, 0.0
        %2547 = vadd.xlane.f32.xlu0 %v2546
        %v2548 = vpop.xlane.xlu0 %2547
        %v2549 = vsel %vm357, %v2539, 0.0
        %2550 = vadd.xlane.f32.xlu0 %v2549
        %v2551 = vpop.xlane.xlu0 %2550
        %v2552 = vmul.f32 %v2545, %v367
        %v2553 = vmul.f32 %v2548, %v367
        %v2554 = vmul.f32 %v2551, %v367
        %v2555 = vsub.f32 %v2537, %v2552
        %v2556 = vsub.f32 %v2538, %v2553
        %v2557 = vsub.f32 %v2539, %v2554
        %v2558 = vmul.f32 %v2555, %v2555
        %v2559 = vmul.f32 %v2556, %v2556
        %v2560 = vmul.f32 %v2557, %v2557
        %v2561 = vsel %vm357, %v2558, 0.0
        %2562 = vadd.xlane.f32.xlu0 %v2561
        %v2563 = vpop.xlane.xlu0 %2562
        %v2564 = vsel %vm357, %v2559, 0.0
        %2565 = vadd.xlane.f32.xlu0 %v2564
        %v2566 = vpop.xlane.xlu0 %2565
        %v2567 = vsel %vm357, %v2560, 0.0
        %2568 = vadd.xlane.f32.xlu0 %v2567
        %v2569 = vpop.xlane.xlu0 %2568
        %v2570 = vmul.f32 %v2563, %v367
        %v2571 = vmul.f32 %v2566, %v367
        %v2572 = vmul.f32 %v2569, %v367
        %v2573 = vadd.f32 %v2570, 1e-12
        %v2574 = vadd.f32 %v2571, 1e-12
        %v2575 = vadd.f32 %v2572, 1e-12
        %v2576 = vrsqrt.pop %v2573
        %v2577 = vrsqrt.pop %v2574
        %v2578 = vrsqrt.pop %v2575
        %v2579 = vmul.f32 %v2555, %v2576
        %v2580 = vmul.f32 %v2556, %v2577
        %v2581 = vmul.f32 %v2557, %v2578
        %v2582 = vlaneseq
        %v2583 = vshrl.u32 %v2582, 7
        %v2584 = vsub.s32 0, %v2583
        %v2585 = vrot.slane %v2541, %v2584
        %v2586 = vmul.f32 %v2579, %v2585
        %v2587 = vmul.f32 %v2580, %v2585
        %v2588 = vmul.f32 %v2581, %v2585
        %v2589 = vlaneseq
        %v2590 = vshrl.u32 %v2589, 7
        %v2591 = vsub.s32 0, %v2590
        %v2592 = vrot.slane %v2542, %v2591
        %v2593 = vadd.f32 %v2586, %v2592
        %v2594 = vadd.f32 %v2587, %v2592
        %v2595 = vadd.f32 %v2588, %v2592
        %s2596 = scalar_lea.vmem %s2, 96
        %v2597 = vld [vmem:[%s2596] sm:$0xff]
        %v2598 = vld [vmem:[%s2596 + $0x18] sm:$0xff]
        %v2599 = vld [vmem:[%s2596 + $0x30] sm:$0xff]
        %v2600 = vld [vmem:[%s2596 + $0x48] sm:$0xff]
        %v2601 = vld [vmem:[%s2540 + $0x6] sm:$0x1]
        %v2602 = vlaneseq
        %v2603 = vshrl.u32 %v2602, 7
        %v2604 = vsub.s32 0, %v2603
        %v2605 = vrot.slane %v2601, %v2604
        %v2607 = vsel %vm357, %v2593, 0
        %v2610 = vsel %vm357, %v2594, 0
        %v2613 = vsel %vm357, %v2595, 0
        %2615 = vmatprep.subr.mxu0 0.0
        %2616 = vmatpush1.msra.mxu0 0.0
        %2617 = vmatprep.subr.mxu0 0.0
        %2618 = vmatpush1.msra.mxu0 0.0
        %2619 = vmatprep.subr.mxu0 0.0
        %2620 = vmatpush1.msra.mxu0 0.0
        %2621 = vmatprep.subr.mxu0 0.0
        %2622 = vmatpush1.msra.mxu0 0.0
        %2623 = vmatprep.subr.mxu0 0.0
        %2624 = vmatpush1.msra.mxu0 0.0
        %2625 = vmatprep.subr.mxu0 0.0
        %2626 = vmatpush1.msra.mxu0 0.0
        %2627 = vmatprep.subr.mxu0 0.0
        %2628 = vmatpush1.msra.mxu0 0.0
        %2629 = vmatprep.subr.mxu0 0.0
        %2630 = vmatpush1.msra.mxu0 0.0
        %2631 = vmatprep.subr.mxu0 0.0
        %2632 = vmatpush1.msra.mxu0 0.0
        %2633 = vmatprep.subr.mxu0 0.0
        %2634 = vmatpush1.msra.mxu0 0.0
        %2635 = vmatprep.subr.mxu0 0.0
        %2636 = vmatpush1.msra.mxu0 0.0
        %2637 = vmatprep.subr.mxu0 0.0
        %2638 = vmatpush1.msra.mxu0 0.0
        %2639 = vmatprep.subr.mxu0 0.0
        %2640 = vmatpush1.msra.mxu0 %v2600
        %2641 = vmatprep.subr.mxu0 0.0
        %2642 = vmatpush1.msra.mxu0 %v2599
        %2643 = vmatprep.subr.mxu0 0.0
        %2644 = vmatpush1.msra.mxu0 %v2598
        %2645 = vmatprep.subr.mxu0 0.0
        %2646 = vmatpush1.msra.mxu0 %v2597
        %2647 = vmatprep.subr.mxu0 0.0
        %2648 = vmatpush2.msra.mxu0 0.0
        %2649 = vmatprep.subr.mxu0 0.0
        %2650 = vmatpush2.msra.mxu0 0.0
        %2651 = vmatprep.subr.mxu0 0.0
        %2652 = vmatpush2.msra.mxu0 0.0
        %2653 = vmatprep.subr.mxu0 0.0
        %2654 = vmatpush2.msra.mxu0 0.0
        %2655 = vmatprep.subr.mxu0 0.0
        %2656 = vmatpush2.msra.mxu0 0.0
        %2657 = vmatprep.subr.mxu0 0.0
        %2658 = vmatpush2.msra.mxu0 0.0
        %2659 = vmatprep.subr.mxu0 0.0
        %2660 = vmatpush2.msra.mxu0 0.0
        %2661 = vmatprep.subr.mxu0 0.0
        %2662 = vmatpush2.msra.mxu0 0.0
        %2663 = vmatprep.subr.mxu0 0.0
        %2664 = vmatpush2.msra.mxu0 0.0
        %2665 = vmatprep.subr.mxu0 0.0
        %2666 = vmatpush2.msra.mxu0 0.0
        %2667 = vmatprep.subr.mxu0 0.0
        %2668 = vmatpush2.msra.mxu0 0.0
        %2669 = vmatprep.subr.mxu0 0.0
        %2670 = vmatpush2.msra.mxu0 0.0
        %2671 = vmatprep.subr.mxu0 0.0
        %2672 = vmatpush2.msra.mxu0 0.0
        %2673 = vmatprep.subr.mxu0 0.0
        %2674 = vmatpush2.msra.mxu0 0.0
        %2675 = vmatprep.subr.mxu0 0.0
        %2676 = vmatpush2.msra.mxu0 0.0
        %2677 = vmatprep.subr.mxu0 0.0
        %2678 = vmatpush2.msra.mxu0 0.0
        %2679 = vmatprep.mubr.f32.mxu0 0.0
        %2680 = vmatmul.mubr.f32.gmra.mxu0 %v2607
        %v2681 = vpop.f32.mrf.mxu0
        %v2682 = vadd.f32 %v2605, %v2681
        %v2683 = vpop.f32.mrf.mxu0
        %2684 = vmatprep.mubr.f32.mxu0 0.0
        %2685 = vmatmul.mubr.f32.gmra.mxu0 %v2610
        %v2686 = vpop.f32.mrf.mxu0
        %v2687 = vadd.f32 %v2605, %v2686
        %v2688 = vpop.f32.mrf.mxu0
        %2689 = vmatprep.mubr.f32.mxu0 0.0
        %2690 = vmatmul.mubr.f32.gmra.mxu0 %v2613
        %v2691 = vpop.f32.mrf.mxu0
        %v2692 = vadd.f32 %v2605, %v2691
        %v2693 = vpop.f32.mrf.mxu0
        %2694 = vdwg.mxu0
        %2698 = vrot.lane.b32.xlu0 %v2682, 112
        %v2699 = vpop.permute.xlu0 %2698
        %2700 = vrot.lane.b32.xlu0 %v2687, 112
        %v2701 = vpop.permute.xlu0 %2700
        %2702 = vrot.lane.b32.xlu0 %v2692, 112
        %v2703 = vpop.permute.xlu0 %2702
        %2707 = vrot.lane.b32.xlu0 %v2682, 96
        %v2708 = vpop.permute.xlu0 %2707
        %2709 = vrot.lane.b32.xlu0 %v2687, 96
        %v2710 = vpop.permute.xlu0 %2709
        %2711 = vrot.lane.b32.xlu0 %v2692, 96
        %v2712 = vpop.permute.xlu0 %2711
        %2716 = vrot.lane.b32.xlu0 %v2682, 80
        %v2717 = vpop.permute.xlu0 %2716
        %2718 = vrot.lane.b32.xlu0 %v2687, 80
        %v2719 = vpop.permute.xlu0 %2718
        %2720 = vrot.lane.b32.xlu0 %v2692, 80
        %v2721 = vpop.permute.xlu0 %2720
        %2725 = vrot.lane.b32.xlu0 %v2682, 64
        %v2726 = vpop.permute.xlu0 %2725
        %2727 = vrot.lane.b32.xlu0 %v2687, 64
        %v2728 = vpop.permute.xlu0 %2727
        %2729 = vrot.lane.b32.xlu0 %v2692, 64
        %v2730 = vpop.permute.xlu0 %2729
        %2734 = vrot.lane.b32.xlu0 %v2682, 48
        %v2735 = vpop.permute.xlu0 %2734
        %2736 = vrot.lane.b32.xlu0 %v2687, 48
        %v2737 = vpop.permute.xlu0 %2736
        %2738 = vrot.lane.b32.xlu0 %v2692, 48
        %v2739 = vpop.permute.xlu0 %2738
        %v2743 = vcombine.low %v2682, %v2708
        %v2744 = vcombine.high %v2682, %v2708
        %v2746 = vunpack.c.l.s4 1983009808
        %v2747 = vunpack.c.0.s8 %v2746
        %v2748 = vlaneseq
        %v2749 = vshrl.u32 %v2748, 7
        %v2750 = vsub.s32 %v2747, %v2749
        %v2751 = vrot.slane %v2743, %v2750
        %v2753 = vunpack.c.l.s4 1983009808
        %v2754 = vunpack.c.0.s8 %v2753
        %v2755 = vlaneseq
        %v2756 = vshrl.u32 %v2755, 7
        %v2757 = vsub.s32 %v2754, %v2756
        %v2758 = vrot.slane %v2744, %v2757
        %v2759 = vcombine.low %v2699, %v2717
        %v2760 = vcombine.high %v2699, %v2717
        %v2762 = vunpack.c.l.s4 1983009808
        %v2763 = vunpack.c.0.s8 %v2762
        %v2764 = vlaneseq
        %v2765 = vshrl.u32 %v2764, 7
        %v2766 = vsub.s32 %v2763, %v2765
        %v2767 = vrot.slane %v2759, %v2766
        %v2769 = vunpack.c.l.s4 1983009808
        %v2770 = vunpack.c.0.s8 %v2769
        %v2771 = vlaneseq
        %v2772 = vshrl.u32 %v2771, 7
        %v2773 = vsub.s32 %v2770, %v2772
        %v2774 = vrot.slane %v2760, %v2773
        %v2775 = vcombine.high %v2726, 0.0
        %v2777 = vunpack.c.l.s4 1983009808
        %v2778 = vunpack.c.0.s8 %v2777
        %v2779 = vlaneseq
        %v2780 = vshrl.u32 %v2779, 7
        %v2781 = vsub.s32 %v2778, %v2780
        %v2782 = vrot.slane %v2726, %v2781
        %v2784 = vunpack.c.l.s4 1983009808
        %v2785 = vunpack.c.0.s8 %v2784
        %v2786 = vlaneseq
        %v2787 = vshrl.u32 %v2786, 7
        %v2788 = vsub.s32 %v2785, %v2787
        %v2789 = vrot.slane %v2775, %v2788
        %v2790 = vcombine.high %v2735, 0.0
        %v2792 = vunpack.c.l.s4 1983009808
        %v2793 = vunpack.c.0.s8 %v2792
        %v2794 = vlaneseq
        %v2795 = vshrl.u32 %v2794, 7
        %v2796 = vsub.s32 %v2793, %v2795
        %v2797 = vrot.slane %v2735, %v2796
        %v2799 = vunpack.c.l.s4 1983009808
        %v2800 = vunpack.c.0.s8 %v2799
        %v2801 = vlaneseq
        %v2802 = vshrl.u32 %v2801, 7
        %v2803 = vsub.s32 %v2800, %v2802
        %v2804 = vrot.slane %v2790, %v2803
        %v2805 = vcombine.low %v2751, %v2767
        %v2806 = vcombine.high %v2751, %v2767
        %v2808 = vunpack.c.l.s4 1934713408
        %v2809 = vunpack.c.0.s8 %v2808
        %v2810 = vlaneseq
        %v2811 = vshrl.u32 %v2810, 7
        %v2812 = vsub.s32 %v2809, %v2811
        %v2813 = vrot.slane %v2805, %v2812
        %v2815 = vunpack.c.l.s4 1934713408
        %v2816 = vunpack.c.0.s8 %v2815
        %v2817 = vlaneseq
        %v2818 = vshrl.u32 %v2817, 7
        %v2819 = vsub.s32 %v2816, %v2818
        %v2820 = vrot.slane %v2806, %v2819
        %v2821 = vcombine.low %v2758, %v2774
        %v2822 = vcombine.high %v2758, %v2774
        %v2824 = vunpack.c.l.s4 1934713408
        %v2825 = vunpack.c.0.s8 %v2824
        %v2826 = vlaneseq
        %v2827 = vshrl.u32 %v2826, 7
        %v2828 = vsub.s32 %v2825, %v2827
        %v2829 = vrot.slane %v2821, %v2828
        %v2831 = vunpack.c.l.s4 1934713408
        %v2832 = vunpack.c.0.s8 %v2831
        %v2833 = vlaneseq
        %v2834 = vshrl.u32 %v2833, 7
        %v2835 = vsub.s32 %v2832, %v2834
        %v2836 = vrot.slane %v2822, %v2835
        %v2837 = vcombine.low %v2782, %v2797
        %v2838 = vcombine.high %v2782, %v2797
        %v2840 = vunpack.c.l.s4 1934713408
        %v2841 = vunpack.c.0.s8 %v2840
        %v2842 = vlaneseq
        %v2843 = vshrl.u32 %v2842, 7
        %v2844 = vsub.s32 %v2841, %v2843
        %v2845 = vrot.slane %v2837, %v2844
        %v2847 = vunpack.c.l.s4 1934713408
        %v2848 = vunpack.c.0.s8 %v2847
        %v2849 = vlaneseq
        %v2850 = vshrl.u32 %v2849, 7
        %v2851 = vsub.s32 %v2848, %v2850
        %v2852 = vrot.slane %v2838, %v2851
        %v2853 = vcombine.low %v2789, %v2804
        %v2854 = vcombine.high %v2789, %v2804
        %v2856 = vunpack.c.l.s4 1934713408
        %v2857 = vunpack.c.0.s8 %v2856
        %v2858 = vlaneseq
        %v2859 = vshrl.u32 %v2858, 7
        %v2860 = vsub.s32 %v2857, %v2859
        %v2861 = vrot.slane %v2853, %v2860
        %v2863 = vunpack.c.l.s4 1934713408
        %v2864 = vunpack.c.0.s8 %v2863
        %v2865 = vlaneseq
        %v2866 = vshrl.u32 %v2865, 7
        %v2867 = vsub.s32 %v2864, %v2866
        %v2868 = vrot.slane %v2854, %v2867
        %v2869 = vcombine.low %v2813, %v2845
        %v2870 = vcombine.high %v2813, %v2845
        %v2871 = vcombine.low %v2820, %v2852
        %v2872 = vcombine.high %v2820, %v2852
        %v2873 = vcombine.low %v2829, %v2861
        %v2874 = vcombine.high %v2829, %v2861
        %v2875 = vcombine.low %v2836, %v2868
        %v2876 = vcombine.high %v2836, %v2868
        %v2877 = vcombine.low %v2687, %v2710
        %v2878 = vcombine.high %v2687, %v2710
        %v2880 = vunpack.c.l.s4 1983009808
        %v2881 = vunpack.c.0.s8 %v2880
        %v2882 = vlaneseq
        %v2883 = vshrl.u32 %v2882, 7
        %v2884 = vsub.s32 %v2881, %v2883
        %v2885 = vrot.slane %v2877, %v2884
        %v2887 = vunpack.c.l.s4 1983009808
        %v2888 = vunpack.c.0.s8 %v2887
        %v2889 = vlaneseq
        %v2890 = vshrl.u32 %v2889, 7
        %v2891 = vsub.s32 %v2888, %v2890
        %v2892 = vrot.slane %v2878, %v2891
        %v2893 = vcombine.low %v2701, %v2719
        %v2894 = vcombine.high %v2701, %v2719
        %v2896 = vunpack.c.l.s4 1983009808
        %v2897 = vunpack.c.0.s8 %v2896
        %v2898 = vlaneseq
        %v2899 = vshrl.u32 %v2898, 7
        %v2900 = vsub.s32 %v2897, %v2899
        %v2901 = vrot.slane %v2893, %v2900
        %v2903 = vunpack.c.l.s4 1983009808
        %v2904 = vunpack.c.0.s8 %v2903
        %v2905 = vlaneseq
        %v2906 = vshrl.u32 %v2905, 7
        %v2907 = vsub.s32 %v2904, %v2906
        %v2908 = vrot.slane %v2894, %v2907
        %v2909 = vcombine.high %v2728, 0.0
        %v2911 = vunpack.c.l.s4 1983009808
        %v2912 = vunpack.c.0.s8 %v2911
        %v2913 = vlaneseq
        %v2914 = vshrl.u32 %v2913, 7
        %v2915 = vsub.s32 %v2912, %v2914
        %v2916 = vrot.slane %v2728, %v2915
        %v2918 = vunpack.c.l.s4 1983009808
        %v2919 = vunpack.c.0.s8 %v2918
        %v2920 = vlaneseq
        %v2921 = vshrl.u32 %v2920, 7
        %v2922 = vsub.s32 %v2919, %v2921
        %v2923 = vrot.slane %v2909, %v2922
        %v2924 = vcombine.high %v2737, 0.0
        %v2926 = vunpack.c.l.s4 1983009808
        %v2927 = vunpack.c.0.s8 %v2926
        %v2928 = vlaneseq
        %v2929 = vshrl.u32 %v2928, 7
        %v2930 = vsub.s32 %v2927, %v2929
        %v2931 = vrot.slane %v2737, %v2930
        %v2933 = vunpack.c.l.s4 1983009808
        %v2934 = vunpack.c.0.s8 %v2933
        %v2935 = vlaneseq
        %v2936 = vshrl.u32 %v2935, 7
        %v2937 = vsub.s32 %v2934, %v2936
        %v2938 = vrot.slane %v2924, %v2937
        %v2939 = vcombine.low %v2885, %v2901
        %v2940 = vcombine.high %v2885, %v2901
        %v2942 = vunpack.c.l.s4 1934713408
        %v2943 = vunpack.c.0.s8 %v2942
        %v2944 = vlaneseq
        %v2945 = vshrl.u32 %v2944, 7
        %v2946 = vsub.s32 %v2943, %v2945
        %v2947 = vrot.slane %v2939, %v2946
        %v2949 = vunpack.c.l.s4 1934713408
        %v2950 = vunpack.c.0.s8 %v2949
        %v2951 = vlaneseq
        %v2952 = vshrl.u32 %v2951, 7
        %v2953 = vsub.s32 %v2950, %v2952
        %v2954 = vrot.slane %v2940, %v2953
        %v2955 = vcombine.low %v2892, %v2908
        %v2956 = vcombine.high %v2892, %v2908
        %v2958 = vunpack.c.l.s4 1934713408
        %v2959 = vunpack.c.0.s8 %v2958
        %v2960 = vlaneseq
        %v2961 = vshrl.u32 %v2960, 7
        %v2962 = vsub.s32 %v2959, %v2961
        %v2963 = vrot.slane %v2955, %v2962
        %v2965 = vunpack.c.l.s4 1934713408
        %v2966 = vunpack.c.0.s8 %v2965
        %v2967 = vlaneseq
        %v2968 = vshrl.u32 %v2967, 7
        %v2969 = vsub.s32 %v2966, %v2968
        %v2970 = vrot.slane %v2956, %v2969
        %v2971 = vcombine.low %v2916, %v2931
        %v2972 = vcombine.high %v2916, %v2931
        %v2974 = vunpack.c.l.s4 1934713408
        %v2975 = vunpack.c.0.s8 %v2974
        %v2976 = vlaneseq
        %v2977 = vshrl.u32 %v2976, 7
        %v2978 = vsub.s32 %v2975, %v2977
        %v2979 = vrot.slane %v2971, %v2978
        %v2981 = vunpack.c.l.s4 1934713408
        %v2982 = vunpack.c.0.s8 %v2981
        %v2983 = vlaneseq
        %v2984 = vshrl.u32 %v2983, 7
        %v2985 = vsub.s32 %v2982, %v2984
        %v2986 = vrot.slane %v2972, %v2985
        %v2987 = vcombine.low %v2923, %v2938
        %v2988 = vcombine.high %v2923, %v2938
        %v2990 = vunpack.c.l.s4 1934713408
        %v2991 = vunpack.c.0.s8 %v2990
        %v2992 = vlaneseq
        %v2993 = vshrl.u32 %v2992, 7
        %v2994 = vsub.s32 %v2991, %v2993
        %v2995 = vrot.slane %v2987, %v2994
        %v2997 = vunpack.c.l.s4 1934713408
        %v2998 = vunpack.c.0.s8 %v2997
        %v2999 = vlaneseq
        %v3000 = vshrl.u32 %v2999, 7
        %v3001 = vsub.s32 %v2998, %v3000
        %v3002 = vrot.slane %v2988, %v3001
        %v3003 = vcombine.low %v2947, %v2979
        %v3004 = vcombine.high %v2947, %v2979
        %v3005 = vcombine.low %v2954, %v2986
        %v3006 = vcombine.high %v2954, %v2986
        %v3007 = vcombine.low %v2963, %v2995
        %v3008 = vcombine.high %v2963, %v2995
        %v3009 = vcombine.low %v2970, %v3002
        %v3010 = vcombine.high %v2970, %v3002
        %v3011 = vcombine.low %v2692, %v2712
        %v3012 = vcombine.high %v2692, %v2712
        %v3014 = vunpack.c.l.s4 1983009808
        %v3015 = vunpack.c.0.s8 %v3014
        %v3016 = vlaneseq
        %v3017 = vshrl.u32 %v3016, 7
        %v3018 = vsub.s32 %v3015, %v3017
        %v3019 = vrot.slane %v3011, %v3018
        %v3021 = vunpack.c.l.s4 1983009808
        %v3022 = vunpack.c.0.s8 %v3021
        %v3023 = vlaneseq
        %v3024 = vshrl.u32 %v3023, 7
        %v3025 = vsub.s32 %v3022, %v3024
        %v3026 = vrot.slane %v3012, %v3025
        %v3027 = vcombine.low %v2703, %v2721
        %v3028 = vcombine.high %v2703, %v2721
        %v3030 = vunpack.c.l.s4 1983009808
        %v3031 = vunpack.c.0.s8 %v3030
        %v3032 = vlaneseq
        %v3033 = vshrl.u32 %v3032, 7
        %v3034 = vsub.s32 %v3031, %v3033
        %v3035 = vrot.slane %v3027, %v3034
        %v3037 = vunpack.c.l.s4 1983009808
        %v3038 = vunpack.c.0.s8 %v3037
        %v3039 = vlaneseq
        %v3040 = vshrl.u32 %v3039, 7
        %v3041 = vsub.s32 %v3038, %v3040
        %v3042 = vrot.slane %v3028, %v3041
        %v3043 = vcombine.high %v2730, 0.0
        %v3045 = vunpack.c.l.s4 1983009808
        %v3046 = vunpack.c.0.s8 %v3045
        %v3047 = vlaneseq
        %v3048 = vshrl.u32 %v3047, 7
        %v3049 = vsub.s32 %v3046, %v3048
        %v3050 = vrot.slane %v2730, %v3049
        %v3052 = vunpack.c.l.s4 1983009808
        %v3053 = vunpack.c.0.s8 %v3052
        %v3054 = vlaneseq
        %v3055 = vshrl.u32 %v3054, 7
        %v3056 = vsub.s32 %v3053, %v3055
        %v3057 = vrot.slane %v3043, %v3056
        %v3058 = vcombine.high %v2739, 0.0
        %v3060 = vunpack.c.l.s4 1983009808
        %v3061 = vunpack.c.0.s8 %v3060
        %v3062 = vlaneseq
        %v3063 = vshrl.u32 %v3062, 7
        %v3064 = vsub.s32 %v3061, %v3063
        %v3065 = vrot.slane %v2739, %v3064
        %v3067 = vunpack.c.l.s4 1983009808
        %v3068 = vunpack.c.0.s8 %v3067
        %v3069 = vlaneseq
        %v3070 = vshrl.u32 %v3069, 7
        %v3071 = vsub.s32 %v3068, %v3070
        %v3072 = vrot.slane %v3058, %v3071
        %v3073 = vcombine.low %v3019, %v3035
        %v3074 = vcombine.high %v3019, %v3035
        %v3076 = vunpack.c.l.s4 1934713408
        %v3077 = vunpack.c.0.s8 %v3076
        %v3078 = vlaneseq
        %v3079 = vshrl.u32 %v3078, 7
        %v3080 = vsub.s32 %v3077, %v3079
        %v3081 = vrot.slane %v3073, %v3080
        %v3083 = vunpack.c.l.s4 1934713408
        %v3084 = vunpack.c.0.s8 %v3083
        %v3085 = vlaneseq
        %v3086 = vshrl.u32 %v3085, 7
        %v3087 = vsub.s32 %v3084, %v3086
        %v3088 = vrot.slane %v3074, %v3087
        %v3089 = vcombine.low %v3026, %v3042
        %v3090 = vcombine.high %v3026, %v3042
        %v3092 = vunpack.c.l.s4 1934713408
        %v3093 = vunpack.c.0.s8 %v3092
        %v3094 = vlaneseq
        %v3095 = vshrl.u32 %v3094, 7
        %v3096 = vsub.s32 %v3093, %v3095
        %v3097 = vrot.slane %v3089, %v3096
        %v3099 = vunpack.c.l.s4 1934713408
        %v3100 = vunpack.c.0.s8 %v3099
        %v3101 = vlaneseq
        %v3102 = vshrl.u32 %v3101, 7
        %v3103 = vsub.s32 %v3100, %v3102
        %v3104 = vrot.slane %v3090, %v3103
        %v3105 = vcombine.low %v3050, %v3065
        %v3106 = vcombine.high %v3050, %v3065
        %v3108 = vunpack.c.l.s4 1934713408
        %v3109 = vunpack.c.0.s8 %v3108
        %v3110 = vlaneseq
        %v3111 = vshrl.u32 %v3110, 7
        %v3112 = vsub.s32 %v3109, %v3111
        %v3113 = vrot.slane %v3105, %v3112
        %v3115 = vunpack.c.l.s4 1934713408
        %v3116 = vunpack.c.0.s8 %v3115
        %v3117 = vlaneseq
        %v3118 = vshrl.u32 %v3117, 7
        %v3119 = vsub.s32 %v3116, %v3118
        %v3120 = vrot.slane %v3106, %v3119
        %v3121 = vcombine.low %v3057, %v3072
        %v3122 = vcombine.high %v3057, %v3072
        %v3124 = vunpack.c.l.s4 1934713408
        %v3125 = vunpack.c.0.s8 %v3124
        %v3126 = vlaneseq
        %v3127 = vshrl.u32 %v3126, 7
        %v3128 = vsub.s32 %v3125, %v3127
        %v3129 = vrot.slane %v3121, %v3128
        %v3131 = vunpack.c.l.s4 1934713408
        %v3132 = vunpack.c.0.s8 %v3131
        %v3133 = vlaneseq
        %v3134 = vshrl.u32 %v3133, 7
        %v3135 = vsub.s32 %v3132, %v3134
        %v3136 = vrot.slane %v3122, %v3135
        %v3137 = vcombine.low %v3081, %v3113
        %v3138 = vcombine.high %v3081, %v3113
        %v3139 = vcombine.low %v3088, %v3120
        %v3140 = vcombine.high %v3088, %v3120
        %v3141 = vcombine.low %v3097, %v3129
        %v3142 = vcombine.high %v3097, %v3129
        %v3143 = vcombine.low %v3104, %v3136
        %v3144 = vcombine.high %v3104, %v3136
        %v3145 = vcombine.low %v2869, %v2871
        %v3146 = vcombine.high %v2869, %v2871
        %v3148 = vunpack.c.l.s4 1983009808
        %v3149 = vunpack.c.0.s8 %v3148
        %v3150 = vlaneseq
        %v3151 = vshrl.u32 %v3150, 7
        %v3152 = vsub.s32 %v3149, %v3151
        %v3153 = vrot.slane %v3145, %v3152
        %v3155 = vunpack.c.l.s4 1983009808
        %v3156 = vunpack.c.0.s8 %v3155
        %v3157 = vlaneseq
        %v3158 = vshrl.u32 %v3157, 7
        %v3159 = vsub.s32 %v3156, %v3158
        %v3160 = vrot.slane %v3146, %v3159
        %v3161 = vcombine.low %v2870, %v2872
        %v3162 = vcombine.high %v2870, %v2872
        %v3164 = vunpack.c.l.s4 1983009808
        %v3165 = vunpack.c.0.s8 %v3164
        %v3166 = vlaneseq
        %v3167 = vshrl.u32 %v3166, 7
        %v3168 = vsub.s32 %v3165, %v3167
        %v3169 = vrot.slane %v3161, %v3168
        %v3171 = vunpack.c.l.s4 1983009808
        %v3172 = vunpack.c.0.s8 %v3171
        %v3173 = vlaneseq
        %v3174 = vshrl.u32 %v3173, 7
        %v3175 = vsub.s32 %v3172, %v3174
        %v3176 = vrot.slane %v3162, %v3175
        %v3177 = vcombine.low %v2873, %v2875
        %v3178 = vcombine.high %v2873, %v2875
        %v3180 = vunpack.c.l.s4 1983009808
        %v3181 = vunpack.c.0.s8 %v3180
        %v3182 = vlaneseq
        %v3183 = vshrl.u32 %v3182, 7
        %v3184 = vsub.s32 %v3181, %v3183
        %v3185 = vrot.slane %v3177, %v3184
        %v3187 = vunpack.c.l.s4 1983009808
        %v3188 = vunpack.c.0.s8 %v3187
        %v3189 = vlaneseq
        %v3190 = vshrl.u32 %v3189, 7
        %v3191 = vsub.s32 %v3188, %v3190
        %v3192 = vrot.slane %v3178, %v3191
        %v3193 = vcombine.low %v2874, %v2876
        %v3194 = vcombine.high %v2874, %v2876
        %v3196 = vunpack.c.l.s4 1983009808
        %v3197 = vunpack.c.0.s8 %v3196
        %v3198 = vlaneseq
        %v3199 = vshrl.u32 %v3198, 7
        %v3200 = vsub.s32 %v3197, %v3199
        %v3201 = vrot.slane %v3193, %v3200
        %v3203 = vunpack.c.l.s4 1983009808
        %v3204 = vunpack.c.0.s8 %v3203
        %v3205 = vlaneseq
        %v3206 = vshrl.u32 %v3205, 7
        %v3207 = vsub.s32 %v3204, %v3206
        %v3208 = vrot.slane %v3194, %v3207
        %v3209 = vcombine.low %v3153, %v3169
        %v3210 = vcombine.high %v3153, %v3169
        %v3212 = vunpack.c.l.s4 1934713408
        %v3213 = vunpack.c.0.s8 %v3212
        %v3214 = vlaneseq
        %v3215 = vshrl.u32 %v3214, 7
        %v3216 = vsub.s32 %v3213, %v3215
        %v3217 = vrot.slane %v3209, %v3216
        %v3219 = vunpack.c.l.s4 1934713408
        %v3220 = vunpack.c.0.s8 %v3219
        %v3221 = vlaneseq
        %v3222 = vshrl.u32 %v3221, 7
        %v3223 = vsub.s32 %v3220, %v3222
        %v3224 = vrot.slane %v3210, %v3223
        %v3225 = vcombine.low %v3160, %v3176
        %v3227 = vunpack.c.l.s4 1934713408
        %v3228 = vunpack.c.0.s8 %v3227
        %v3229 = vlaneseq
        %v3230 = vshrl.u32 %v3229, 7
        %v3231 = vsub.s32 %v3228, %v3230
        %v3232 = vrot.slane %v3225, %v3231
        %v3233 = vcombine.low %v3185, %v3201
        %v3234 = vcombine.high %v3185, %v3201
        %v3236 = vunpack.c.l.s4 1934713408
        %v3237 = vunpack.c.0.s8 %v3236
        %v3238 = vlaneseq
        %v3239 = vshrl.u32 %v3238, 7
        %v3240 = vsub.s32 %v3237, %v3239
        %v3241 = vrot.slane %v3233, %v3240
        %v3243 = vunpack.c.l.s4 1934713408
        %v3244 = vunpack.c.0.s8 %v3243
        %v3245 = vlaneseq
        %v3246 = vshrl.u32 %v3245, 7
        %v3247 = vsub.s32 %v3244, %v3246
        %v3248 = vrot.slane %v3234, %v3247
        %v3249 = vcombine.low %v3192, %v3208
        %v3251 = vunpack.c.l.s4 1934713408
        %v3252 = vunpack.c.0.s8 %v3251
        %v3253 = vlaneseq
        %v3254 = vshrl.u32 %v3253, 7
        %v3255 = vsub.s32 %v3252, %v3254
        %v3256 = vrot.slane %v3249, %v3255
        %v3257 = vcombine.low %v3217, %v3241
        %v3258 = vcombine.high %v3217, %v3241
        %v3259 = vcombine.low %v3224, %v3248
        %v3260 = vcombine.high %v3224, %v3248
        %v3261 = vcombine.low %v3232, %v3256
        %v3262 = vcombine.high %v3232, %v3256
        %v3263 = vcombine.low %v3003, %v3005
        %v3264 = vcombine.high %v3003, %v3005
        %v3266 = vunpack.c.l.s4 1983009808
        %v3267 = vunpack.c.0.s8 %v3266
        %v3268 = vlaneseq
        %v3269 = vshrl.u32 %v3268, 7
        %v3270 = vsub.s32 %v3267, %v3269
        %v3271 = vrot.slane %v3263, %v3270
        %v3273 = vunpack.c.l.s4 1983009808
        %v3274 = vunpack.c.0.s8 %v3273
        %v3275 = vlaneseq
        %v3276 = vshrl.u32 %v3275, 7
        %v3277 = vsub.s32 %v3274, %v3276
        %v3278 = vrot.slane %v3264, %v3277
        %v3279 = vcombine.low %v3004, %v3006
        %v3280 = vcombine.high %v3004, %v3006
        %v3282 = vunpack.c.l.s4 1983009808
        %v3283 = vunpack.c.0.s8 %v3282
        %v3284 = vlaneseq
        %v3285 = vshrl.u32 %v3284, 7
        %v3286 = vsub.s32 %v3283, %v3285
        %v3287 = vrot.slane %v3279, %v3286
        %v3289 = vunpack.c.l.s4 1983009808
        %v3290 = vunpack.c.0.s8 %v3289
        %v3291 = vlaneseq
        %v3292 = vshrl.u32 %v3291, 7
        %v3293 = vsub.s32 %v3290, %v3292
        %v3294 = vrot.slane %v3280, %v3293
        %v3295 = vcombine.low %v3007, %v3009
        %v3296 = vcombine.high %v3007, %v3009
        %v3298 = vunpack.c.l.s4 1983009808
        %v3299 = vunpack.c.0.s8 %v3298
        %v3300 = vlaneseq
        %v3301 = vshrl.u32 %v3300, 7
        %v3302 = vsub.s32 %v3299, %v3301
        %v3303 = vrot.slane %v3295, %v3302
        %v3305 = vunpack.c.l.s4 1983009808
        %v3306 = vunpack.c.0.s8 %v3305
        %v3307 = vlaneseq
        %v3308 = vshrl.u32 %v3307, 7
        %v3309 = vsub.s32 %v3306, %v3308
        %v3310 = vrot.slane %v3296, %v3309
        %v3311 = vcombine.low %v3008, %v3010
        %v3312 = vcombine.high %v3008, %v3010
        %v3314 = vunpack.c.l.s4 1983009808
        %v3315 = vunpack.c.0.s8 %v3314
        %v3316 = vlaneseq
        %v3317 = vshrl.u32 %v3316, 7
        %v3318 = vsub.s32 %v3315, %v3317
        %v3319 = vrot.slane %v3311, %v3318
        %v3321 = vunpack.c.l.s4 1983009808
        %v3322 = vunpack.c.0.s8 %v3321
        %v3323 = vlaneseq
        %v3324 = vshrl.u32 %v3323, 7
        %v3325 = vsub.s32 %v3322, %v3324
        %v3326 = vrot.slane %v3312, %v3325
        %v3327 = vcombine.low %v3271, %v3287
        %v3328 = vcombine.high %v3271, %v3287
        %v3330 = vunpack.c.l.s4 1934713408
        %v3331 = vunpack.c.0.s8 %v3330
        %v3332 = vlaneseq
        %v3333 = vshrl.u32 %v3332, 7
        %v3334 = vsub.s32 %v3331, %v3333
        %v3335 = vrot.slane %v3327, %v3334
        %v3337 = vunpack.c.l.s4 1934713408
        %v3338 = vunpack.c.0.s8 %v3337
        %v3339 = vlaneseq
        %v3340 = vshrl.u32 %v3339, 7
        %v3341 = vsub.s32 %v3338, %v3340
        %v3342 = vrot.slane %v3328, %v3341
        %v3343 = vcombine.low %v3278, %v3294
        %v3345 = vunpack.c.l.s4 1934713408
        %v3346 = vunpack.c.0.s8 %v3345
        %v3347 = vlaneseq
        %v3348 = vshrl.u32 %v3347, 7
        %v3349 = vsub.s32 %v3346, %v3348
        %v3350 = vrot.slane %v3343, %v3349
        %v3351 = vcombine.low %v3303, %v3319
        %v3352 = vcombine.high %v3303, %v3319
        %v3354 = vunpack.c.l.s4 1934713408
        %v3355 = vunpack.c.0.s8 %v3354
        %v3356 = vlaneseq
        %v3357 = vshrl.u32 %v3356, 7
        %v3358 = vsub.s32 %v3355, %v3357
        %v3359 = vrot.slane %v3351, %v3358
        %v3361 = vunpack.c.l.s4 1934713408
        %v3362 = vunpack.c.0.s8 %v3361
        %v3363 = vlaneseq
        %v3364 = vshrl.u32 %v3363, 7
        %v3365 = vsub.s32 %v3362, %v3364
        %v3366 = vrot.slane %v3352, %v3365
        %v3367 = vcombine.low %v3310, %v3326
        %v3369 = vunpack.c.l.s4 1934713408
        %v3370 = vunpack.c.0.s8 %v3369
        %v3371 = vlaneseq
        %v3372 = vshrl.u32 %v3371, 7
        %v3373 = vsub.s32 %v3370, %v3372
        %v3374 = vrot.slane %v3367, %v3373
        %v3375 = vcombine.low %v3335, %v3359
        %v3376 = vcombine.high %v3335, %v3359
        %v3377 = vcombine.low %v3342, %v3366
        %v3378 = vcombine.high %v3342, %v3366
        %v3379 = vcombine.low %v3350, %v3374
        %v3380 = vcombine.high %v3350, %v3374
        %v3381 = vcombine.low %v3137, %v3139
        %v3382 = vcombine.high %v3137, %v3139
        %v3384 = vunpack.c.l.s4 1983009808
        %v3385 = vunpack.c.0.s8 %v3384
        %v3386 = vlaneseq
        %v3387 = vshrl.u32 %v3386, 7
        %v3388 = vsub.s32 %v3385, %v3387
        %v3389 = vrot.slane %v3381, %v3388
        %v3391 = vunpack.c.l.s4 1983009808
        %v3392 = vunpack.c.0.s8 %v3391
        %v3393 = vlaneseq
        %v3394 = vshrl.u32 %v3393, 7
        %v3395 = vsub.s32 %v3392, %v3394
        %v3396 = vrot.slane %v3382, %v3395
        %v3397 = vcombine.low %v3138, %v3140
        %v3398 = vcombine.high %v3138, %v3140
        %v3400 = vunpack.c.l.s4 1983009808
        %v3401 = vunpack.c.0.s8 %v3400
        %v3402 = vlaneseq
        %v3403 = vshrl.u32 %v3402, 7
        %v3404 = vsub.s32 %v3401, %v3403
        %v3405 = vrot.slane %v3397, %v3404
        %v3407 = vunpack.c.l.s4 1983009808
        %v3408 = vunpack.c.0.s8 %v3407
        %v3409 = vlaneseq
        %v3410 = vshrl.u32 %v3409, 7
        %v3411 = vsub.s32 %v3408, %v3410
        %v3412 = vrot.slane %v3398, %v3411
        %v3413 = vcombine.low %v3141, %v3143
        %v3414 = vcombine.high %v3141, %v3143
        %v3416 = vunpack.c.l.s4 1983009808
        %v3417 = vunpack.c.0.s8 %v3416
        %v3418 = vlaneseq
        %v3419 = vshrl.u32 %v3418, 7
        %v3420 = vsub.s32 %v3417, %v3419
        %v3421 = vrot.slane %v3413, %v3420
        %v3423 = vunpack.c.l.s4 1983009808
        %v3424 = vunpack.c.0.s8 %v3423
        %v3425 = vlaneseq
        %v3426 = vshrl.u32 %v3425, 7
        %v3427 = vsub.s32 %v3424, %v3426
        %v3428 = vrot.slane %v3414, %v3427
        %v3429 = vcombine.low %v3142, %v3144
        %v3430 = vcombine.high %v3142, %v3144
        %v3432 = vunpack.c.l.s4 1983009808
        %v3433 = vunpack.c.0.s8 %v3432
        %v3434 = vlaneseq
        %v3435 = vshrl.u32 %v3434, 7
        %v3436 = vsub.s32 %v3433, %v3435
        %v3437 = vrot.slane %v3429, %v3436
        %v3439 = vunpack.c.l.s4 1983009808
        %v3440 = vunpack.c.0.s8 %v3439
        %v3441 = vlaneseq
        %v3442 = vshrl.u32 %v3441, 7
        %v3443 = vsub.s32 %v3440, %v3442
        %v3444 = vrot.slane %v3430, %v3443
        %v3445 = vcombine.low %v3389, %v3405
        %v3446 = vcombine.high %v3389, %v3405
        %v3448 = vunpack.c.l.s4 1934713408
        %v3449 = vunpack.c.0.s8 %v3448
        %v3450 = vlaneseq
        %v3451 = vshrl.u32 %v3450, 7
        %v3452 = vsub.s32 %v3449, %v3451
        %v3453 = vrot.slane %v3445, %v3452
        %v3455 = vunpack.c.l.s4 1934713408
        %v3456 = vunpack.c.0.s8 %v3455
        %v3457 = vlaneseq
        %v3458 = vshrl.u32 %v3457, 7
        %v3459 = vsub.s32 %v3456, %v3458
        %v3460 = vrot.slane %v3446, %v3459
        %v3461 = vcombine.low %v3396, %v3412
        %v3463 = vunpack.c.l.s4 1934713408
        %v3464 = vunpack.c.0.s8 %v3463
        %v3465 = vlaneseq
        %v3466 = vshrl.u32 %v3465, 7
        %v3467 = vsub.s32 %v3464, %v3466
        %v3468 = vrot.slane %v3461, %v3467
        %v3469 = vcombine.low %v3421, %v3437
        %v3470 = vcombine.high %v3421, %v3437
        %v3472 = vunpack.c.l.s4 1934713408
        %v3473 = vunpack.c.0.s8 %v3472
        %v3474 = vlaneseq
        %v3475 = vshrl.u32 %v3474, 7
        %v3476 = vsub.s32 %v3473, %v3475
        %v3477 = vrot.slane %v3469, %v3476
        %v3479 = vunpack.c.l.s4 1934713408
        %v3480 = vunpack.c.0.s8 %v3479
        %v3481 = vlaneseq
        %v3482 = vshrl.u32 %v3481, 7
        %v3483 = vsub.s32 %v3480, %v3482
        %v3484 = vrot.slane %v3470, %v3483
        %v3485 = vcombine.low %v3428, %v3444
        %v3487 = vunpack.c.l.s4 1934713408
        %v3488 = vunpack.c.0.s8 %v3487
        %v3489 = vlaneseq
        %v3490 = vshrl.u32 %v3489, 7
        %v3491 = vsub.s32 %v3488, %v3490
        %v3492 = vrot.slane %v3485, %v3491
        %v3493 = vcombine.low %v3453, %v3477
        %v3494 = vcombine.high %v3453, %v3477
        %v3495 = vcombine.low %v3460, %v3484
        %v3496 = vcombine.high %v3460, %v3484
        %v3497 = vcombine.low %v3468, %v3492
        %v3498 = vcombine.high %v3468, %v3492
        %v3500 = vsel %vm1314, %v3257, 0
        %v3503 = vsel %vm1314, %v3375, 0
        %v3506 = vsel %vm1314, %v3493, 0
        %v3509 = vsel %vm1314, %v3259, 0
        %v3512 = vsel %vm1314, %v3377, 0
        %v3515 = vsel %vm1314, %v3495, 0
        %3517 = vmatprep.subr.mxu0 0.0
        %3518 = vmatpush1.xpose.msra.mxu0 0.0
        %3519 = vmatprep.subr.mxu0 0.0
        %3520 = vmatpush1.xpose.msra.mxu0 0.0
        %3521 = vmatprep.subr.mxu0 0.0
        %3522 = vmatpush1.xpose.msra.mxu0 0.0
        %3523 = vmatprep.subr.mxu0 0.0
        %3524 = vmatpush1.xpose.msra.mxu0 0.0
        %3525 = vmatprep.subr.mxu0 0.0
        %3526 = vmatpush1.xpose.msra.mxu0 0.0
        %3527 = vmatprep.subr.mxu0 0.0
        %3528 = vmatpush1.xpose.msra.mxu0 0.0
        %3529 = vmatprep.subr.mxu0 0.0
        %3530 = vmatpush1.xpose.msra.mxu0 0.0
        %3531 = vmatprep.subr.mxu0 0.0
        %3532 = vmatpush1.xpose.msra.mxu0 0.0
        %3533 = vmatprep.subr.mxu0 0.0
        %3534 = vmatpush1.xpose.msra.mxu0 0.0
        %3535 = vmatprep.subr.mxu0 0.0
        %3536 = vmatpush1.xpose.msra.mxu0 0.0
        %3537 = vmatprep.subr.mxu0 0.0
        %3538 = vmatpush1.xpose.msra.mxu0 0.0
        %3539 = vmatprep.subr.mxu0 0.0
        %3540 = vmatpush1.xpose.msra.mxu0 0.0
        %3541 = vmatprep.subr.mxu0 0.0
        %3542 = vmatpush1.xpose.msra.mxu0 0.0
        %3543 = vmatprep.subr.mxu0 0.0
        %3544 = vmatpush1.xpose.msra.mxu0 %v3515
        %3545 = vmatprep.subr.mxu0 0.0
        %3546 = vmatpush1.xpose.msra.mxu0 %v3512
        %3547 = vmatprep.subr.mxu0 0.0
        %3548 = vmatpush1.xpose.msra.mxu0 %v3509
        %3549 = vmatprep.subr.mxu0 0.0
        %3550 = vmatpush2.xpose.msra.mxu0 0.0
        %3551 = vmatprep.subr.mxu0 0.0
        %3552 = vmatpush2.xpose.msra.mxu0 0.0
        %3553 = vmatprep.subr.mxu0 0.0
        %3554 = vmatpush2.xpose.msra.mxu0 0.0
        %3555 = vmatprep.subr.mxu0 0.0
        %3556 = vmatpush2.xpose.msra.mxu0 0.0
        %3557 = vmatprep.subr.mxu0 0.0
        %3558 = vmatpush2.xpose.msra.mxu0 0.0
        %3559 = vmatprep.subr.mxu0 0.0
        %3560 = vmatpush2.xpose.msra.mxu0 0.0
        %3561 = vmatprep.subr.mxu0 0.0
        %3562 = vmatpush2.xpose.msra.mxu0 0.0
        %3563 = vmatprep.subr.mxu0 0.0
        %3564 = vmatpush2.xpose.msra.mxu0 0.0
        %3565 = vmatprep.subr.mxu0 0.0
        %3566 = vmatpush2.xpose.msra.mxu0 0.0
        %3567 = vmatprep.subr.mxu0 0.0
        %3568 = vmatpush2.xpose.msra.mxu0 0.0
        %3569 = vmatprep.subr.mxu0 0.0
        %3570 = vmatpush2.xpose.msra.mxu0 0.0
        %3571 = vmatprep.subr.mxu0 0.0
        %3572 = vmatpush2.xpose.msra.mxu0 0.0
        %3573 = vmatprep.subr.mxu0 0.0
        %3574 = vmatpush2.xpose.msra.mxu0 0.0
        %3575 = vmatprep.subr.mxu0 0.0
        %3576 = vmatpush2.xpose.msra.mxu0 0.0
        %3577 = vmatprep.subr.mxu0 0.0
        %3578 = vmatpush2.xpose.msra.mxu0 0.0
        %3579 = vmatprep.subr.mxu0 0.0
        %3580 = vmatpush2.xpose.msra.mxu0 0.0
        %3581 = vmatprep.mubr.f32.mxu0 0.0
        %3582 = vmatmul.mubr.f32.gmra.mxu0 %v3500
        %v3583 = vpop.f32.mrf.mxu0
        %v3584 = vadd.f32 0.0, %v3583
        %v3585 = vpop.f32.mrf.mxu0
        %3586 = vmatprep.mubr.f32.mxu0 0.0
        %3587 = vmatmul.mubr.f32.gmra.mxu0 %v3503
        %v3588 = vpop.f32.mrf.mxu0
        %v3589 = vadd.f32 0.0, %v3588
        %v3590 = vpop.f32.mrf.mxu0
        %3591 = vmatprep.mubr.f32.mxu0 0.0
        %3592 = vmatmul.mubr.f32.gmra.mxu0 %v3506
        %v3593 = vpop.f32.mrf.mxu0
        %v3594 = vadd.f32 0.0, %v3593
        %v3595 = vpop.f32.mrf.mxu0
        %3596 = vdwg.mxu0
        %v3598 = vsel %vm1314, %v3258, 0
        %v3601 = vsel %vm1314, %v3376, 0
        %v3604 = vsel %vm1314, %v3494, 0
        %v3607 = vsel %vm1314, %v3260, 0
        %v3610 = vsel %vm1314, %v3378, 0
        %v3613 = vsel %vm1314, %v3496, 0
        %3615 = vmatprep.subr.mxu0 0.0
        %3616 = vmatpush1.xpose.msra.mxu0 0.0
        %3617 = vmatprep.subr.mxu0 0.0
        %3618 = vmatpush1.xpose.msra.mxu0 0.0
        %3619 = vmatprep.subr.mxu0 0.0
        %3620 = vmatpush1.xpose.msra.mxu0 0.0
        %3621 = vmatprep.subr.mxu0 0.0
        %3622 = vmatpush1.xpose.msra.mxu0 0.0
        %3623 = vmatprep.subr.mxu0 0.0
        %3624 = vmatpush1.xpose.msra.mxu0 0.0
        %3625 = vmatprep.subr.mxu0 0.0
        %3626 = vmatpush1.xpose.msra.mxu0 0.0
        %3627 = vmatprep.subr.mxu0 0.0
        %3628 = vmatpush1.xpose.msra.mxu0 0.0
        %3629 = vmatprep.subr.mxu0 0.0
        %3630 = vmatpush1.xpose.msra.mxu0 0.0
        %3631 = vmatprep.subr.mxu0 0.0
        %3632 = vmatpush1.xpose.msra.mxu0 0.0
        %3633 = vmatprep.subr.mxu0 0.0
        %3634 = vmatpush1.xpose.msra.mxu0 0.0
        %3635 = vmatprep.subr.mxu0 0.0
        %3636 = vmatpush1.xpose.msra.mxu0 0.0
        %3637 = vmatprep.subr.mxu0 0.0
        %3638 = vmatpush1.xpose.msra.mxu0 0.0
        %3639 = vmatprep.subr.mxu0 0.0
        %3640 = vmatpush1.xpose.msra.mxu0 0.0
        %3641 = vmatprep.subr.mxu0 0.0
        %3642 = vmatpush1.xpose.msra.mxu0 %v3613
        %3643 = vmatprep.subr.mxu0 0.0
        %3644 = vmatpush1.xpose.msra.mxu0 %v3610
        %3645 = vmatprep.subr.mxu0 0.0
        %3646 = vmatpush1.xpose.msra.mxu0 %v3607
        %3647 = vmatprep.subr.mxu0 0.0
        %3648 = vmatpush2.xpose.msra.mxu0 0.0
        %3649 = vmatprep.subr.mxu0 0.0
        %3650 = vmatpush2.xpose.msra.mxu0 0.0
        %3651 = vmatprep.subr.mxu0 0.0
        %3652 = vmatpush2.xpose.msra.mxu0 0.0
        %3653 = vmatprep.subr.mxu0 0.0
        %3654 = vmatpush2.xpose.msra.mxu0 0.0
        %3655 = vmatprep.subr.mxu0 0.0
        %3656 = vmatpush2.xpose.msra.mxu0 0.0
        %3657 = vmatprep.subr.mxu0 0.0
        %3658 = vmatpush2.xpose.msra.mxu0 0.0
        %3659 = vmatprep.subr.mxu0 0.0
        %3660 = vmatpush2.xpose.msra.mxu0 0.0
        %3661 = vmatprep.subr.mxu0 0.0
        %3662 = vmatpush2.xpose.msra.mxu0 0.0
        %3663 = vmatprep.subr.mxu0 0.0
        %3664 = vmatpush2.xpose.msra.mxu0 0.0
        %3665 = vmatprep.subr.mxu0 0.0
        %3666 = vmatpush2.xpose.msra.mxu0 0.0
        %3667 = vmatprep.subr.mxu0 0.0
        %3668 = vmatpush2.xpose.msra.mxu0 0.0
        %3669 = vmatprep.subr.mxu0 0.0
        %3670 = vmatpush2.xpose.msra.mxu0 0.0
        %3671 = vmatprep.subr.mxu0 0.0
        %3672 = vmatpush2.xpose.msra.mxu0 0.0
        %3673 = vmatprep.subr.mxu0 0.0
        %3674 = vmatpush2.xpose.msra.mxu0 0.0
        %3675 = vmatprep.subr.mxu0 0.0
        %3676 = vmatpush2.xpose.msra.mxu0 0.0
        %3677 = vmatprep.subr.mxu0 0.0
        %3678 = vmatpush2.xpose.msra.mxu0 0.0
        %3679 = vmatprep.mubr.f32.mxu0 0.0
        %3680 = vmatmul.mubr.f32.gmra.mxu0 %v3598
        %v3681 = vpop.f32.mrf.mxu0
        %v3682 = vadd.f32 0.0, %v3681
        %v3683 = vpop.f32.mrf.mxu0
        %3684 = vmatprep.mubr.f32.mxu0 0.0
        %3685 = vmatmul.mubr.f32.gmra.mxu0 %v3601
        %v3686 = vpop.f32.mrf.mxu0
        %v3687 = vadd.f32 0.0, %v3686
        %v3688 = vpop.f32.mrf.mxu0
        %3689 = vmatprep.mubr.f32.mxu0 0.0
        %3690 = vmatmul.mubr.f32.gmra.mxu0 %v3604
        %v3691 = vpop.f32.mrf.mxu0
        %v3692 = vadd.f32 0.0, %v3691
        %v3693 = vpop.f32.mrf.mxu0
        %3694 = vdwg.mxu0
        %v3695 = vmul.f32 %v3584, 0.25
        %v3696 = vmul.f32 %v3589, 0.25
        %v3697 = vmul.f32 %v3594, 0.25
        %v3698 = vmul.f32 %v3682, 0.25
        %v3699 = vmul.f32 %v3687, 0.25
        %v3700 = vmul.f32 %v3692, 0.25
        %v3701 = vadd.f32 %v3695, %v354
        %v3702 = vadd.f32 %v3696, %v354
        %v3703 = vadd.f32 %v3697, %v354
        %v3704 = vadd.f32 %v3698, %v354
        %v3705 = vadd.f32 %v3699, %v354
        %v3706 = vadd.f32 %v3700, %v354
        %v3707 = vsel %vm1523, %v3701, -inf
        %3708 = vmax.xlane.f32.xlu0 %v3707
        %v3709 = vpop.xlane.xlu0 %3708
        %v3710 = vsel %vm1523, %v3702, -inf
        %3711 = vmax.xlane.f32.xlu0 %v3710
        %v3712 = vpop.xlane.xlu0 %3711
        %v3713 = vsel %vm1523, %v3703, -inf
        %3714 = vmax.xlane.f32.xlu0 %v3713
        %v3715 = vpop.xlane.xlu0 %3714
        %v3716 = vsel %vm1523, %v3704, -inf
        %3717 = vmax.xlane.f32.xlu0 %v3716
        %v3718 = vpop.xlane.xlu0 %3717
        %v3719 = vsel %vm1523, %v3705, -inf
        %3720 = vmax.xlane.f32.xlu0 %v3719
        %v3721 = vpop.xlane.xlu0 %3720
        %v3722 = vsel %vm1523, %v3706, -inf
        %3723 = vmax.xlane.f32.xlu0 %v3722
        %v3724 = vpop.xlane.xlu0 %3723
        %v3725 = vsub.f32 %v3701, %v3709
        %v3726 = vsub.f32 %v3702, %v3712
        %v3727 = vsub.f32 %v3703, %v3715
        %v3728 = vsub.f32 %v3704, %v3718
        %v3729 = vsub.f32 %v3705, %v3721
        %v3730 = vsub.f32 %v3706, %v3724
        %v3731 = vmul.f32 %v3725, 1.442695
        %v3732 = vpow.pop %v3731
        %v3733 = vmul.f32 %v3726, 1.442695
        %v3734 = vpow.pop %v3733
        %v3735 = vmul.f32 %v3727, 1.442695
        %v3736 = vpow.pop %v3735
        %v3737 = vmul.f32 %v3728, 1.442695
        %v3738 = vpow.pop %v3737
        %v3739 = vmul.f32 %v3729, 1.442695
        %v3740 = vpow.pop %v3739
        %v3741 = vmul.f32 %v3730, 1.442695
        %v3742 = vpow.pop %v3741
        %v3743 = vsel %vm1523, %v3732, 0.0
        %3744 = vadd.xlane.f32.xlu0 %v3743
        %v3745 = vpop.xlane.xlu0 %3744
        %v3746 = vsel %vm1523, %v3734, 0.0
        %3747 = vadd.xlane.f32.xlu0 %v3746
        %v3748 = vpop.xlane.xlu0 %3747
        %v3749 = vsel %vm1523, %v3736, 0.0
        %3750 = vadd.xlane.f32.xlu0 %v3749
        %v3751 = vpop.xlane.xlu0 %3750
        %v3752 = vsel %vm1523, %v3738, 0.0
        %3753 = vadd.xlane.f32.xlu0 %v3752
        %v3754 = vpop.xlane.xlu0 %3753
        %v3755 = vsel %vm1523, %v3740, 0.0
        %3756 = vadd.xlane.f32.xlu0 %v3755
        %v3757 = vpop.xlane.xlu0 %3756
        %v3758 = vsel %vm1523, %v3742, 0.0
        %3759 = vadd.xlane.f32.xlu0 %v3758
        %v3760 = vpop.xlane.xlu0 %3759
        %v3761 = vrcp.pop %v3745
        %v3762 = vrcp.pop %v3748
        %v3763 = vrcp.pop %v3751
        %v3764 = vrcp.pop %v3754
        %v3765 = vrcp.pop %v3757
        %v3766 = vrcp.pop %v3760
        %v3767 = vmul.f32 %v3745, %v3761
        %v3768 = vmul.f32 %v3748, %v3762
        %v3769 = vmul.f32 %v3751, %v3763
        %v3770 = vmul.f32 %v3754, %v3764
        %v3771 = vmul.f32 %v3757, %v3765
        %v3772 = vmul.f32 %v3760, %v3766
        %v3773 = vsub.f32 2.0, %v3767
        %v3774 = vsub.f32 2.0, %v3768
        %v3775 = vsub.f32 2.0, %v3769
        %v3776 = vsub.f32 2.0, %v3770
        %v3777 = vsub.f32 2.0, %v3771
        %v3778 = vsub.f32 2.0, %v3772
        %v3779 = vmul.f32 %v3761, %v3773
        %v3780 = vmul.f32 %v3762, %v3774
        %v3781 = vmul.f32 %v3763, %v3775
        %v3782 = vmul.f32 %v3764, %v3776
        %v3783 = vmul.f32 %v3765, %v3777
        %v3784 = vmul.f32 %v3766, %v3778
        %v3785 = vmul.f32 %v3732, %v3779
        %v3786 = vmul.f32 %v3734, %v3780
        %v3787 = vmul.f32 %v3736, %v3781
        %v3788 = vmul.f32 %v3738, %v3782
        %v3789 = vmul.f32 %v3740, %v3783
        %v3790 = vmul.f32 %v3742, %v3784
        %v3792 = vsel %vm1523, %v3785, 0
        %v3795 = vsel %vm1523, %v3786, 0
        %v3798 = vsel %vm1523, %v3787, 0
        %3800 = vmatprep.subr.mxu0 0.0
        %3801 = vmatpush1.msra.mxu0 0.0
        %3802 = vmatprep.subr.mxu0 0.0
        %3803 = vmatpush1.msra.mxu0 0.0
        %3804 = vmatprep.subr.mxu0 0.0
        %3805 = vmatpush1.msra.mxu0 0.0
        %3806 = vmatprep.subr.mxu0 0.0
        %3807 = vmatpush1.msra.mxu0 0.0
        %3808 = vmatprep.subr.mxu0 0.0
        %3809 = vmatpush1.msra.mxu0 0.0
        %3810 = vmatprep.subr.mxu0 0.0
        %3811 = vmatpush1.msra.mxu0 0.0
        %3812 = vmatprep.subr.mxu0 0.0
        %3813 = vmatpush1.msra.mxu0 0.0
        %3814 = vmatprep.subr.mxu0 0.0
        %3815 = vmatpush1.msra.mxu0 0.0
        %3816 = vmatprep.subr.mxu0 0.0
        %3817 = vmatpush1.msra.mxu0 0.0
        %3818 = vmatprep.subr.mxu0 0.0
        %3819 = vmatpush1.msra.mxu0 0.0
        %3820 = vmatprep.subr.mxu0 0.0
        %3821 = vmatpush1.msra.mxu0 0.0
        %3822 = vmatprep.subr.mxu0 0.0
        %3823 = vmatpush1.msra.mxu0 0.0
        %3824 = vmatprep.subr.mxu0 0.0
        %3825 = vmatpush1.msra.mxu0 0.0
        %3826 = vmatprep.subr.mxu0 0.0
        %3827 = vmatpush1.msra.mxu0 %v3497
        %3828 = vmatprep.subr.mxu0 0.0
        %3829 = vmatpush1.msra.mxu0 %v3379
        %3830 = vmatprep.subr.mxu0 0.0
        %3831 = vmatpush1.msra.mxu0 %v3261
        %3832 = vmatprep.subr.mxu0 0.0
        %3833 = vmatpush2.msra.mxu0 0.0
        %3834 = vmatprep.subr.mxu0 0.0
        %3835 = vmatpush2.msra.mxu0 0.0
        %3836 = vmatprep.subr.mxu0 0.0
        %3837 = vmatpush2.msra.mxu0 0.0
        %3838 = vmatprep.subr.mxu0 0.0
        %3839 = vmatpush2.msra.mxu0 0.0
        %3840 = vmatprep.subr.mxu0 0.0
        %3841 = vmatpush2.msra.mxu0 0.0
        %3842 = vmatprep.subr.mxu0 0.0
        %3843 = vmatpush2.msra.mxu0 0.0
        %3844 = vmatprep.subr.mxu0 0.0
        %3845 = vmatpush2.msra.mxu0 0.0
        %3846 = vmatprep.subr.mxu0 0.0
        %3847 = vmatpush2.msra.mxu0 0.0
        %3848 = vmatprep.subr.mxu0 0.0
        %3849 = vmatpush2.msra.mxu0 0.0
        %3850 = vmatprep.subr.mxu0 0.0
        %3851 = vmatpush2.msra.mxu0 0.0
        %3852 = vmatprep.subr.mxu0 0.0
        %3853 = vmatpush2.msra.mxu0 0.0
        %3854 = vmatprep.subr.mxu0 0.0
        %3855 = vmatpush2.msra.mxu0 0.0
        %3856 = vmatprep.subr.mxu0 0.0
        %3857 = vmatpush2.msra.mxu0 0.0
        %3858 = vmatprep.subr.mxu0 0.0
        %3859 = vmatpush2.msra.mxu0 0.0
        %3860 = vmatprep.subr.mxu0 0.0
        %3861 = vmatpush2.msra.mxu0 0.0
        %3862 = vmatprep.subr.mxu0 0.0
        %3863 = vmatpush2.msra.mxu0 0.0
        %3864 = vmatprep.mubr.f32.mxu0 0.0
        %3865 = vmatmul.mubr.f32.gmra.mxu0 %v3792
        %v3866 = vpop.f32.mrf.mxu0
        %v3867 = vadd.f32 0.0, %v3866
        %v3868 = vpop.f32.mrf.mxu0
        %3869 = vmatprep.mubr.f32.mxu0 0.0
        %3870 = vmatmul.mubr.f32.gmra.mxu0 %v3795
        %v3871 = vpop.f32.mrf.mxu0
        %v3872 = vadd.f32 0.0, %v3871
        %v3873 = vpop.f32.mrf.mxu0
        %3874 = vmatprep.mubr.f32.mxu0 0.0
        %3875 = vmatmul.mubr.f32.gmra.mxu0 %v3798
        %v3876 = vpop.f32.mrf.mxu0
        %v3877 = vadd.f32 0.0, %v3876
        %v3878 = vpop.f32.mrf.mxu0
        %3879 = vdwg.mxu0
        %v3881 = vsel %vm1523, %v3788, 0
        %v3884 = vsel %vm1523, %v3789, 0
        %v3887 = vsel %vm1523, %v3790, 0
        %3889 = vmatprep.subr.mxu0 0.0
        %3890 = vmatpush1.msra.mxu0 0.0
        %3891 = vmatprep.subr.mxu0 0.0
        %3892 = vmatpush1.msra.mxu0 0.0
        %3893 = vmatprep.subr.mxu0 0.0
        %3894 = vmatpush1.msra.mxu0 0.0
        %3895 = vmatprep.subr.mxu0 0.0
        %3896 = vmatpush1.msra.mxu0 0.0
        %3897 = vmatprep.subr.mxu0 0.0
        %3898 = vmatpush1.msra.mxu0 0.0
        %3899 = vmatprep.subr.mxu0 0.0
        %3900 = vmatpush1.msra.mxu0 0.0
        %3901 = vmatprep.subr.mxu0 0.0
        %3902 = vmatpush1.msra.mxu0 0.0
        %3903 = vmatprep.subr.mxu0 0.0
        %3904 = vmatpush1.msra.mxu0 0.0
        %3905 = vmatprep.subr.mxu0 0.0
        %3906 = vmatpush1.msra.mxu0 0.0
        %3907 = vmatprep.subr.mxu0 0.0
        %3908 = vmatpush1.msra.mxu0 0.0
        %3909 = vmatprep.subr.mxu0 0.0
        %3910 = vmatpush1.msra.mxu0 0.0
        %3911 = vmatprep.subr.mxu0 0.0
        %3912 = vmatpush1.msra.mxu0 0.0
        %3913 = vmatprep.subr.mxu0 0.0
        %3914 = vmatpush1.msra.mxu0 0.0
        %3915 = vmatprep.subr.mxu0 0.0
        %3916 = vmatpush1.msra.mxu0 %v3498
        %3917 = vmatprep.subr.mxu0 0.0
        %3918 = vmatpush1.msra.mxu0 %v3380
        %3919 = vmatprep.subr.mxu0 0.0
        %3920 = vmatpush1.msra.mxu0 %v3262
        %3921 = vmatprep.subr.mxu0 0.0
        %3922 = vmatpush2.msra.mxu0 0.0
        %3923 = vmatprep.subr.mxu0 0.0
        %3924 = vmatpush2.msra.mxu0 0.0
        %3925 = vmatprep.subr.mxu0 0.0
        %3926 = vmatpush2.msra.mxu0 0.0
        %3927 = vmatprep.subr.mxu0 0.0
        %3928 = vmatpush2.msra.mxu0 0.0
        %3929 = vmatprep.subr.mxu0 0.0
        %3930 = vmatpush2.msra.mxu0 0.0
        %3931 = vmatprep.subr.mxu0 0.0
        %3932 = vmatpush2.msra.mxu0 0.0
        %3933 = vmatprep.subr.mxu0 0.0
        %3934 = vmatpush2.msra.mxu0 0.0
        %3935 = vmatprep.subr.mxu0 0.0
        %3936 = vmatpush2.msra.mxu0 0.0
        %3937 = vmatprep.subr.mxu0 0.0
        %3938 = vmatpush2.msra.mxu0 0.0
        %3939 = vmatprep.subr.mxu0 0.0
        %3940 = vmatpush2.msra.mxu0 0.0
        %3941 = vmatprep.subr.mxu0 0.0
        %3942 = vmatpush2.msra.mxu0 0.0
        %3943 = vmatprep.subr.mxu0 0.0
        %3944 = vmatpush2.msra.mxu0 0.0
        %3945 = vmatprep.subr.mxu0 0.0
        %3946 = vmatpush2.msra.mxu0 0.0
        %3947 = vmatprep.subr.mxu0 0.0
        %3948 = vmatpush2.msra.mxu0 0.0
        %3949 = vmatprep.subr.mxu0 0.0
        %3950 = vmatpush2.msra.mxu0 0.0
        %3951 = vmatprep.subr.mxu0 0.0
        %3952 = vmatpush2.msra.mxu0 0.0
        %3953 = vmatprep.mubr.f32.mxu0 0.0
        %3954 = vmatmul.mubr.f32.gmra.mxu0 %v3881
        %v3955 = vpop.f32.mrf.mxu0
        %v3956 = vadd.f32 0.0, %v3955
        %v3957 = vpop.f32.mrf.mxu0
        %3958 = vmatprep.mubr.f32.mxu0 0.0
        %3959 = vmatmul.mubr.f32.gmra.mxu0 %v3884
        %v3960 = vpop.f32.mrf.mxu0
        %v3961 = vadd.f32 0.0, %v3960
        %v3962 = vpop.f32.mrf.mxu0
        %3963 = vmatprep.mubr.f32.mxu0 0.0
        %3964 = vmatmul.mubr.f32.gmra.mxu0 %v3887
        %v3965 = vpop.f32.mrf.mxu0
        %v3966 = vadd.f32 0.0, %v3965
        %v3967 = vpop.f32.mrf.mxu0
        %3968 = vdwg.mxu0
        %v3969 = vcombine.high %v3867, 0.0
        %v3971 = vunpack.c.l.s4 1983009808
        %v3972 = vunpack.c.0.s8 %v3971
        %v3973 = vlaneseq
        %v3974 = vshrl.u32 %v3973, 7
        %v3975 = vsub.s32 %v3972, %v3974
        %v3976 = vrot.slane %v3867, %v3975
        %v3978 = vunpack.c.l.s4 1983009808
        %v3979 = vunpack.c.0.s8 %v3978
        %v3980 = vlaneseq
        %v3981 = vshrl.u32 %v3980, 7
        %v3982 = vsub.s32 %v3979, %v3981
        %v3983 = vrot.slane %v3969, %v3982
        %v3984 = vcombine.high %v3956, 0.0
        %v3986 = vunpack.c.l.s4 1983009808
        %v3987 = vunpack.c.0.s8 %v3986
        %v3988 = vlaneseq
        %v3989 = vshrl.u32 %v3988, 7
        %v3990 = vsub.s32 %v3987, %v3989
        %v3991 = vrot.slane %v3956, %v3990
        %v3993 = vunpack.c.l.s4 1983009808
        %v3994 = vunpack.c.0.s8 %v3993
        %v3995 = vlaneseq
        %v3996 = vshrl.u32 %v3995, 7
        %v3997 = vsub.s32 %v3994, %v3996
        %v3998 = vrot.slane %v3984, %v3997
        %v3999 = vcombine.low %v3976, %v3991
        %v4000 = vcombine.high %v3976, %v3991
        %v4002 = vunpack.c.l.s4 1934713408
        %v4003 = vunpack.c.0.s8 %v4002
        %v4004 = vlaneseq
        %v4005 = vshrl.u32 %v4004, 7
        %v4006 = vsub.s32 %v4003, %v4005
        %v4007 = vrot.slane %v3999, %v4006
        %v4009 = vunpack.c.l.s4 1934713408
        %v4010 = vunpack.c.0.s8 %v4009
        %v4011 = vlaneseq
        %v4012 = vshrl.u32 %v4011, 7
        %v4013 = vsub.s32 %v4010, %v4012
        %v4014 = vrot.slane %v4000, %v4013
        %v4015 = vcombine.low %v3983, %v3998
        %v4016 = vcombine.high %v3983, %v3998
        %v4018 = vunpack.c.l.s4 1934713408
        %v4019 = vunpack.c.0.s8 %v4018
        %v4020 = vlaneseq
        %v4021 = vshrl.u32 %v4020, 7
        %v4022 = vsub.s32 %v4019, %v4021
        %v4023 = vrot.slane %v4015, %v4022
        %v4025 = vunpack.c.l.s4 1934713408
        %v4026 = vunpack.c.0.s8 %v4025
        %v4027 = vlaneseq
        %v4028 = vshrl.u32 %v4027, 7
        %v4029 = vsub.s32 %v4026, %v4028
        %v4030 = vrot.slane %v4016, %v4029
        %v4031 = vcombine.high %v4007, 0.0
        %v4032 = vcombine.high %v4014, 0.0
        %v4033 = vcombine.high %v4023, 0.0
        %v4034 = vcombine.high %v4030, 0.0
        %v4035 = vcombine.high %v3872, 0.0
        %v4037 = vunpack.c.l.s4 1983009808
        %v4038 = vunpack.c.0.s8 %v4037
        %v4039 = vlaneseq
        %v4040 = vshrl.u32 %v4039, 7
        %v4041 = vsub.s32 %v4038, %v4040
        %v4042 = vrot.slane %v3872, %v4041
        %v4044 = vunpack.c.l.s4 1983009808
        %v4045 = vunpack.c.0.s8 %v4044
        %v4046 = vlaneseq
        %v4047 = vshrl.u32 %v4046, 7
        %v4048 = vsub.s32 %v4045, %v4047
        %v4049 = vrot.slane %v4035, %v4048
        %v4050 = vcombine.high %v3961, 0.0
        %v4052 = vunpack.c.l.s4 1983009808
        %v4053 = vunpack.c.0.s8 %v4052
        %v4054 = vlaneseq
        %v4055 = vshrl.u32 %v4054, 7
        %v4056 = vsub.s32 %v4053, %v4055
        %v4057 = vrot.slane %v3961, %v4056
        %v4059 = vunpack.c.l.s4 1983009808
        %v4060 = vunpack.c.0.s8 %v4059
        %v4061 = vlaneseq
        %v4062 = vshrl.u32 %v4061, 7
        %v4063 = vsub.s32 %v4060, %v4062
        %v4064 = vrot.slane %v4050, %v4063
        %v4065 = vcombine.low %v4042, %v4057
        %v4066 = vcombine.high %v4042, %v4057
        %v4068 = vunpack.c.l.s4 1934713408
        %v4069 = vunpack.c.0.s8 %v4068
        %v4070 = vlaneseq
        %v4071 = vshrl.u32 %v4070, 7
        %v4072 = vsub.s32 %v4069, %v4071
        %v4073 = vrot.slane %v4065, %v4072
        %v4075 = vunpack.c.l.s4 1934713408
        %v4076 = vunpack.c.0.s8 %v4075
        %v4077 = vlaneseq
        %v4078 = vshrl.u32 %v4077, 7
        %v4079 = vsub.s32 %v4076, %v4078
        %v4080 = vrot.slane %v4066, %v4079
        %v4081 = vcombine.low %v4049, %v4064
        %v4082 = vcombine.high %v4049, %v4064
        %v4084 = vunpack.c.l.s4 1934713408
        %v4085 = vunpack.c.0.s8 %v4084
        %v4086 = vlaneseq
        %v4087 = vshrl.u32 %v4086, 7
        %v4088 = vsub.s32 %v4085, %v4087
        %v4089 = vrot.slane %v4081, %v4088
        %v4091 = vunpack.c.l.s4 1934713408
        %v4092 = vunpack.c.0.s8 %v4091
        %v4093 = vlaneseq
        %v4094 = vshrl.u32 %v4093, 7
        %v4095 = vsub.s32 %v4092, %v4094
        %v4096 = vrot.slane %v4082, %v4095
        %v4097 = vcombine.high %v4073, 0.0
        %v4098 = vcombine.high %v4080, 0.0
        %v4099 = vcombine.high %v4089, 0.0
        %v4100 = vcombine.high %v4096, 0.0
        %v4101 = vcombine.high %v3877, 0.0
        %v4103 = vunpack.c.l.s4 1983009808
        %v4104 = vunpack.c.0.s8 %v4103
        %v4105 = vlaneseq
        %v4106 = vshrl.u32 %v4105, 7
        %v4107 = vsub.s32 %v4104, %v4106
        %v4108 = vrot.slane %v3877, %v4107
        %v4110 = vunpack.c.l.s4 1983009808
        %v4111 = vunpack.c.0.s8 %v4110
        %v4112 = vlaneseq
        %v4113 = vshrl.u32 %v4112, 7
        %v4114 = vsub.s32 %v4111, %v4113
        %v4115 = vrot.slane %v4101, %v4114
        %v4116 = vcombine.high %v3966, 0.0
        %v4118 = vunpack.c.l.s4 1983009808
        %v4119 = vunpack.c.0.s8 %v4118
        %v4120 = vlaneseq
        %v4121 = vshrl.u32 %v4120, 7
        %v4122 = vsub.s32 %v4119, %v4121
        %v4123 = vrot.slane %v3966, %v4122
        %v4125 = vunpack.c.l.s4 1983009808
        %v4126 = vunpack.c.0.s8 %v4125
        %v4127 = vlaneseq
        %v4128 = vshrl.u32 %v4127, 7
        %v4129 = vsub.s32 %v4126, %v4128
        %v4130 = vrot.slane %v4116, %v4129
        %v4131 = vcombine.low %v4108, %v4123
        %v4132 = vcombine.high %v4108, %v4123
        %v4134 = vunpack.c.l.s4 1934713408
        %v4135 = vunpack.c.0.s8 %v4134
        %v4136 = vlaneseq
        %v4137 = vshrl.u32 %v4136, 7
        %v4138 = vsub.s32 %v4135, %v4137
        %v4139 = vrot.slane %v4131, %v4138
        %v4141 = vunpack.c.l.s4 1934713408
        %v4142 = vunpack.c.0.s8 %v4141
        %v4143 = vlaneseq
        %v4144 = vshrl.u32 %v4143, 7
        %v4145 = vsub.s32 %v4142, %v4144
        %v4146 = vrot.slane %v4132, %v4145
        %v4147 = vcombine.low %v4115, %v4130
        %v4148 = vcombine.high %v4115, %v4130
        %v4150 = vunpack.c.l.s4 1934713408
        %v4151 = vunpack.c.0.s8 %v4150
        %v4152 = vlaneseq
        %v4153 = vshrl.u32 %v4152, 7
        %v4154 = vsub.s32 %v4151, %v4153
        %v4155 = vrot.slane %v4147, %v4154
        %v4157 = vunpack.c.l.s4 1934713408
        %v4158 = vunpack.c.0.s8 %v4157
        %v4159 = vlaneseq
        %v4160 = vshrl.u32 %v4159, 7
        %v4161 = vsub.s32 %v4158, %v4160
        %v4162 = vrot.slane %v4148, %v4161
        %v4163 = vcombine.high %v4139, 0.0
        %v4164 = vcombine.high %v4146, 0.0
        %v4165 = vcombine.high %v4155, 0.0
        %v4166 = vcombine.high %v4162, 0.0
        %v4167 = vcombine.low %v4007, %v4014
        %v4169 = vunpack.c.l.s4 1983009808
        %v4170 = vunpack.c.0.s8 %v4169
        %v4171 = vlaneseq
        %v4172 = vshrl.u32 %v4171, 7
        %v4173 = vsub.s32 %v4170, %v4172
        %v4174 = vrot.slane %v4167, %v4173
        %v4175 = vcombine.low %v4031, %v4032
        %v4177 = vunpack.c.l.s4 1983009808
        %v4178 = vunpack.c.0.s8 %v4177
        %v4179 = vlaneseq
        %v4180 = vshrl.u32 %v4179, 7
        %v4181 = vsub.s32 %v4178, %v4180
        %v4182 = vrot.slane %v4175, %v4181
        %v4183 = vcombine.low %v4023, %v4030
        %v4185 = vunpack.c.l.s4 1983009808
        %v4186 = vunpack.c.0.s8 %v4185
        %v4187 = vlaneseq
        %v4188 = vshrl.u32 %v4187, 7
        %v4189 = vsub.s32 %v4186, %v4188
        %v4190 = vrot.slane %v4183, %v4189
        %v4191 = vcombine.low %v4033, %v4034
        %v4193 = vunpack.c.l.s4 1983009808
        %v4194 = vunpack.c.0.s8 %v4193
        %v4195 = vlaneseq
        %v4196 = vshrl.u32 %v4195, 7
        %v4197 = vsub.s32 %v4194, %v4196
        %v4198 = vrot.slane %v4191, %v4197
        %v4199 = vcombine.low %v4174, %v4182
        %v4201 = vunpack.c.l.s4 1934713408
        %v4202 = vunpack.c.0.s8 %v4201
        %v4203 = vlaneseq
        %v4204 = vshrl.u32 %v4203, 7
        %v4205 = vsub.s32 %v4202, %v4204
        %v4206 = vrot.slane %v4199, %v4205
        %v4207 = vcombine.low %v4190, %v4198
        %v4209 = vunpack.c.l.s4 1934713408
        %v4210 = vunpack.c.0.s8 %v4209
        %v4211 = vlaneseq
        %v4212 = vshrl.u32 %v4211, 7
        %v4213 = vsub.s32 %v4210, %v4212
        %v4214 = vrot.slane %v4207, %v4213
        %v4215 = vcombine.low %v4206, %v4214
        %v4216 = vcombine.high %v4206, %v4214
        %v4217 = vcombine.low %v4073, %v4080
        %v4219 = vunpack.c.l.s4 1983009808
        %v4220 = vunpack.c.0.s8 %v4219
        %v4221 = vlaneseq
        %v4222 = vshrl.u32 %v4221, 7
        %v4223 = vsub.s32 %v4220, %v4222
        %v4224 = vrot.slane %v4217, %v4223
        %v4225 = vcombine.low %v4097, %v4098
        %v4227 = vunpack.c.l.s4 1983009808
        %v4228 = vunpack.c.0.s8 %v4227
        %v4229 = vlaneseq
        %v4230 = vshrl.u32 %v4229, 7
        %v4231 = vsub.s32 %v4228, %v4230
        %v4232 = vrot.slane %v4225, %v4231
        %v4233 = vcombine.low %v4089, %v4096
        %v4235 = vunpack.c.l.s4 1983009808
        %v4236 = vunpack.c.0.s8 %v4235
        %v4237 = vlaneseq
        %v4238 = vshrl.u32 %v4237, 7
        %v4239 = vsub.s32 %v4236, %v4238
        %v4240 = vrot.slane %v4233, %v4239
        %v4241 = vcombine.low %v4099, %v4100
        %v4243 = vunpack.c.l.s4 1983009808
        %v4244 = vunpack.c.0.s8 %v4243
        %v4245 = vlaneseq
        %v4246 = vshrl.u32 %v4245, 7
        %v4247 = vsub.s32 %v4244, %v4246
        %v4248 = vrot.slane %v4241, %v4247
        %v4249 = vcombine.low %v4224, %v4232
        %v4251 = vunpack.c.l.s4 1934713408
        %v4252 = vunpack.c.0.s8 %v4251
        %v4253 = vlaneseq
        %v4254 = vshrl.u32 %v4253, 7
        %v4255 = vsub.s32 %v4252, %v4254
        %v4256 = vrot.slane %v4249, %v4255
        %v4257 = vcombine.low %v4240, %v4248
        %v4259 = vunpack.c.l.s4 1934713408
        %v4260 = vunpack.c.0.s8 %v4259
        %v4261 = vlaneseq
        %v4262 = vshrl.u32 %v4261, 7
        %v4263 = vsub.s32 %v4260, %v4262
        %v4264 = vrot.slane %v4257, %v4263
        %v4265 = vcombine.low %v4256, %v4264
        %v4266 = vcombine.high %v4256, %v4264
        %v4267 = vcombine.low %v4139, %v4146
        %v4269 = vunpack.c.l.s4 1983009808
        %v4270 = vunpack.c.0.s8 %v4269
        %v4271 = vlaneseq
        %v4272 = vshrl.u32 %v4271, 7
        %v4273 = vsub.s32 %v4270, %v4272
        %v4274 = vrot.slane %v4267, %v4273
        %v4275 = vcombine.low %v4163, %v4164
        %v4277 = vunpack.c.l.s4 1983009808
        %v4278 = vunpack.c.0.s8 %v4277
        %v4279 = vlaneseq
        %v4280 = vshrl.u32 %v4279, 7
        %v4281 = vsub.s32 %v4278, %v4280
        %v4282 = vrot.slane %v4275, %v4281
        %v4283 = vcombine.low %v4155, %v4162
        %v4285 = vunpack.c.l.s4 1983009808
        %v4286 = vunpack.c.0.s8 %v4285
        %v4287 = vlaneseq
        %v4288 = vshrl.u32 %v4287, 7
        %v4289 = vsub.s32 %v4286, %v4288
        %v4290 = vrot.slane %v4283, %v4289
        %v4291 = vcombine.low %v4165, %v4166
        %v4293 = vunpack.c.l.s4 1983009808
        %v4294 = vunpack.c.0.s8 %v4293
        %v4295 = vlaneseq
        %v4296 = vshrl.u32 %v4295, 7
        %v4297 = vsub.s32 %v4294, %v4296
        %v4298 = vrot.slane %v4291, %v4297
        %v4299 = vcombine.low %v4274, %v4282
        %v4301 = vunpack.c.l.s4 1934713408
        %v4302 = vunpack.c.0.s8 %v4301
        %v4303 = vlaneseq
        %v4304 = vshrl.u32 %v4303, 7
        %v4305 = vsub.s32 %v4302, %v4304
        %v4306 = vrot.slane %v4299, %v4305
        %v4307 = vcombine.low %v4290, %v4298
        %v4309 = vunpack.c.l.s4 1934713408
        %v4310 = vunpack.c.0.s8 %v4309
        %v4311 = vlaneseq
        %v4312 = vshrl.u32 %v4311, 7
        %v4313 = vsub.s32 %v4310, %v4312
        %v4314 = vrot.slane %v4307, %v4313
        %v4315 = vcombine.low %v4306, %v4314
        %v4316 = vcombine.high %v4306, %v4314
        %4320 = vrot.lane.b32.xlu0 %v4216, 16
        %v4321 = vpop.permute.xlu0 %4320
        %4322 = vrot.lane.b32.xlu0 %v4266, 16
        %v4323 = vpop.permute.xlu0 %4322
        %4324 = vrot.lane.b32.xlu0 %v4316, 16
        %v4325 = vpop.permute.xlu0 %4324
        %v4329 = vsel %vm1314, %v4215, %v4321
        %v4330 = vsel %vm1314, %v4265, %v4323
        %v4331 = vsel %vm1314, %v4315, %v4325
        %v4332 = vld [vmem:[%s2596 + $0x8] sm:$0xff]
        %v4333 = vld [vmem:[%s2596 + $0x20] sm:$0xff]
        %v4334 = vld [vmem:[%s2596 + $0x38] sm:$0xff]
        %v4335 = vld [vmem:[%s2596 + $0x50] sm:$0xff]
        %v4337 = vsel %vm357, %v4329, 0
        %v4340 = vsel %vm357, %v4330, 0
        %v4343 = vsel %vm357, %v4331, 0
        %4345 = vmatprep.subr.mxu0 0.0
        %4346 = vmatpush1.msra.mxu0 0.0
        %4347 = vmatprep.subr.mxu0 0.0
        %4348 = vmatpush1.msra.mxu0 0.0
        %4349 = vmatprep.subr.mxu0 0.0
        %4350 = vmatpush1.msra.mxu0 0.0
        %4351 = vmatprep.subr.mxu0 0.0
        %4352 = vmatpush1.msra.mxu0 0.0
        %4353 = vmatprep.subr.mxu0 0.0
        %4354 = vmatpush1.msra.mxu0 0.0
        %4355 = vmatprep.subr.mxu0 0.0
        %4356 = vmatpush1.msra.mxu0 0.0
        %4357 = vmatprep.subr.mxu0 0.0
        %4358 = vmatpush1.msra.mxu0 0.0
        %4359 = vmatprep.subr.mxu0 0.0
        %4360 = vmatpush1.msra.mxu0 0.0
        %4361 = vmatprep.subr.mxu0 0.0
        %4362 = vmatpush1.msra.mxu0 0.0
        %4363 = vmatprep.subr.mxu0 0.0
        %4364 = vmatpush1.msra.mxu0 0.0
        %4365 = vmatprep.subr.mxu0 0.0
        %4366 = vmatpush1.msra.mxu0 0.0
        %4367 = vmatprep.subr.mxu0 0.0
        %4368 = vmatpush1.msra.mxu0 0.0
        %4369 = vmatprep.subr.mxu0 0.0
        %4370 = vmatpush1.msra.mxu0 %v4335
        %4371 = vmatprep.subr.mxu0 0.0
        %4372 = vmatpush1.msra.mxu0 %v4334
        %4373 = vmatprep.subr.mxu0 0.0
        %4374 = vmatpush1.msra.mxu0 %v4333
        %4375 = vmatprep.subr.mxu0 0.0
        %4376 = vmatpush1.msra.mxu0 %v4332
        %4377 = vmatprep.subr.mxu0 0.0
        %4378 = vmatpush2.msra.mxu0 0.0
        %4379 = vmatprep.subr.mxu0 0.0
        %4380 = vmatpush2.msra.mxu0 0.0
        %4381 = vmatprep.subr.mxu0 0.0
        %4382 = vmatpush2.msra.mxu0 0.0
        %4383 = vmatprep.subr.mxu0 0.0
        %4384 = vmatpush2.msra.mxu0 0.0
        %4385 = vmatprep.subr.mxu0 0.0
        %4386 = vmatpush2.msra.mxu0 0.0
        %4387 = vmatprep.subr.mxu0 0.0
        %4388 = vmatpush2.msra.mxu0 0.0
        %4389 = vmatprep.subr.mxu0 0.0
        %4390 = vmatpush2.msra.mxu0 0.0
        %4391 = vmatprep.subr.mxu0 0.0
        %4392 = vmatpush2.msra.mxu0 0.0
        %4393 = vmatprep.subr.mxu0 0.0
        %4394 = vmatpush2.msra.mxu0 0.0
        %4395 = vmatprep.subr.mxu0 0.0
        %4396 = vmatpush2.msra.mxu0 0.0
        %4397 = vmatprep.subr.mxu0 0.0
        %4398 = vmatpush2.msra.mxu0 0.0
        %4399 = vmatprep.subr.mxu0 0.0
        %4400 = vmatpush2.msra.mxu0 0.0
        %4401 = vmatprep.subr.mxu0 0.0
        %4402 = vmatpush2.msra.mxu0 0.0
        %4403 = vmatprep.subr.mxu0 0.0
        %4404 = vmatpush2.msra.mxu0 0.0
        %4405 = vmatprep.subr.mxu0 0.0
        %4406 = vmatpush2.msra.mxu0 0.0
        %4407 = vmatprep.subr.mxu0 0.0
        %4408 = vmatpush2.msra.mxu0 0.0
        %4409 = vmatprep.mubr.f32.mxu0 0.0
        %4410 = vmatmul.mubr.f32.gmra.mxu0 %v4337
        %v4411 = vpop.f32.mrf.mxu0
        %v4412 = vadd.f32 0.0, %v4411
        %v4413 = vpop.f32.mrf.mxu0
        %4414 = vmatprep.mubr.f32.mxu0 0.0
        %4415 = vmatmul.mubr.f32.gmra.mxu0 %v4340
        %v4416 = vpop.f32.mrf.mxu0
        %v4417 = vadd.f32 0.0, %v4416
        %v4418 = vpop.f32.mrf.mxu0
        %4419 = vmatprep.mubr.f32.mxu0 0.0
        %4420 = vmatmul.mubr.f32.gmra.mxu0 %v4343
        %v4421 = vpop.f32.mrf.mxu0
        %v4422 = vadd.f32 0.0, %v4421
        %v4423 = vpop.f32.mrf.mxu0
        %4424 = vdwg.mxu0
        %v4425 = vadd.f32 %v2537, %v4412
        %v4426 = vadd.f32 %v2538, %v4417
        %v4427 = vadd.f32 %v2539, %v4422
        %v4428 = vld [vmem:[%s2540 + $0x4] sm:$0x1]
        %v4429 = vlaneseq
        %v4430 = vshrl.u32 %v4429, 7
        %v4431 = vsub.s32 0, %v4430
        %v4432 = vrot.slane %v4428, %v4431
        %v4433 = vadd.f32 %v4425, %v4432
        %v4434 = vadd.f32 %v4426, %v4432
        %v4435 = vadd.f32 %v4427, %v4432
        %v4436 = vld [vmem:[%s2540 + $0x2] sm:$0x1]
        %v4437 = vld [vmem:[%s2540 + $0x3] sm:$0x1]
        %v4438 = vsel %vm357, %v4433, 0.0
        %4439 = vadd.xlane.f32.xlu0 %v4438
        %v4440 = vpop.xlane.xlu0 %4439
        %v4441 = vsel %vm357, %v4434, 0.0
        %4442 = vadd.xlane.f32.xlu0 %v4441
        %v4443 = vpop.xlane.xlu0 %4442
        %v4444 = vsel %vm357, %v4435, 0.0
        %4445 = vadd.xlane.f32.xlu0 %v4444
        %v4446 = vpop.xlane.xlu0 %4445
        %v4447 = vmul.f32 %v4440, %v367
        %v4448 = vmul.f32 %v4443, %v367
        %v4449 = vmul.f32 %v4446, %v367
        %v4450 = vsub.f32 %v4433, %v4447
        %v4451 = vsub.f32 %v4434, %v4448
        %v4452 = vsub.f32 %v4435, %v4449
        %v4453 = vmul.f32 %v4450, %v4450
        %v4454 = vmul.f32 %v4451, %v4451
        %v4455 = vmul.f32 %v4452, %v4452
        %v4456 = vsel %vm357, %v4453, 0.0
        %4457 = vadd.xlane.f32.xlu0 %v4456
        %v4458 = vpop.xlane.xlu0 %4457
        %v4459 = vsel %vm357, %v4454, 0.0
        %4460 = vadd.xlane.f32.xlu0 %v4459
        %v4461 = vpop.xlane.xlu0 %4460
        %v4462 = vsel %vm357, %v4455, 0.0
        %4463 = vadd.xlane.f32.xlu0 %v4462
        %v4464 = vpop.xlane.xlu0 %4463
        %v4465 = vmul.f32 %v4458, %v367
        %v4466 = vmul.f32 %v4461, %v367
        %v4467 = vmul.f32 %v4464, %v367
        %v4468 = vadd.f32 %v4465, 1e-12
        %v4469 = vadd.f32 %v4466, 1e-12
        %v4470 = vadd.f32 %v4467, 1e-12
        %v4471 = vrsqrt.pop %v4468
        %v4472 = vrsqrt.pop %v4469
        %v4473 = vrsqrt.pop %v4470
        %v4474 = vmul.f32 %v4450, %v4471
        %v4475 = vmul.f32 %v4451, %v4472
        %v4476 = vmul.f32 %v4452, %v4473
        %v4477 = vlaneseq
        %v4478 = vshrl.u32 %v4477, 7
        %v4479 = vsub.s32 0, %v4478
        %v4480 = vrot.slane %v4436, %v4479
        %v4481 = vmul.f32 %v4474, %v4480
        %v4482 = vmul.f32 %v4475, %v4480
        %v4483 = vmul.f32 %v4476, %v4480
        %v4484 = vlaneseq
        %v4485 = vshrl.u32 %v4484, 7
        %v4486 = vsub.s32 0, %v4485
        %v4487 = vrot.slane %v4437, %v4486
        %v4488 = vadd.f32 %v4481, %v4487
        %v4489 = vadd.f32 %v4482, %v4487
        %v4490 = vadd.f32 %v4483, %v4487
        %v4491 = vld [vmem:[%s2596 + $0x10] sm:$0xff]
        %v4492 = vld [vmem:[%s2596 + $0x28] sm:$0xff]
        %v4493 = vld [vmem:[%s2596 + $0x40] sm:$0xff]
        %v4494 = vld [vmem:[%s2596 + $0x58] sm:$0xff]
        %v4495 = vld [vmem:[%s2540 + $0x7] sm:$0x1]
        %v4496 = vlaneseq
        %v4497 = vshrl.u32 %v4496, 7
        %v4498 = vsub.s32 0, %v4497
        %v4499 = vrot.slane %v4495, %v4498
        %v4501 = vsel %vm357, %v4488, 0
        %v4504 = vsel %vm357, %v4489, 0
        %v4507 = vsel %vm357, %v4490, 0
        %4509 = vmatprep.subr.mxu0 0.0
        %4510 = vmatpush1.msra.mxu0 0.0
        %4511 = vmatprep.subr.mxu0 0.0
        %4512 = vmatpush1.msra.mxu0 0.0
        %4513 = vmatprep.subr.mxu0 0.0
        %4514 = vmatpush1.msra.mxu0 0.0
        %4515 = vmatprep.subr.mxu0 0.0
        %4516 = vmatpush1.msra.mxu0 0.0
        %4517 = vmatprep.subr.mxu0 0.0
        %4518 = vmatpush1.msra.mxu0 0.0
        %4519 = vmatprep.subr.mxu0 0.0
        %4520 = vmatpush1.msra.mxu0 0.0
        %4521 = vmatprep.subr.mxu0 0.0
        %4522 = vmatpush1.msra.mxu0 0.0
        %4523 = vmatprep.subr.mxu0 0.0
        %4524 = vmatpush1.msra.mxu0 0.0
        %4525 = vmatprep.subr.mxu0 0.0
        %4526 = vmatpush1.msra.mxu0 0.0
        %4527 = vmatprep.subr.mxu0 0.0
        %4528 = vmatpush1.msra.mxu0 0.0
        %4529 = vmatprep.subr.mxu0 0.0
        %4530 = vmatpush1.msra.mxu0 0.0
        %4531 = vmatprep.subr.mxu0 0.0
        %4532 = vmatpush1.msra.mxu0 0.0
        %4533 = vmatprep.subr.mxu0 0.0
        %4534 = vmatpush1.msra.mxu0 %v4494
        %4535 = vmatprep.subr.mxu0 0.0
        %4536 = vmatpush1.msra.mxu0 %v4493
        %4537 = vmatprep.subr.mxu0 0.0
        %4538 = vmatpush1.msra.mxu0 %v4492
        %4539 = vmatprep.subr.mxu0 0.0
        %4540 = vmatpush1.msra.mxu0 %v4491
        %4541 = vmatprep.subr.mxu0 0.0
        %4542 = vmatpush2.msra.mxu0 0.0
        %4543 = vmatprep.subr.mxu0 0.0
        %4544 = vmatpush2.msra.mxu0 0.0
        %4545 = vmatprep.subr.mxu0 0.0
        %4546 = vmatpush2.msra.mxu0 0.0
        %4547 = vmatprep.subr.mxu0 0.0
        %4548 = vmatpush2.msra.mxu0 0.0
        %4549 = vmatprep.subr.mxu0 0.0
        %4550 = vmatpush2.msra.mxu0 0.0
        %4551 = vmatprep.subr.mxu0 0.0
        %4552 = vmatpush2.msra.mxu0 0.0
        %4553 = vmatprep.subr.mxu0 0.0
        %4554 = vmatpush2.msra.mxu0 0.0
        %4555 = vmatprep.subr.mxu0 0.0
        %4556 = vmatpush2.msra.mxu0 0.0
        %4557 = vmatprep.subr.mxu0 0.0
        %4558 = vmatpush2.msra.mxu0 0.0
        %4559 = vmatprep.subr.mxu0 0.0
        %4560 = vmatpush2.msra.mxu0 0.0
        %4561 = vmatprep.subr.mxu0 0.0
        %4562 = vmatpush2.msra.mxu0 0.0
        %4563 = vmatprep.subr.mxu0 0.0
        %4564 = vmatpush2.msra.mxu0 0.0
        %4565 = vmatprep.subr.mxu0 0.0
        %4566 = vmatpush2.msra.mxu0 0.0
        %4567 = vmatprep.subr.mxu0 0.0
        %4568 = vmatpush2.msra.mxu0 0.0
        %4569 = vmatprep.subr.mxu0 0.0
        %4570 = vmatpush2.msra.mxu0 0.0
        %4571 = vmatprep.subr.mxu0 0.0
        %4572 = vmatpush2.msra.mxu0 0.0
        %4573 = vmatprep.mubr.f32.mxu0 0.0
        %4574 = vmatmul.mubr.f32.gmra.mxu0 %v4501
        %v4575 = vpop.f32.mrf.mxu0
        %v4576 = vadd.f32 %v4499, %v4575
        %v4577 = vpop.f32.mrf.mxu0
        %4578 = vmatprep.mubr.f32.mxu0 0.0
        %4579 = vmatmul.mubr.f32.gmra.mxu0 %v4504
        %v4580 = vpop.f32.mrf.mxu0
        %v4581 = vadd.f32 %v4499, %v4580
        %v4582 = vpop.f32.mrf.mxu0
        %4583 = vmatprep.mubr.f32.mxu0 0.0
        %4584 = vmatmul.mubr.f32.gmra.mxu0 %v4507
        %v4585 = vpop.f32.mrf.mxu0
        %v4586 = vadd.f32 %v4499, %v4585
        %v4587 = vpop.f32.mrf.mxu0
        %4588 = vdwg.mxu0
        %v4589 = vmul.f32 %v4576, 0.5
        %v4590 = vmul.f32 %v4581, 0.5
        %v4591 = vmul.f32 %v4586, 0.5
        %v4592 = vmul.f32 %v4576, 0.044715
        %v4593 = vmul.f32 %v4581, 0.044715
        %v4594 = vmul.f32 %v4586, 0.044715
        %v4595 = vmul.f32 %v4592, %v4576
        %v4596 = vmul.f32 %v4593, %v4581
        %v4597 = vmul.f32 %v4594, %v4586
        %v4598 = vmul.f32 %v4595, %v4576
        %v4599 = vmul.f32 %v4596, %v4581
        %v4600 = vmul.f32 %v4597, %v4586
        %v4601 = vadd.f32 %v4576, %v4598
        %v4602 = vadd.f32 %v4581, %v4599
        %v4603 = vadd.f32 %v4586, %v4600
        %v4604 = vmul.f32 %v4601, 0.7978846
        %v4605 = vmul.f32 %v4602, 0.7978846
        %v4606 = vmul.f32 %v4603, 0.7978846
        %v4607 = vtanh.pop %v4604
        %v4608 = vtanh.pop %v4605
        %v4609 = vtanh.pop %v4606
        %v4610 = vadd.f32 %v4607, 1.0
        %v4611 = vadd.f32 %v4608, 1.0
        %v4612 = vadd.f32 %v4609, 1.0
        %v4613 = vmul.f32 %v4589, %v4610
        %v4614 = vmul.f32 %v4590, %v4611
        %v4615 = vmul.f32 %v4591, %v4612
        %s4616 = scalar_lea.vmem %s3, 128
        %v4617 = vld [vmem:[%s4616] sm:$0xff]
        %v4618 = vld [vmem:[%s4616 + $0x8] sm:$0xff]
        %v4619 = vld [vmem:[%s4616 + $0x10] sm:$0xff]
        %v4620 = vld [vmem:[%s4616 + $0x18] sm:$0xff]
        %v4621 = vld [vmem:[%s4616 + $0x20] sm:$0xff]
        %v4622 = vld [vmem:[%s4616 + $0x28] sm:$0xff]
        %v4623 = vld [vmem:[%s4616 + $0x30] sm:$0xff]
        %v4624 = vld [vmem:[%s4616 + $0x38] sm:$0xff]
        %v4625 = vld [vmem:[%s4616 + $0x40] sm:$0xff]
        %v4626 = vld [vmem:[%s4616 + $0x48] sm:$0xff]
        %v4627 = vld [vmem:[%s4616 + $0x50] sm:$0xff]
        %v4628 = vld [vmem:[%s4616 + $0x58] sm:$0xff]
        %v4629 = vld [vmem:[%s4616 + $0x60] sm:$0xff]
        %v4630 = vld [vmem:[%s4616 + $0x68] sm:$0xff]
        %v4631 = vld [vmem:[%s4616 + $0x70] sm:$0xff]
        %v4632 = vld [vmem:[%s4616 + $0x78] sm:$0xff]
        %4633 = vmatprep.subr.mxu0 0.0
        %4634 = vmatpush1.msra.mxu0 %v4632
        %4635 = vmatprep.subr.mxu0 0.0
        %4636 = vmatpush1.msra.mxu0 %v4631
        %4637 = vmatprep.subr.mxu0 0.0
        %4638 = vmatpush1.msra.mxu0 %v4630
        %4639 = vmatprep.subr.mxu0 0.0
        %4640 = vmatpush1.msra.mxu0 %v4629
        %4641 = vmatprep.subr.mxu0 0.0
        %4642 = vmatpush1.msra.mxu0 %v4628
        %4643 = vmatprep.subr.mxu0 0.0
        %4644 = vmatpush1.msra.mxu0 %v4627
        %4645 = vmatprep.subr.mxu0 0.0
        %4646 = vmatpush1.msra.mxu0 %v4626
        %4647 = vmatprep.subr.mxu0 0.0
        %4648 = vmatpush1.msra.mxu0 %v4625
        %4649 = vmatprep.subr.mxu0 0.0
        %4650 = vmatpush1.msra.mxu0 %v4624
        %4651 = vmatprep.subr.mxu0 0.0
        %4652 = vmatpush1.msra.mxu0 %v4623
        %4653 = vmatprep.subr.mxu0 0.0
        %4654 = vmatpush1.msra.mxu0 %v4622
        %4655 = vmatprep.subr.mxu0 0.0
        %4656 = vmatpush1.msra.mxu0 %v4621
        %4657 = vmatprep.subr.mxu0 0.0
        %4658 = vmatpush1.msra.mxu0 %v4620
        %4659 = vmatprep.subr.mxu0 0.0
        %4660 = vmatpush1.msra.mxu0 %v4619
        %4661 = vmatprep.subr.mxu0 0.0
        %4662 = vmatpush1.msra.mxu0 %v4618
        %4663 = vmatprep.subr.mxu0 0.0
        %4664 = vmatpush1.msra.mxu0 %v4617
        %4665 = vmatprep.subr.mxu0 0.0
        %4666 = vmatpush2.msra.mxu0 0.0
        %4667 = vmatprep.subr.mxu0 0.0
        %4668 = vmatpush2.msra.mxu0 0.0
        %4669 = vmatprep.subr.mxu0 0.0
        %4670 = vmatpush2.msra.mxu0 0.0
        %4671 = vmatprep.subr.mxu0 0.0
        %4672 = vmatpush2.msra.mxu0 0.0
        %4673 = vmatprep.subr.mxu0 0.0
        %4674 = vmatpush2.msra.mxu0 0.0
        %4675 = vmatprep.subr.mxu0 0.0
        %4676 = vmatpush2.msra.mxu0 0.0
        %4677 = vmatprep.subr.mxu0 0.0
        %4678 = vmatpush2.msra.mxu0 0.0
        %4679 = vmatprep.subr.mxu0 0.0
        %4680 = vmatpush2.msra.mxu0 0.0
        %4681 = vmatprep.subr.mxu0 0.0
        %4682 = vmatpush2.msra.mxu0 0.0
        %4683 = vmatprep.subr.mxu0 0.0
        %4684 = vmatpush2.msra.mxu0 0.0
        %4685 = vmatprep.subr.mxu0 0.0
        %4686 = vmatpush2.msra.mxu0 0.0
        %4687 = vmatprep.subr.mxu0 0.0
        %4688 = vmatpush2.msra.mxu0 0.0
        %4689 = vmatprep.subr.mxu0 0.0
        %4690 = vmatpush2.msra.mxu0 0.0
        %4691 = vmatprep.subr.mxu0 0.0
        %4692 = vmatpush2.msra.mxu0 0.0
        %4693 = vmatprep.subr.mxu0 0.0
        %4694 = vmatpush2.msra.mxu0 0.0
        %4695 = vmatprep.subr.mxu0 0.0
        %4696 = vmatpush2.msra.mxu0 0.0
        %4697 = vmatprep.mubr.f32.mxu0 0.0
        %4698 = vmatmul.mubr.f32.gmra.mxu0 %v4613
        %v4699 = vpop.f32.mrf.mxu0
        %v4700 = vadd.f32 0.0, %v4699
        %v4701 = vpop.f32.mrf.mxu0
        %4702 = vmatprep.mubr.f32.mxu0 0.0
        %4703 = vmatmul.mubr.f32.gmra.mxu0 %v4614
        %v4704 = vpop.f32.mrf.mxu0
        %v4705 = vpop.f32.mrf.mxu0
        %4706 = vmatprep.mubr.f32.mxu0 0.0
        %4707 = vmatmul.mubr.f32.gmra.mxu0 %v4615
        %v4708 = vpop.f32.mrf.mxu0
        %v4709 = vpop.f32.mrf.mxu0
        %4710 = vdwg.mxu0
        %v4711 = vadd.f32 %v4433, %v4700
        %v4712 = vld [vmem:[%s2540 + $0x5] sm:$0x1]
        %v4713 = vlaneseq
        %v4714 = vshrl.u32 %v4713, 7
        %v4715 = vsub.s32 0, %v4714
        %v4716 = vrot.slane %v4712, %v4715
        %v4717 = vadd.f32 %v4711, %v4716
        %v4718 = vld [vmem:[%s5 + $0x21] sm:$0x1]
        %v4719 = vld [vmem:[%s5 + $0x22] sm:$0x1]
        %vm4720 = vcmask 253952
        %v4721 = vsel %vm4720, %v4717, 0.0
        %4722 = vadd.xlane.f32.xlu0 %v4721
        %v4723 = vpop.xlane.xlu0 %4722
        %v4724 = vmul.f32 %v4723, %v367
        %v4725 = vsub.f32 %v4717, %v4724
        %v4726 = vmul.f32 %v4725, %v4725
        %v4727 = vsel %vm4720, %v4726, 0.0
        %4728 = vadd.xlane.f32.xlu0 %v4727
        %v4729 = vpop.xlane.xlu0 %4728
        %v4730 = vmul.f32 %v4729, %v367
        %v4731 = vadd.f32 %v4730, 1e-12
        %v4732 = vrsqrt.pop %v4731
        %v4733 = vmul.f32 %v4725, %v4732
        %v4734 = vmul.f32 %v4733, %v4718
        %v4735 = vadd.f32 %v4734, %v4719
        %v4736 = vld [vmem:[%s5] sm:$0xff]
        %v4737 = vld [vmem:[%s5 + $0x8] sm:$0xff]
        %v4738 = vld [vmem:[%s5 + $0x10] sm:$0xff]
        %v4739 = vld [vmem:[%s5 + $0x18] sm:$0xff]
        %v4740 = vld [vmem:[%s5 + $0x20] sm:$0x1]
        %v4742 = vsel %vm357, %v4735, 0
        %4744 = vmatprep.subr.mxu0 0.0
        %4745 = vmatpush1.msra.mxu0 0.0
        %4746 = vmatprep.subr.mxu0 0.0
        %4747 = vmatpush1.msra.mxu0 0.0
        %4748 = vmatprep.subr.mxu0 0.0
        %4749 = vmatpush1.msra.mxu0 0.0
        %4750 = vmatprep.subr.mxu0 0.0
        %4751 = vmatpush1.msra.mxu0 0.0
        %4752 = vmatprep.subr.mxu0 0.0
        %4753 = vmatpush1.msra.mxu0 0.0
        %4754 = vmatprep.subr.mxu0 0.0
        %4755 = vmatpush1.msra.mxu0 0.0
        %4756 = vmatprep.subr.mxu0 0.0
        %4757 = vmatpush1.msra.mxu0 0.0
        %4758 = vmatprep.subr.mxu0 0.0
        %4759 = vmatpush1.msra.mxu0 0.0
        %4760 = vmatprep.subr.mxu0 0.0
        %4761 = vmatpush1.msra.mxu0 0.0
        %4762 = vmatprep.subr.mxu0 0.0
        %4763 = vmatpush1.msra.mxu0 0.0
        %4764 = vmatprep.subr.mxu0 0.0
        %4765 = vmatpush1.msra.mxu0 0.0
        %4766 = vmatprep.subr.mxu0 0.0
        %4767 = vmatpush1.msra.mxu0 0.0
        %4768 = vmatprep.subr.mxu0 0.0
        %4769 = vmatpush1.msra.mxu0 %v4739
        %4770 = vmatprep.subr.mxu0 0.0
        %4771 = vmatpush1.msra.mxu0 %v4738
        %4772 = vmatprep.subr.mxu0 0.0
        %4773 = vmatpush1.msra.mxu0 %v4737
        %4774 = vmatprep.subr.mxu0 0.0
        %4775 = vmatpush1.msra.mxu0 %v4736
        %4776 = vmatprep.subr.mxu0 0.0
        %4777 = vmatpush2.msra.mxu0 0.0
        %4778 = vmatprep.subr.mxu0 0.0
        %4779 = vmatpush2.msra.mxu0 0.0
        %4780 = vmatprep.subr.mxu0 0.0
        %4781 = vmatpush2.msra.mxu0 0.0
        %4782 = vmatprep.subr.mxu0 0.0
        %4783 = vmatpush2.msra.mxu0 0.0
        %4784 = vmatprep.subr.mxu0 0.0
        %4785 = vmatpush2.msra.mxu0 0.0
        %4786 = vmatprep.subr.mxu0 0.0
        %4787 = vmatpush2.msra.mxu0 0.0
        %4788 = vmatprep.subr.mxu0 0.0
        %4789 = vmatpush2.msra.mxu0 0.0
        %4790 = vmatprep.subr.mxu0 0.0
        %4791 = vmatpush2.msra.mxu0 0.0
        %4792 = vmatprep.subr.mxu0 0.0
        %4793 = vmatpush2.msra.mxu0 0.0
        %4794 = vmatprep.subr.mxu0 0.0
        %4795 = vmatpush2.msra.mxu0 0.0
        %4796 = vmatprep.subr.mxu0 0.0
        %4797 = vmatpush2.msra.mxu0 0.0
        %4798 = vmatprep.subr.mxu0 0.0
        %4799 = vmatpush2.msra.mxu0 0.0
        %4800 = vmatprep.subr.mxu0 0.0
        %4801 = vmatpush2.msra.mxu0 0.0
        %4802 = vmatprep.subr.mxu0 0.0
        %4803 = vmatpush2.msra.mxu0 0.0
        %4804 = vmatprep.subr.mxu0 0.0
        %4805 = vmatpush2.msra.mxu0 0.0
        %4806 = vmatprep.subr.mxu0 0.0
        %4807 = vmatpush2.msra.mxu0 0.0
        %4808 = vmatprep.mubr.f32.mxu0 0.0
        %4809 = vmatmul.mubr.f32.gmra.mxu0 %v4742
        %v4810 = vpop.f32.mrf.mxu0
        %v4811 = vadd.f32 %v4740, %v4810
        %v4812 = vpop.f32.mrf.mxu0
        %4813 = vdwg.mxu0
        %4814 = vst [vmem:[%s243] sm:$0x1] %v4811
        %s4815 = sand.u32 %s159, 1
        %s4816 = scalar_lea.sflag [#allocation3], %s4815
        %s4817 = sand.u32 %s159, 1
        %s4818 = scalar_lea.vmem [#allocation2], %s4817
        // Predicated region
        $region45: #{tpu_custom_call.1} parent=43 // pred_check
          %p4819 = pneg %p169
        $region46: #{tpu_custom_call.1} parent=43 // pred_check_branch
          %4821 = sbr.rel (%p4819) target = $region48
        $region47: #{tpu_custom_call.1} parent=43 // pred_region
          %s4823 = ssub.s32 16, 16
          %4824 = vsyncadd %s4816, %s4823
          %s4825 = smul.addr %s20, 16
          %s4826 = scalar_lea.hbm %s6, %s4825
          %s4828 = sshll.u32 %s4818, 4
          %s4829 = int_to_ptr.vmem [resolvable:$true] %s4828
          %4831 = dma.vmem_to_hbm [thread:$0]  %s4829, 16, %s4826, %s4816
        $region48: #{tpu_custom_call.1} parent=43 // pred_fallthru
          _
      $region44: #{tpu_custom_call.1} parent=5 // pred_fallthru
        _
      %p4832 = scmp.le.s32.totalorder 2, %s15
      // Predicated region
      $region49: #{tpu_custom_call.1} parent=5 // pred_check
        %p4833 = pneg %p4832
      $region50: #{tpu_custom_call.1} parent=5 // pred_check_branch
        %4835 = sbr.rel (%p4833) target = $region52
      $region51: #{tpu_custom_call.1} parent=5 // pred_region
        %s4836 = ssub.s32 %s15, 2
        // Predicated region
        $region53: #{tpu_custom_call.1} parent=51 // pred_check
          %p4837 = pneg %p175
        $region54: #{tpu_custom_call.1} parent=51 // pred_check_branch
          %4839 = sbr.rel (%p4837) target = $region56
        $region55: #{tpu_custom_call.1} parent=51 // pred_region
          %s4840 = sand.u32 %s160, 1
          %s4841 = scalar_lea.sflag [#allocation3], %s4840
          %s4842 = sand.u32 %s160, 1
          %s4843 = scalar_lea.vmem [#allocation2], %s4842
          %4844 = dma.done %s4841, 16
        $region56: #{tpu_custom_call.1} parent=51 // pred_fallthru
          _
      $region52: #{tpu_custom_call.1} parent=5 // pred_fallthru
        _
    $region6: #{tpu_custom_call.1} parent=1 // loop_footer
      %s19 = sadd.s32 1, %s15
    $region7: #{tpu_custom_call.1} parent=1 // loop_footer_branch
      %14 = sbr.rel target = $region3
    $region8: #{tpu_custom_call.1} parent=1 // loop_exit
      _
    %4845 = vsyncpa [#allocation3], 1
    %s4846 = scalar_lea.sflag [#allocation3], 1
    %4847 = vsyncpa %s4846, 1

</llo_original>
